<compile_context>
chip_gen: v7x
topology: tpu7x:2x2x1
jax: 0.10.0
libtpu: 0.0.40
codegen_flags: <defaults>
</compile_context>

<pallas_src>
import functools

import numpy as np
import jax
import jax.numpy as jnp
from jax.experimental import pallas as pl
from jax.experimental.pallas import tpu as pltpu


_MXU_DTYPE = jnp.bfloat16   # MXU operand dtype; accumulation/elementwise stay f32


def vae_kernel(x_ref, eps_ref,
               we1, be1, we2, be2, we3, be3, we4, be4,
               wd1, bd1, wd2, bd2, wd3, bd3, wd4, bd4,
               mulv_ref, xrec_ref):
    """Fused VAE forward on one (features, block_b) batch slab.

    Layout: batch on the lane axis (last dim), features on sublanes.  Each
    Linear is W @ h with W kept in torch (out, in) layout (bf16 MXU operands,
    f32 accumulation); bias add / ReLU / exp / reparameterization run in f32.
    """
    def lin(w_ref, h, b_ref):
        return jnp.dot(w_ref[...], h.astype(_MXU_DTYPE),
                       preferred_element_type=jnp.float32) + b_ref[...]

    def relu(h):
        return jnp.maximum(h, 0.0)

    lat = eps_ref.shape[0]

    # ----- encoder -----
    h = relu(lin(we1, x_ref[...], be1))
    h = relu(lin(we2, h, be2))
    h = relu(lin(we3, h, be3))
    mulv = lin(we4, h, be4)                      # (2*lat, TB): packed mu || logvar
    mulv_ref[...] = mulv

    # ----- reparameterization: z = eps * exp(0.5*logvar) + mu  (all f32) -----
    mu, logvar = mulv[:lat], mulv[lat:]
    z = eps_ref[...] * jnp.exp(0.5 * logvar) + mu

    # ----- decoder -----
    g = relu(lin(wd1, z, bd1))
    g = relu(lin(wd2, g, bd2))
    g = relu(lin(wd3, g, bd3))
    xrec_ref[...] = lin(wd4, g, bd4)             # (D, TB)


def prepare_params(params):
    """One-time (outside the jitted forward) weight cast + bias reshape.

    Weights stay in torch (out, in) layout (correct as-is for the
    batch-on-lane kernel) and are cast to bf16 for the MXU; biases become
    (out, 1) f32 columns that broadcast along the lane (batch) axis.
    """
    order = ["enc_w1", "enc_b1", "enc_w2", "enc_b2", "enc_w3", "enc_b3",
             "enc_w4", "enc_b4", "dec_w1", "dec_b1", "dec_w2", "dec_b2",
             "dec_w3", "dec_b3", "dec_w4", "dec_b4"]
    out = []
    for name in order:
        a = jnp.asarray(params[name])
        if "_w" in name:
            out.append(a.astype(_MXU_DTYPE))                     # (out, in) bf16
        else:
            out.append(a.astype(jnp.float32).reshape(-1, 1))     # (out, 1)  f32
    return tuple(out)


def _rep_spec(a, single_buffer):
    """BlockSpec for a per-step-replicated (constant index_map) operand."""
    nd = a.ndim
    idx = lambda i, _nd=nd: (0,) * _nd
    if single_buffer:
        # Constant block -> no need for double buffering.
        return pl.BlockSpec(a.shape, idx, pipeline_mode=pl.Buffered(1))
    return pl.BlockSpec(a.shape, idx)


@functools.partial(jax.jit,
                   static_argnames=("latent_dim", "block_b",
                                    "single_buffer_weights"))
def vae_forward(x, eps, prepared, latent_dim, block_b=None,
                single_buffer_weights=True):
    """x: (N, C, D) (channel 0 used, as in VAE.encode); eps: (N, latent)."""
    n = x.shape[0]
    d = x.shape[-1]
    lat = latent_dim

    if block_b is None:
        # Lane-aligned batch tile, capped at 512; nb >= 2 below keeps the DMA
        # pipeline overlapped and lets v7x's two TensorCores split the grid.
        block_b = min(512, max(128, ((pl.cdiv(n, 2) + 127) // 128) * 128))
    block_b = ((int(block_b) + 127) // 128) * 128
    nb = max(2, pl.cdiv(n, block_b))
    n_pad = nb * block_b

    # Batch-on-lane layout: (features, batch).
    x_t = jnp.transpose(x[:, 0, :]).astype(jnp.float32)          # (D, N)
    eps_t = jnp.transpose(eps).astype(jnp.float32)               # (lat, N)
    if n_pad != n:
        x_t = jnp.pad(x_t, ((0, 0), (0, n_pad - n)))
        eps_t = jnp.pad(eps_t, ((0, 0), (0, n_pad - n)))
    x_t = x_t.astype(_MXU_DTYPE)     # halve input DMA bytes; MXU runs bf16

    def act_spec(rows):
        return pl.BlockSpec((rows, block_b), lambda i: (0, i))

    w_specs = [_rep_spec(a, single_buffer_weights) for a in prepared]

    mulv_t, xrec_t = pl.pallas_call(
        vae_kernel,
        out_shape=(
            jax.ShapeDtypeStruct((2 * lat, n_pad), jnp.float32),  # mu || logvar
            jax.ShapeDtypeStruct((d, n_pad), jnp.float32),        # x_rec
        ),
        grid=(nb,),
        in_specs=[act_spec(d), act_spec(lat)] + w_specs,
        out_specs=(act_spec(2 * lat), act_spec(d)),
        compiler_params=pltpu.CompilerParams(
            dimension_semantics=("parallel",)),
    )(x_t, eps_t, *prepared)

    # Split / transpose back to (batch, features) in the wrapper (cheap XLA).
    mu = jnp.transpose(mulv_t[:lat, :n])
    logvar = jnp.transpose(mulv_t[lat:, :n])
    x_rec = jnp.transpose(xrec_t[:, :n])[:, None, :]              # decode() unsqueeze
    return mu, logvar, x_rec


def ref_forward(x, eps, p, latent_dim):
    """NumPy reference matching VAE.forward with the same eps and the same
    bf16-operand / f32-accumulate matmul precision as the kernel."""
    def bf16(a):
        return np.asarray(a).astype(jnp.bfloat16).astype(np.float32)

    def lin(h, w, b):
        return bf16(h) @ bf16(w).T + np.asarray(b, np.float32)

    def relu(h):
        return np.maximum(h, 0.0)

    h = np.asarray(x, np.float32)[:, 0, :]
    h = relu(lin(h, p["enc_w1"], p["enc_b1"]))
    h = relu(lin(h, p["enc_w2"], p["enc_b2"]))
    h = relu(lin(h, p["enc_w3"], p["enc_b3"]))
    o = lin(h, p["enc_w4"], p["enc_b4"])
    mu, logvar = o[:, :latent_dim], o[:, latent_dim:]
    z = np.asarray(eps, np.float32) * np.exp(0.5 * logvar) + mu
    g = relu(lin(z, p["dec_w1"], p["dec_b1"]))
    g = relu(lin(g, p["dec_w2"], p["dec_b2"]))
    g = relu(lin(g, p["dec_w3"], p["dec_b3"]))
    x_rec = lin(g, p["dec_w4"], p["dec_b4"])
    return mu, logvar, x_rec[:, None, :]


if __name__ == "__main__":
    LATENT, D = 8, 64
    H1, H2 = (3 * D) // 4, (2 * D) // 4              # 48, 32
    N = 300                                           # exercises padding (-> 2 x 256)

    key = jax.random.PRNGKey(0)
    ks = iter(jax.random.split(key, 24))

    def mk(shape):
        return 0.1 * jax.random.normal(next(ks), shape, jnp.float32)

    params = {
        "enc_w1": mk((H1, D)),          "enc_b1": mk((H1,)),
        "enc_w2": mk((H2, H1)),         "enc_b2": mk((H2,)),
        "enc_w3": mk((H2, H2)),         "enc_b3": mk((H2,)),
        "enc_w4": mk((2 * LATENT, H2)), "enc_b4": mk((2 * LATENT,)),
        "dec_w1": mk((H2, LATENT)),     "dec_b1": mk((H2,)),
        "dec_w2": mk((H2, H2)),         "dec_b2": mk((H2,)),
        "dec_w3": mk((H1, H2)),         "dec_b3": mk((H1,)),
        "dec_w4": mk((D, H1)),          "dec_b4": mk((D,)),
    }
    x = jax.random.normal(next(ks), (N, 1, D), jnp.float32)
    eps = jax.random.normal(next(ks), (N, LATENT), jnp.float32)
    # TODO(synk): torch.randn_like's RNG stream has no bit-exact JAX equivalent;
    # eps is drawn host-side with jax.random and fed to the kernel instead.

    prepared = prepare_params(params)   # one-time cast/reshape, outside the jit

    try:
        mu, logvar, x_rec = vae_forward(x, eps, prepared, LATENT,
                                        single_buffer_weights=True)
        jax.block_until_ready((mu, logvar, x_rec))
    except Exception:
        # Fallback if single-buffered (pl.Buffered(1)) replicated operands are
        # not supported by this jax build; semantics are identical.
        mu, logvar, x_rec = vae_forward(x, eps, prepared, LATENT,
                                        single_buffer_weights=False)
        jax.block_until_ready((mu, logvar, x_rec))

    np_params = {k: np.asarray(v) for k, v in params.items()}
    r_mu, r_lv, r_xr = ref_forward(np.asarray(x), np.asarray(eps), np_params, LATENT)

    assert mu.shape == (N, LATENT) and logvar.shape == (N, LATENT)
    assert x_rec.shape == (N, 1, D)
    for got, want, name in ((mu, r_mu, "mu"), (logvar, r_lv, "logvar"),
                            (x_rec, r_xr, "x_rec")):
        err = float(np.max(np.abs(np.asarray(got) - want)))
        assert np.allclose(np.asarray(got), want, rtol=1e-2, atol=1e-3), (name, err)
    print("KERNEL_OK")
</pallas_src>

<mosaic_0001>
module attributes {stable_mosaic.version = 11 : i64} {
  func.func @vae_kernel(%arg0: i32, %arg1: memref<64x256xbf16, #tpu.memory_space<vmem>>, %arg2: memref<8x256xf32, #tpu.memory_space<vmem>>, %arg3: memref<48x64xbf16, #tpu.memory_space<vmem>>, %arg4: memref<48x1xf32, #tpu.memory_space<vmem>>, %arg5: memref<32x48xbf16, #tpu.memory_space<vmem>>, %arg6: memref<32x1xf32, #tpu.memory_space<vmem>>, %arg7: memref<32x32xbf16, #tpu.memory_space<vmem>>, %arg8: memref<32x1xf32, #tpu.memory_space<vmem>>, %arg9: memref<16x32xbf16, #tpu.memory_space<vmem>>, %arg10: memref<16x1xf32, #tpu.memory_space<vmem>>, %arg11: memref<32x8xbf16, #tpu.memory_space<vmem>>, %arg12: memref<32x1xf32, #tpu.memory_space<vmem>>, %arg13: memref<32x32xbf16, #tpu.memory_space<vmem>>, %arg14: memref<32x1xf32, #tpu.memory_space<vmem>>, %arg15: memref<48x32xbf16, #tpu.memory_space<vmem>>, %arg16: memref<48x1xf32, #tpu.memory_space<vmem>>, %arg17: memref<64x48xbf16, #tpu.memory_space<vmem>>, %arg18: memref<64x1xf32, #tpu.memory_space<vmem>>, %arg19: memref<16x256xf32, #tpu.memory_space<vmem>>, %arg20: memref<64x256xf32, #tpu.memory_space<vmem>>) attributes {dimension_semantics = [#tpu.dimension_semantics<parallel>], iteration_bounds = array<i64: 2>, scalar_prefetch = 0 : i64, scratch_operands = 0 : i64, tpu.core_type = #tpu.core_type<tc>, window_params = [{transform_indices = @transform_0, window_bounds = array<i64: 64, 256>}, {transform_indices = @transform_1, window_bounds = array<i64: 8, 256>}, {pipeline_mode = #tpu.pipeline_mode<synchronous>, transform_indices = @transform_2, window_bounds = array<i64: 48, 64>}, {pipeline_mode = #tpu.pipeline_mode<synchronous>, transform_indices = @transform_3, window_bounds = array<i64: 48, 1>}, {pipeline_mode = #tpu.pipeline_mode<synchronous>, transform_indices = @transform_4, window_bounds = array<i64: 32, 48>}, {pipeline_mode = #tpu.pipeline_mode<synchronous>, transform_indices = @transform_5, window_bounds = array<i64: 32, 1>}, {pipeline_mode = #tpu.pipeline_mode<synchronous>, transform_indices = @transform_6, window_bounds = array<i64: 32, 32>}, {pipeline_mode = #tpu.pipeline_mode<synchronous>, transform_indices = @transform_7, window_bounds = array<i64: 32, 1>}, {pipeline_mode = #tpu.pipeline_mode<synchronous>, transform_indices = @transform_8, window_bounds = array<i64: 16, 32>}, {pipeline_mode = #tpu.pipeline_mode<synchronous>, transform_indices = @transform_9, window_bounds = array<i64: 16, 1>}, {pipeline_mode = #tpu.pipeline_mode<synchronous>, transform_indices = @transform_10, window_bounds = array<i64: 32, 8>}, {pipeline_mode = #tpu.pipeline_mode<synchronous>, transform_indices = @transform_11, window_bounds = array<i64: 32, 1>}, {pipeline_mode = #tpu.pipeline_mode<synchronous>, transform_indices = @transform_12, window_bounds = array<i64: 32, 32>}, {pipeline_mode = #tpu.pipeline_mode<synchronous>, transform_indices = @transform_13, window_bounds = array<i64: 32, 1>}, {pipeline_mode = #tpu.pipeline_mode<synchronous>, transform_indices = @transform_14, window_bounds = array<i64: 48, 32>}, {pipeline_mode = #tpu.pipeline_mode<synchronous>, transform_indices = @transform_15, window_bounds = array<i64: 48, 1>}, {pipeline_mode = #tpu.pipeline_mode<synchronous>, transform_indices = @transform_16, window_bounds = array<i64: 64, 48>}, {pipeline_mode = #tpu.pipeline_mode<synchronous>, transform_indices = @transform_17, window_bounds = array<i64: 64, 1>}, {transform_indices = @transform_18, window_bounds = array<i64: 16, 256>}, {transform_indices = @transform_19, window_bounds = array<i64: 64, 256>}]} {
    %c0 = arith.constant 0 : index
    %c0_0 = arith.constant 0 : index
    %0 = vector.load %arg1[%c0, %c0_0] : memref<64x256xbf16, #tpu.memory_space<vmem>>, vector<64x256xbf16>
    %c0_1 = arith.constant 0 : index
    %c0_2 = arith.constant 0 : index
    %1 = vector.load %arg3[%c0_1, %c0_2] : memref<48x64xbf16, #tpu.memory_space<vmem>>, vector<48x64xbf16>
    %cst = arith.constant dense<0.000000e+00> : vector<48x256xf32>
    %2 = tpu.matmul %1, %0, %cst {dimension_numbers = #tpu.dot_dimension_numbers<[1], [0], [0], [1], [0, 0, 1, 1], [], []>} : vector<48x64xbf16>, vector<64x256xbf16>, vector<48x256xf32> -> vector<48x256xf32>
    %c0_3 = arith.constant 0 : index
    %c0_4 = arith.constant 0 : index
    %3 = vector.load %arg4[%c0_3, %c0_4] : memref<48x1xf32, #tpu.memory_space<vmem>>, vector<48x1xf32>
    %4 = vector.broadcast %3 : vector<48x1xf32> to vector<48x256xf32>
    %5 = arith.addf %2, %4 : vector<48x256xf32>
    %cst_5 = arith.constant 0.000000e+00 : f32
    %6 = vector.broadcast %cst_5 : f32 to vector<48x256xf32>
    %7 = arith.maximumf %5, %6 : vector<48x256xf32>
    %c0_6 = arith.constant 0 : index
    %c0_7 = arith.constant 0 : index
    %8 = vector.load %arg5[%c0_6, %c0_7] : memref<32x48xbf16, #tpu.memory_space<vmem>>, vector<32x48xbf16>
    %9 = arith.truncf %7 : vector<48x256xf32> to vector<48x256xbf16>
    %cst_8 = arith.constant dense<0.000000e+00> : vector<32x256xf32>
    %10 = tpu.matmul %8, %9, %cst_8 {dimension_numbers = #tpu.dot_dimension_numbers<[1], [0], [0], [1], [0, 0, 1, 1], [], []>} : vector<32x48xbf16>, vector<48x256xbf16>, vector<32x256xf32> -> vector<32x256xf32>
    %c0_9 = arith.constant 0 : index
    %c0_10 = arith.constant 0 : index
    %11 = vector.load %arg6[%c0_9, %c0_10] : memref<32x1xf32, #tpu.memory_space<vmem>>, vector<32x1xf32>
    %12 = vector.broadcast %11 : vector<32x1xf32> to vector<32x256xf32>
    %13 = arith.addf %10, %12 : vector<32x256xf32>
    %cst_11 = arith.constant 0.000000e+00 : f32
    %14 = vector.broadcast %cst_11 : f32 to vector<32x256xf32>
    %15 = arith.maximumf %13, %14 : vector<32x256xf32>
    %c0_12 = arith.constant 0 : index
    %c0_13 = arith.constant 0 : index
    %16 = vector.load %arg7[%c0_12, %c0_13] : memref<32x32xbf16, #tpu.memory_space<vmem>>, vector<32x32xbf16>
    %17 = arith.truncf %15 : vector<32x256xf32> to vector<32x256xbf16>
    %cst_14 = arith.constant dense<0.000000e+00> : vector<32x256xf32>
    %18 = tpu.matmul %16, %17, %cst_14 {dimension_numbers = #tpu.dot_dimension_numbers<[1], [0], [0], [1], [0, 0, 1, 1], [], []>} : vector<32x32xbf16>, vector<32x256xbf16>, vector<32x256xf32> -> vector<32x256xf32>
    %c0_15 = arith.constant 0 : index
    %c0_16 = arith.constant 0 : index
    %19 = vector.load %arg8[%c0_15, %c0_16] : memref<32x1xf32, #tpu.memory_space<vmem>>, vector<32x1xf32>
    %20 = vector.broadcast %19 : vector<32x1xf32> to vector<32x256xf32>
    %21 = arith.addf %18, %20 : vector<32x256xf32>
    %cst_17 = arith.constant 0.000000e+00 : f32
    %22 = vector.broadcast %cst_17 : f32 to vector<32x256xf32>
    %23 = arith.maximumf %21, %22 : vector<32x256xf32>
    %c0_18 = arith.constant 0 : index
    %c0_19 = arith.constant 0 : index
    %24 = vector.load %arg9[%c0_18, %c0_19] : memref<16x32xbf16, #tpu.memory_space<vmem>>, vector<16x32xbf16>
    %25 = arith.truncf %23 : vector<32x256xf32> to vector<32x256xbf16>
    %cst_20 = arith.constant dense<0.000000e+00> : vector<16x256xf32>
    %26 = tpu.matmul %24, %25, %cst_20 {dimension_numbers = #tpu.dot_dimension_numbers<[1], [0], [0], [1], [0, 0, 1, 1], [], []>} : vector<16x32xbf16>, vector<32x256xbf16>, vector<16x256xf32> -> vector<16x256xf32>
    %c0_21 = arith.constant 0 : index
    %c0_22 = arith.constant 0 : index
    %27 = vector.load %arg10[%c0_21, %c0_22] : memref<16x1xf32, #tpu.memory_space<vmem>>, vector<16x1xf32>
    %28 = vector.broadcast %27 : vector<16x1xf32> to vector<16x256xf32>
    %29 = arith.addf %26, %28 : vector<16x256xf32>
    %c0_23 = arith.constant 0 : index
    %c0_24 = arith.constant 0 : index
    %30 = vector.load %arg19[%c0_23, %c0_24] : memref<16x256xf32, #tpu.memory_space<vmem>>, vector<16x256xf32>
    tpu.vector_store %arg19[%c0_23, %c0_24], %29 {strides = array<i32>} : memref<16x256xf32, #tpu.memory_space<vmem>>, vector<16x256xf32>,
    %31 = vector.extract_strided_slice %29 {offsets = [0, 0], sizes = [8, 256], strides = [1, 1]} : vector<16x256xf32> to vector<8x256xf32>
    %32 = vector.extract_strided_slice %29 {offsets = [8, 0], sizes = [8, 256], strides = [1, 1]} : vector<16x256xf32> to vector<8x256xf32>
    %c0_25 = arith.constant 0 : index
    %c0_26 = arith.constant 0 : index
    %33 = vector.load %arg2[%c0_25, %c0_26] : memref<8x256xf32, #tpu.memory_space<vmem>>, vector<8x256xf32>
    %cst_27 = arith.constant 5.000000e-01 : f32
    %34 = vector.broadcast %cst_27 : f32 to vector<8x256xf32>
    %35 = arith.mulf %34, %32 : vector<8x256xf32>
    %36 = math.exp %35 : vector<8x256xf32>
    %37 = arith.mulf %33, %36 : vector<8x256xf32>
    %38 = arith.addf %37, %31 : vector<8x256xf32>
    %c0_28 = arith.constant 0 : index
    %c0_29 = arith.constant 0 : index
    %39 = vector.load %arg11[%c0_28, %c0_29] : memref<32x8xbf16, #tpu.memory_space<vmem>>, vector<32x8xbf16>
    %40 = arith.truncf %38 : vector<8x256xf32> to vector<8x256xbf16>
    %cst_30 = arith.constant dense<0.000000e+00> : vector<32x256xf32>
    %41 = tpu.matmul %39, %40, %cst_30 {dimension_numbers = #tpu.dot_dimension_numbers<[1], [0], [0], [1], [0, 0, 1, 1], [], []>} : vector<32x8xbf16>, vector<8x256xbf16>, vector<32x256xf32> -> vector<32x256xf32>
    %c0_31 = arith.constant 0 : index
    %c0_32 = arith.constant 0 : index
    %42 = vector.load %arg12[%c0_31, %c0_32] : memref<32x1xf32, #tpu.memory_space<vmem>>, vector<32x1xf32>
    %43 = vector.broadcast %42 : vector<32x1xf32> to vector<32x256xf32>
    %44 = arith.addf %41, %43 : vector<32x256xf32>
    %cst_33 = arith.constant 0.000000e+00 : f32
    %45 = vector.broadcast %cst_33 : f32 to vector<32x256xf32>
    %46 = arith.maximumf %44, %45 : vector<32x256xf32>
    %c0_34 = arith.constant 0 : index
    %c0_35 = arith.constant 0 : index
    %47 = vector.load %arg13[%c0_34, %c0_35] : memref<32x32xbf16, #tpu.memory_space<vmem>>, vector<32x32xbf16>
    %48 = arith.truncf %46 : vector<32x256xf32> to vector<32x256xbf16>
    %cst_36 = arith.constant dense<0.000000e+00> : vector<32x256xf32>
    %49 = tpu.matmul %47, %48, %cst_36 {dimension_numbers = #tpu.dot_dimension_numbers<[1], [0], [0], [1], [0, 0, 1, 1], [], []>} : vector<32x32xbf16>, vector<32x256xbf16>, vector<32x256xf32> -> vector<32x256xf32>
    %c0_37 = arith.constant 0 : index
    %c0_38 = arith.constant 0 : index
    %50 = vector.load %arg14[%c0_37, %c0_38] : memref<32x1xf32, #tpu.memory_space<vmem>>, vector<32x1xf32>
    %51 = vector.broadcast %50 : vector<32x1xf32> to vector<32x256xf32>
    %52 = arith.addf %49, %51 : vector<32x256xf32>
    %cst_39 = arith.constant 0.000000e+00 : f32
    %53 = vector.broadcast %cst_39 : f32 to vector<32x256xf32>
    %54 = arith.maximumf %52, %53 : vector<32x256xf32>
    %c0_40 = arith.constant 0 : index
    %c0_41 = arith.constant 0 : index
    %55 = vector.load %arg15[%c0_40, %c0_41] : memref<48x32xbf16, #tpu.memory_space<vmem>>, vector<48x32xbf16>
    %56 = arith.truncf %54 : vector<32x256xf32> to vector<32x256xbf16>
    %cst_42 = arith.constant dense<0.000000e+00> : vector<48x256xf32>
    %57 = tpu.matmul %55, %56, %cst_42 {dimension_numbers = #tpu.dot_dimension_numbers<[1], [0], [0], [1], [0, 0, 1, 1], [], []>} : vector<48x32xbf16>, vector<32x256xbf16>, vector<48x256xf32> -> vector<48x256xf32>
    %c0_43 = arith.constant 0 : index
    %c0_44 = arith.constant 0 : index
    %58 = vector.load %arg16[%c0_43, %c0_44] : memref<48x1xf32, #tpu.memory_space<vmem>>, vector<48x1xf32>
    %59 = vector.broadcast %58 : vector<48x1xf32> to vector<48x256xf32>
    %60 = arith.addf %57, %59 : vector<48x256xf32>
    %cst_45 = arith.constant 0.000000e+00 : f32
    %61 = vector.broadcast %cst_45 : f32 to vector<48x256xf32>
    %62 = arith.maximumf %60, %61 : vector<48x256xf32>
    %c0_46 = arith.constant 0 : index
    %c0_47 = arith.constant 0 : index
    %63 = vector.load %arg17[%c0_46, %c0_47] : memref<64x48xbf16, #tpu.memory_space<vmem>>, vector<64x48xbf16>
    %64 = arith.truncf %62 : vector<48x256xf32> to vector<48x256xbf16>
    %cst_48 = arith.constant dense<0.000000e+00> : vector<64x256xf32>
    %65 = tpu.matmul %63, %64, %cst_48 {dimension_numbers = #tpu.dot_dimension_numbers<[1], [0], [0], [1], [0, 0, 1, 1], [], []>} : vector<64x48xbf16>, vector<48x256xbf16>, vector<64x256xf32> -> vector<64x256xf32>
    %c0_49 = arith.constant 0 : index
    %c0_50 = arith.constant 0 : index
    %66 = vector.load %arg18[%c0_49, %c0_50] : memref<64x1xf32, #tpu.memory_space<vmem>>, vector<64x1xf32>
    %67 = vector.broadcast %66 : vector<64x1xf32> to vector<64x256xf32>
    %68 = arith.addf %65, %67 : vector<64x256xf32>
    %c0_51 = arith.constant 0 : index
    %c0_52 = arith.constant 0 : index
    %69 = vector.load %arg20[%c0_51, %c0_52] : memref<64x256xf32, #tpu.memory_space<vmem>>, vector<64x256xf32>
    tpu.vector_store %arg20[%c0_51, %c0_52], %68 {strides = array<i32>} : memref<64x256xf32, #tpu.memory_space<vmem>>, vector<64x256xf32>,
    return
  }
  func.func @transform_0(%arg0: i32) -> (i32, i32) {
    %c0_i32 = arith.constant 0 : i32
    %c0_i32_0 = arith.constant 0 : i32
    return %c0_i32, %arg0 : i32, i32
  }
  func.func @transform_1(%arg0: i32) -> (i32, i32) {
    %c0_i32 = arith.constant 0 : i32
    %c0_i32_0 = arith.constant 0 : i32
    return %c0_i32, %arg0 : i32, i32
  }
  func.func @transform_2(%arg0: i32) -> (i32, i32) {
    %c0_i32 = arith.constant 0 : i32
    %c0_i32_0 = arith.constant 0 : i32
    %c0_i32_1 = arith.constant 0 : i32
    return %c0_i32, %c0_i32_0 : i32, i32
  }
  func.func @transform_3(%arg0: i32) -> (i32, i32) {
    %c0_i32 = arith.constant 0 : i32
    %c0_i32_0 = arith.constant 0 : i32
    %c0_i32_1 = arith.constant 0 : i32
    return %c0_i32, %c0_i32_0 : i32, i32
  }
  func.func @transform_4(%arg0: i32) -> (i32, i32) {
    %c0_i32 = arith.constant 0 : i32
    %c0_i32_0 = arith.constant 0 : i32
    %c0_i32_1 = arith.constant 0 : i32
    return %c0_i32, %c0_i32_0 : i32, i32
  }
  func.func @transform_5(%arg0: i32) -> (i32, i32) {
    %c0_i32 = arith.constant 0 : i32
    %c0_i32_0 = arith.constant 0 : i32
    %c0_i32_1 = arith.constant 0 : i32
    return %c0_i32, %c0_i32_0 : i32, i32
  }
  func.func @transform_6(%arg0: i32) -> (i32, i32) {
    %c0_i32 = arith.constant 0 : i32
    %c0_i32_0 = arith.constant 0 : i32
    %c0_i32_1 = arith.constant 0 : i32
    return %c0_i32, %c0_i32_0 : i32, i32
  }
  func.func @transform_7(%arg0: i32) -> (i32, i32) {
    %c0_i32 = arith.constant 0 : i32
    %c0_i32_0 = arith.constant 0 : i32
    %c0_i32_1 = arith.constant 0 : i32
    return %c0_i32, %c0_i32_0 : i32, i32
  }
  func.func @transform_8(%arg0: i32) -> (i32, i32) {
    %c0_i32 = arith.constant 0 : i32
    %c0_i32_0 = arith.constant 0 : i32
    %c0_i32_1 = arith.constant 0 : i32
    return %c0_i32, %c0_i32_0 : i32, i32
  }
  func.func @transform_9(%arg0: i32) -> (i32, i32) {
    %c0_i32 = arith.constant 0 : i32
    %c0_i32_0 = arith.constant 0 : i32
    %c0_i32_1 = arith.constant 0 : i32
    return %c0_i32, %c0_i32_0 : i32, i32
  }
  func.func @transform_10(%arg0: i32) -> (i32, i32) {
    %c0_i32 = arith.constant 0 : i32
    %c0_i32_0 = arith.constant 0 : i32
    %c0_i32_1 = arith.constant 0 : i32
    return %c0_i32, %c0_i32_0 : i32, i32
  }
  func.func @transform_11(%arg0: i32) -> (i32, i32) {
    %c0_i32 = arith.constant 0 : i32
    %c0_i32_0 = arith.constant 0 : i32
    %c0_i32_1 = arith.constant 0 : i32
    return %c0_i32, %c0_i32_0 : i32, i32
  }
  func.func @transform_12(%arg0: i32) -> (i32, i32) {
    %c0_i32 = arith.constant 0 : i32
    %c0_i32_0 = arith.constant 0 : i32
    %c0_i32_1 = arith.constant 0 : i32
    return %c0_i32, %c0_i32_0 : i32, i32
  }
  func.func @transform_13(%arg0: i32) -> (i32, i32) {
    %c0_i32 = arith.constant 0 : i32
    %c0_i32_0 = arith.constant 0 : i32
    %c0_i32_1 = arith.constant 0 : i32
    return %c0_i32, %c0_i32_0 : i32, i32
  }
  func.func @transform_14(%arg0: i32) -> (i32, i32) {
    %c0_i32 = arith.constant 0 : i32
    %c0_i32_0 = arith.constant 0 : i32
    %c0_i32_1 = arith.constant 0 : i32
    return %c0_i32, %c0_i32_0 : i32, i32
  }
  func.func @transform_15(%arg0: i32) -> (i32, i32) {
    %c0_i32 = arith.constant 0 : i32
    %c0_i32_0 = arith.constant 0 : i32
    %c0_i32_1 = arith.constant 0 : i32
    return %c0_i32, %c0_i32_0 : i32, i32
  }
  func.func @transform_16(%arg0: i32) -> (i32, i32) {
    %c0_i32 = arith.constant 0 : i32
    %c0_i32_0 = arith.constant 0 : i32
    %c0_i32_1 = arith.constant 0 : i32
    return %c0_i32, %c0_i32_0 : i32, i32
  }
  func.func @transform_17(%arg0: i32) -> (i32, i32) {
    %c0_i32 = arith.constant 0 : i32
    %c0_i32_0 = arith.constant 0 : i32
    %c0_i32_1 = arith.constant 0 : i32
    return %c0_i32, %c0_i32_0 : i32, i32
  }
  func.func @transform_18(%arg0: i32) -> (i32, i32) {
    %c0_i32 = arith.constant 0 : i32
    %c0_i32_0 = arith.constant 0 : i32
    return %c0_i32, %arg0 : i32, i32
  }
  func.func @transform_19(%arg0: i32) -> (i32, i32) {
    %c0_i32 = arith.constant 0 : i32
    %c0_i32_0 = arith.constant 0 : i32
    return %c0_i32, %arg0 : i32, i32
  }
}

module attributes {stable_mosaic.version = 11 : i64} {
  func.func @vae_kernel(%arg0: i32, %arg1: memref<64x256xbf16, #tpu.memory_space<vmem>>, %arg2: memref<8x256xf32, #tpu.memory_space<vmem>>, %arg3: memref<48x64xbf16, #tpu.memory_space<vmem>>, %arg4: memref<48x1xf32, #tpu.memory_space<vmem>>, %arg5: memref<32x48xbf16, #tpu.memory_space<vmem>>, %arg6: memref<32x1xf32, #tpu.memory_space<vmem>>, %arg7: memref<32x32xbf16, #tpu.memory_space<vmem>>, %arg8: memref<32x1xf32, #tpu.memory_space<vmem>>, %arg9: memref<16x32xbf16, #tpu.memory_space<vmem>>, %arg10: memref<16x1xf32, #tpu.memory_space<vmem>>, %arg11: memref<32x8xbf16, #tpu.memory_space<vmem>>, %arg12: memref<32x1xf32, #tpu.memory_space<vmem>>, %arg13: memref<32x32xbf16, #tpu.memory_space<vmem>>, %arg14: memref<32x1xf32, #tpu.memory_space<vmem>>, %arg15: memref<48x32xbf16, #tpu.memory_space<vmem>>, %arg16: memref<48x1xf32, #tpu.memory_space<vmem>>, %arg17: memref<64x48xbf16, #tpu.memory_space<vmem>>, %arg18: memref<64x1xf32, #tpu.memory_space<vmem>>, %arg19: memref<16x256xf32, #tpu.memory_space<vmem>>, %arg20: memref<64x256xf32, #tpu.memory_space<vmem>>) attributes {dimension_semantics = [#tpu.dimension_semantics<parallel>], iteration_bounds = array<i64: 2>, scalar_prefetch = 0 : i64, scratch_operands = 0 : i64, tpu.core_type = #tpu.core_type<tc>, window_params = [{transform_indices = @transform_0, window_bounds = array<i64: 64, 256>}, {transform_indices = @transform_1, window_bounds = array<i64: 8, 256>}, {pipeline_mode = #tpu.pipeline_mode<synchronous>, transform_indices = @transform_2, window_bounds = array<i64: 48, 64>}, {pipeline_mode = #tpu.pipeline_mode<synchronous>, transform_indices = @transform_3, window_bounds = array<i64: 48, 1>}, {pipeline_mode = #tpu.pipeline_mode<synchronous>, transform_indices = @transform_4, window_bounds = array<i64: 32, 48>}, {pipeline_mode = #tpu.pipeline_mode<synchronous>, transform_indices = @transform_5, window_bounds = array<i64: 32, 1>}, {pipeline_mode = #tpu.pipeline_mode<synchronous>, transform_indices = @transform_6, window_bounds = array<i64: 32, 32>}, {pipeline_mode = #tpu.pipeline_mode<synchronous>, transform_indices = @transform_7, window_bounds = array<i64: 32, 1>}, {pipeline_mode = #tpu.pipeline_mode<synchronous>, transform_indices = @transform_8, window_bounds = array<i64: 16, 32>}, {pipeline_mode = #tpu.pipeline_mode<synchronous>, transform_indices = @transform_9, window_bounds = array<i64: 16, 1>}, {pipeline_mode = #tpu.pipeline_mode<synchronous>, transform_indices = @transform_10, window_bounds = array<i64: 32, 8>}, {pipeline_mode = #tpu.pipeline_mode<synchronous>, transform_indices = @transform_11, window_bounds = array<i64: 32, 1>}, {pipeline_mode = #tpu.pipeline_mode<synchronous>, transform_indices = @transform_12, window_bounds = array<i64: 32, 32>}, {pipeline_mode = #tpu.pipeline_mode<synchronous>, transform_indices = @transform_13, window_bounds = array<i64: 32, 1>}, {pipeline_mode = #tpu.pipeline_mode<synchronous>, transform_indices = @transform_14, window_bounds = array<i64: 48, 32>}, {pipeline_mode = #tpu.pipeline_mode<synchronous>, transform_indices = @transform_15, window_bounds = array<i64: 48, 1>}, {pipeline_mode = #tpu.pipeline_mode<synchronous>, transform_indices = @transform_16, window_bounds = array<i64: 64, 48>}, {pipeline_mode = #tpu.pipeline_mode<synchronous>, transform_indices = @transform_17, window_bounds = array<i64: 64, 1>}, {transform_indices = @transform_18, window_bounds = array<i64: 16, 256>}, {transform_indices = @transform_19, window_bounds = array<i64: 64, 256>}]} {
    %c0 = arith.constant 0 : index
    %c0_0 = arith.constant 0 : index
    %0 = vector.load %arg1[%c0, %c0_0] : memref<64x256xbf16, #tpu.memory_space<vmem>>, vector<64x256xbf16>
    %c0_1 = arith.constant 0 : index
    %c0_2 = arith.constant 0 : index
    %1 = vector.load %arg3[%c0_1, %c0_2] : memref<48x64xbf16, #tpu.memory_space<vmem>>, vector<48x64xbf16>
    %cst = arith.constant dense<0.000000e+00> : vector<48x256xf32>
    %2 = tpu.matmul %1, %0, %cst {dimension_numbers = #tpu.dot_dimension_numbers<[1], [0], [0], [1], [0, 0, 1, 1], [], []>} : vector<48x64xbf16>, vector<64x256xbf16>, vector<48x256xf32> -> vector<48x256xf32>
    %c0_3 = arith.constant 0 : index
    %c0_4 = arith.constant 0 : index
    %3 = vector.load %arg4[%c0_3, %c0_4] : memref<48x1xf32, #tpu.memory_space<vmem>>, vector<48x1xf32>
    %4 = vector.broadcast %3 : vector<48x1xf32> to vector<48x256xf32>
    %5 = arith.addf %2, %4 : vector<48x256xf32>
    %cst_5 = arith.constant 0.000000e+00 : f32
    %6 = vector.broadcast %cst_5 : f32 to vector<48x256xf32>
    %7 = arith.maximumf %5, %6 : vector<48x256xf32>
    %c0_6 = arith.constant 0 : index
    %c0_7 = arith.constant 0 : index
    %8 = vector.load %arg5[%c0_6, %c0_7] : memref<32x48xbf16, #tpu.memory_space<vmem>>, vector<32x48xbf16>
    %9 = arith.truncf %7 : vector<48x256xf32> to vector<48x256xbf16>
    %cst_8 = arith.constant dense<0.000000e+00> : vector<32x256xf32>
    %10 = tpu.matmul %8, %9, %cst_8 {dimension_numbers = #tpu.dot_dimension_numbers<[1], [0], [0], [1], [0, 0, 1, 1], [], []>} : vector<32x48xbf16>, vector<48x256xbf16>, vector<32x256xf32> -> vector<32x256xf32>
    %c0_9 = arith.constant 0 : index
    %c0_10 = arith.constant 0 : index
    %11 = vector.load %arg6[%c0_9, %c0_10] : memref<32x1xf32, #tpu.memory_space<vmem>>, vector<32x1xf32>
    %12 = vector.broadcast %11 : vector<32x1xf32> to vector<32x256xf32>
    %13 = arith.addf %10, %12 : vector<32x256xf32>
    %cst_11 = arith.constant 0.000000e+00 : f32
    %14 = vector.broadcast %cst_11 : f32 to vector<32x256xf32>
    %15 = arith.maximumf %13, %14 : vector<32x256xf32>
    %c0_12 = arith.constant 0 : index
    %c0_13 = arith.constant 0 : index
    %16 = vector.load %arg7[%c0_12, %c0_13] : memref<32x32xbf16, #tpu.memory_space<vmem>>, vector<32x32xbf16>
    %17 = arith.truncf %15 : vector<32x256xf32> to vector<32x256xbf16>
    %cst_14 = arith.constant dense<0.000000e+00> : vector<32x256xf32>
    %18 = tpu.matmul %16, %17, %cst_14 {dimension_numbers = #tpu.dot_dimension_numbers<[1], [0], [0], [1], [0, 0, 1, 1], [], []>} : vector<32x32xbf16>, vector<32x256xbf16>, vector<32x256xf32> -> vector<32x256xf32>
    %c0_15 = arith.constant 0 : index
    %c0_16 = arith.constant 0 : index
    %19 = vector.load %arg8[%c0_15, %c0_16] : memref<32x1xf32, #tpu.memory_space<vmem>>, vector<32x1xf32>
    %20 = vector.broadcast %19 : vector<32x1xf32> to vector<32x256xf32>
    %21 = arith.addf %18, %20 : vector<32x256xf32>
    %cst_17 = arith.constant 0.000000e+00 : f32
    %22 = vector.broadcast %cst_17 : f32 to vector<32x256xf32>
    %23 = arith.maximumf %21, %22 : vector<32x256xf32>
    %c0_18 = arith.constant 0 : index
    %c0_19 = arith.constant 0 : index
    %24 = vector.load %arg9[%c0_18, %c0_19] : memref<16x32xbf16, #tpu.memory_space<vmem>>, vector<16x32xbf16>
    %25 = arith.truncf %23 : vector<32x256xf32> to vector<32x256xbf16>
    %cst_20 = arith.constant dense<0.000000e+00> : vector<16x256xf32>
    %26 = tpu.matmul %24, %25, %cst_20 {dimension_numbers = #tpu.dot_dimension_numbers<[1], [0], [0], [1], [0, 0, 1, 1], [], []>} : vector<16x32xbf16>, vector<32x256xbf16>, vector<16x256xf32> -> vector<16x256xf32>
    %c0_21 = arith.constant 0 : index
    %c0_22 = arith.constant 0 : index
    %27 = vector.load %arg10[%c0_21, %c0_22] : memref<16x1xf32, #tpu.memory_space<vmem>>, vector<16x1xf32>
    %28 = vector.broadcast %27 : vector<16x1xf32> to vector<16x256xf32>
    %29 = arith.addf %26, %28 : vector<16x256xf32>
    %c0_23 = arith.constant 0 : index
    %c0_24 = arith.constant 0 : index
    %30 = vector.load %arg19[%c0_23, %c0_24] : memref<16x256xf32, #tpu.memory_space<vmem>>, vector<16x256xf32>
    tpu.vector_store %arg19[%c0_23, %c0_24], %29 {strides = array<i32>} : memref<16x256xf32, #tpu.memory_space<vmem>>, vector<16x256xf32>,
    %31 = vector.extract_strided_slice %29 {offsets = [0, 0], sizes = [8, 256], strides = [1, 1]} : vector<16x256xf32> to vector<8x256xf32>
    %32 = vector.extract_strided_slice %29 {offsets = [8, 0], sizes = [8, 256], strides = [1, 1]} : vector<16x256xf32> to vector<8x256xf32>
    %c0_25 = arith.constant 0 : index
    %c0_26 = arith.constant 0 : index
    %33 = vector.load %arg2[%c0_25, %c0_26] : memref<8x256xf32, #tpu.memory_space<vmem>>, vector<8x256xf32>
    %cst_27 = arith.constant 5.000000e-01 : f32
    %34 = vector.broadcast %cst_27 : f32 to vector<8x256xf32>
    %35 = arith.mulf %34, %32 : vector<8x256xf32>
    %36 = math.exp %35 : vector<8x256xf32>
    %37 = arith.mulf %33, %36 : vector<8x256xf32>
    %38 = arith.addf %37, %31 : vector<8x256xf32>
    %c0_28 = arith.constant 0 : index
    %c0_29 = arith.constant 0 : index
    %39 = vector.load %arg11[%c0_28, %c0_29] : memref<32x8xbf16, #tpu.memory_space<vmem>>, vector<32x8xbf16>
    %40 = arith.truncf %38 : vector<8x256xf32> to vector<8x256xbf16>
    %cst_30 = arith.constant dense<0.000000e+00> : vector<32x256xf32>
    %41 = tpu.matmul %39, %40, %cst_30 {dimension_numbers = #tpu.dot_dimension_numbers<[1], [0], [0], [1], [0, 0, 1, 1], [], []>} : vector<32x8xbf16>, vector<8x256xbf16>, vector<32x256xf32> -> vector<32x256xf32>
    %c0_31 = arith.constant 0 : index
    %c0_32 = arith.constant 0 : index
    %42 = vector.load %arg12[%c0_31, %c0_32] : memref<32x1xf32, #tpu.memory_space<vmem>>, vector<32x1xf32>
    %43 = vector.broadcast %42 : vector<32x1xf32> to vector<32x256xf32>
    %44 = arith.addf %41, %43 : vector<32x256xf32>
    %cst_33 = arith.constant 0.000000e+00 : f32
    %45 = vector.broadcast %cst_33 : f32 to vector<32x256xf32>
    %46 = arith.maximumf %44, %45 : vector<32x256xf32>
    %c0_34 = arith.constant 0 : index
    %c0_35 = arith.constant 0 : index
    %47 = vector.load %arg13[%c0_34, %c0_35] : memref<32x32xbf16, #tpu.memory_space<vmem>>, vector<32x32xbf16>
    %48 = arith.truncf %46 : vector<32x256xf32> to vector<32x256xbf16>
    %cst_36 = arith.constant dense<0.000000e+00> : vector<32x256xf32>
    %49 = tpu.matmul %47, %48, %cst_36 {dimension_numbers = #tpu.dot_dimension_numbers<[1], [0], [0], [1], [0, 0, 1, 1], [], []>} : vector<32x32xbf16>, vector<32x256xbf16>, vector<32x256xf32> -> vector<32x256xf32>
    %c0_37 = arith.constant 0 : index
    %c0_38 = arith.constant 0 : index
    %50 = vector.load %arg14[%c0_37, %c0_38] : memref<32x1xf32, #tpu.memory_space<vmem>>, vector<32x1xf32>
    %51 = vector.broadcast %50 : vector<32x1xf32> to vector<32x256xf32>
    %52 = arith.addf %49, %51 : vector<32x256xf32>
    %cst_39 = arith.constant 0.000000e+00 : f32
    %53 = vector.broadcast %cst_39 : f32 to vector<32x256xf32>
    %54 = arith.maximumf %52, %53 : vector<32x256xf32>
    %c0_40 = arith.constant 0 : index
    %c0_41 = arith.constant 0 : index
    %55 = vector.load %arg15[%c0_40, %c0_41] : memref<48x32xbf16, #tpu.memory_space<vmem>>, vector<48x32xbf16>
    %56 = arith.truncf %54 : vector<32x256xf32> to vector<32x256xbf16>
    %cst_42 = arith.constant dense<0.000000e+00> : vector<48x256xf32>
    %57 = tpu.matmul %55, %56, %cst_42 {dimension_numbers = #tpu.dot_dimension_numbers<[1], [0], [0], [1], [0, 0, 1, 1], [], []>} : vector<48x32xbf16>, vector<32x256xbf16>, vector<48x256xf32> -> vector<48x256xf32>
    %c0_43 = arith.constant 0 : index
    %c0_44 = arith.constant 0 : index
    %58 = vector.load %arg16[%c0_43, %c0_44] : memref<48x1xf32, #tpu.memory_space<vmem>>, vector<48x1xf32>
    %59 = vector.broadcast %58 : vector<48x1xf32> to vector<48x256xf32>
    %60 = arith.addf %57, %59 : vector<48x256xf32>
    %cst_45 = arith.constant 0.000000e+00 : f32
    %61 = vector.broadcast %cst_45 : f32 to vector<48x256xf32>
    %62 = arith.maximumf %60, %61 : vector<48x256xf32>
    %c0_46 = arith.constant 0 : index
    %c0_47 = arith.constant 0 : index
    %63 = vector.load %arg17[%c0_46, %c0_47] : memref<64x48xbf16, #tpu.memory_space<vmem>>, vector<64x48xbf16>
    %64 = arith.truncf %62 : vector<48x256xf32> to vector<48x256xbf16>
    %cst_48 = arith.constant dense<0.000000e+00> : vector<64x256xf32>
    %65 = tpu.matmul %63, %64, %cst_48 {dimension_numbers = #tpu.dot_dimension_numbers<[1], [0], [0], [1], [0, 0, 1, 1], [], []>} : vector<64x48xbf16>, vector<48x256xbf16>, vector<64x256xf32> -> vector<64x256xf32>
    %c0_49 = arith.constant 0 : index
    %c0_50 = arith.constant 0 : index
    %66 = vector.load %arg18[%c0_49, %c0_50] : memref<64x1xf32, #tpu.memory_space<vmem>>, vector<64x1xf32>
    %67 = vector.broadcast %66 : vector<64x1xf32> to vector<64x256xf32>
    %68 = arith.addf %65, %67 : vector<64x256xf32>
    %c0_51 = arith.constant 0 : index
    %c0_52 = arith.constant 0 : index
    %69 = vector.load %arg20[%c0_51, %c0_52] : memref<64x256xf32, #tpu.memory_space<vmem>>, vector<64x256xf32>
    tpu.vector_store %arg20[%c0_51, %c0_52], %68 {strides = array<i32>} : memref<64x256xf32, #tpu.memory_space<vmem>>, vector<64x256xf32>,
    return
  }
  func.func @transform_0(%arg0: i32) -> (i32, i32) {
    %c0_i32 = arith.constant 0 : i32
    %c0_i32_0 = arith.constant 0 : i32
    return %c0_i32, %arg0 : i32, i32
  }
  func.func @transform_1(%arg0: i32) -> (i32, i32) {
    %c0_i32 = arith.constant 0 : i32
    %c0_i32_0 = arith.constant 0 : i32
    return %c0_i32, %arg0 : i32, i32
  }
  func.func @transform_2(%arg0: i32) -> (i32, i32) {
    %c0_i32 = arith.constant 0 : i32
    %c0_i32_0 = arith.constant 0 : i32
    %c0_i32_1 = arith.constant 0 : i32
    return %c0_i32, %c0_i32_0 : i32, i32
  }
  func.func @transform_3(%arg0: i32) -> (i32, i32) {
    %c0_i32 = arith.constant 0 : i32
    %c0_i32_0 = arith.constant 0 : i32
    %c0_i32_1 = arith.constant 0 : i32
    return %c0_i32, %c0_i32_0 : i32, i32
  }
  func.func @transform_4(%arg0: i32) -> (i32, i32) {
    %c0_i32 = arith.constant 0 : i32
    %c0_i32_0 = arith.constant 0 : i32
    %c0_i32_1 = arith.constant 0 : i32
    return %c0_i32, %c0_i32_0 : i32, i32
  }
  func.func @transform_5(%arg0: i32) -> (i32, i32) {
    %c0_i32 = arith.constant 0 : i32
    %c0_i32_0 = arith.constant 0 : i32
    %c0_i32_1 = arith.constant 0 : i32
    return %c0_i32, %c0_i32_0 : i32, i32
  }
  func.func @transform_6(%arg0: i32) -> (i32, i32) {
    %c0_i32 = arith.constant 0 : i32
    %c0_i32_0 = arith.constant 0 : i32
    %c0_i32_1 = arith.constant 0 : i32
    return %c0_i32, %c0_i32_0 : i32, i32
  }
  func.func @transform_7(%arg0: i32) -> (i32, i32) {
    %c0_i32 = arith.constant 0 : i32
    %c0_i32_0 = arith.constant 0 : i32
    %c0_i32_1 = arith.constant 0 : i32
    return %c0_i32, %c0_i32_0 : i32, i32
  }
  func.func @transform_8(%arg0: i32) -> (i32, i32) {
    %c0_i32 = arith.constant 0 : i32
    %c0_i32_0 = arith.constant 0 : i32
    %c0_i32_1 = arith.constant 0 : i32
    return %c0_i32, %c0_i32_0 : i32, i32
  }
  func.func @transform_9(%arg0: i32) -> (i32, i32) {
    %c0_i32 = arith.constant 0 : i32
    %c0_i32_0 = arith.constant 0 : i32
    %c0_i32_1 = arith.constant 0 : i32
    return %c0_i32, %c0_i32_0 : i32, i32
  }
  func.func @transform_10(%arg0: i32) -> (i32, i32) {
    %c0_i32 = arith.constant 0 : i32
    %c0_i32_0 = arith.constant 0 : i32
    %c0_i32_1 = arith.constant 0 : i32
    return %c0_i32, %c0_i32_0 : i32, i32
  }
  func.func @transform_11(%arg0: i32) -> (i32, i32) {
    %c0_i32 = arith.constant 0 : i32
    %c0_i32_0 = arith.constant 0 : i32
    %c0_i32_1 = arith.constant 0 : i32
    return %c0_i32, %c0_i32_0 : i32, i32
  }
  func.func @transform_12(%arg0: i32) -> (i32, i32) {
    %c0_i32 = arith.constant 0 : i32
    %c0_i32_0 = arith.constant 0 : i32
    %c0_i32_1 = arith.constant 0 : i32
    return %c0_i32, %c0_i32_0 : i32, i32
  }
  func.func @transform_13(%arg0: i32) -> (i32, i32) {
    %c0_i32 = arith.constant 0 : i32
    %c0_i32_0 = arith.constant 0 : i32
    %c0_i32_1 = arith.constant 0 : i32
    return %c0_i32, %c0_i32_0 : i32, i32
  }
  func.func @transform_14(%arg0: i32) -> (i32, i32) {
    %c0_i32 = arith.constant 0 : i32
    %c0_i32_0 = arith.constant 0 : i32
    %c0_i32_1 = arith.constant 0 : i32
    return %c0_i32, %c0_i32_0 : i32, i32
  }
  func.func @transform_15(%arg0: i32) -> (i32, i32) {
    %c0_i32 = arith.constant 0 : i32
    %c0_i32_0 = arith.constant 0 : i32
    %c0_i32_1 = arith.constant 0 : i32
    return %c0_i32, %c0_i32_0 : i32, i32
  }
  func.func @transform_16(%arg0: i32) -> (i32, i32) {
    %c0_i32 = arith.constant 0 : i32
    %c0_i32_0 = arith.constant 0 : i32
    %c0_i32_1 = arith.constant 0 : i32
    return %c0_i32, %c0_i32_0 : i32, i32
  }
  func.func @transform_17(%arg0: i32) -> (i32, i32) {
    %c0_i32 = arith.constant 0 : i32
    %c0_i32_0 = arith.constant 0 : i32
    %c0_i32_1 = arith.constant 0 : i32
    return %c0_i32, %c0_i32_0 : i32, i32
  }
  func.func @transform_18(%arg0: i32) -> (i32, i32) {
    %c0_i32 = arith.constant 0 : i32
    %c0_i32_0 = arith.constant 0 : i32
    return %c0_i32, %arg0 : i32, i32
  }
  func.func @transform_19(%arg0: i32) -> (i32, i32) {
    %c0_i32 = arith.constant 0 : i32
    %c0_i32_0 = arith.constant 0 : i32
    return %c0_i32, %arg0 : i32, i32
  }
}

</mosaic_0001>

<llo_original>
// kernel: vae_forward.1
$region0: #{vae_forward.1}
  #allocation0 [shape = 'u32[]', space=smem, size = 0x4, offset = 0x4, fixed_abs, tag = 'smem constant byte address 0x4 - core index']
  #allocation1 [shape = 'u32[144,128]{1,0:T(1,128)}', space=vmem, size = 0x12000, scoped, tag = 'internal scratch']
  %s0 = inlined_call_operand.vmem [shape: bf16[64,512], index: 0, kind: input, shape index: {}]
  %s1 = inlined_call_operand.vmem [shape: f32[8,512], index: 1, kind: input, shape index: {}]
  %s2 = inlined_call_operand.vmem [shape: bf16[48,64], index: 2, kind: input, shape index: {}]
  %s3 = inlined_call_operand.vmem [shape: f32[48,1], index: 3, kind: input, shape index: {}]
  %s4 = inlined_call_operand.vmem [shape: bf16[32,48], index: 4, kind: input, shape index: {}]
  %s5 = inlined_call_operand.vmem [shape: f32[32,1], index: 5, kind: input, shape index: {}]
  %s6 = inlined_call_operand.vmem [shape: bf16[32,32], index: 6, kind: input, shape index: {}]
  %s7 = inlined_call_operand.vmem [shape: f32[32,1], index: 7, kind: input, shape index: {}]
  %s8 = inlined_call_operand.vmem [shape: bf16[16,32], index: 8, kind: input, shape index: {}]
  %s9 = inlined_call_operand.vmem [shape: f32[16,1], index: 9, kind: input, shape index: {}]
  %s10 = inlined_call_operand.vmem [shape: bf16[32,8], index: 10, kind: input, shape index: {}]
  %s11 = inlined_call_operand.vmem [shape: f32[32,1], index: 11, kind: input, shape index: {}]
  %s12 = inlined_call_operand.vmem [shape: bf16[32,32], index: 12, kind: input, shape index: {}]
  %s13 = inlined_call_operand.vmem [shape: f32[32,1], index: 13, kind: input, shape index: {}]
  %s14 = inlined_call_operand.vmem [shape: bf16[48,32], index: 14, kind: input, shape index: {}]
  %s15 = inlined_call_operand.vmem [shape: f32[48,1], index: 15, kind: input, shape index: {}]
  %s16 = inlined_call_operand.vmem [shape: bf16[64,48], index: 16, kind: input, shape index: {}]
  %s17 = inlined_call_operand.vmem [shape: f32[64,1], index: 17, kind: input, shape index: {}]
  %s18 = inlined_call_operand.vmem [shape: f32[16,512], index: 18, kind: output, shape index: {0}]
  %s19 = inlined_call_operand.vmem [shape: f32[64,512], index: 19, kind: output, shape index: {1}]
  %20 = xla_tuple %s18, %s19
  %s21 = sld [smem:[#allocation0]]
  $region189: #{vae_forward.1} parent=0
    _
  %s23 = ssub.s32 1, %s21
  %s24 = scalar_select 0, %s23, %s21
  $region1: #{vae_forward.1} parent=0
    #allocation2 [shape = 'u8[65536]{0}', space=vmem, size = 0x10000, scoped, tag = 'input window, operand 0']
    #allocation3 [shape = 'u8[32768]{0}', space=vmem, size = 0x8000, scoped, tag = 'output window, operand 0']
    #allocation4 [shape = 'u8[131072]{0}', space=vmem, size = 0x20000, scoped, tag = 'output window, operand 1']
    loop: start=0, step=1, limit=4
    $region2: #{vae_forward.1} parent=1 // loop_pre_header
      _
    $region3: #{vae_forward.1} parent=1 // loop_header
      %s26 = sphi 0, %s30
      %p27 = scmp.ge.s32.totalorder %s26, 4
      %s36 = sphi 0, %s38
      %s39 = sphi 0, %s36
      %s40 = sphi 0, %s39
      %s56 = sphi 0, %s40
      %s62 = sphi 0, %s64
      %s65 = sphi 0, %s62
      %s66 = sphi 0, %s65
      %s82 = sphi 0, %s66
      %s86 = sphi 0, %s86
      %s88 = sphi 0, %s86
      %s89 = sphi 0, %s88
      %s103 = sphi 0, %s89
      %s107 = sphi 0, %s107
      %s109 = sphi 0, %s107
      %s110 = sphi 0, %s109
      %s124 = sphi 0, %s110
      %s128 = sphi 0, %s128
      %s130 = sphi 0, %s128
      %s131 = sphi 0, %s130
      %s145 = sphi 0, %s131
      %s149 = sphi 0, %s149
      %s151 = sphi 0, %s149
      %s152 = sphi 0, %s151
      %s166 = sphi 0, %s152
      %s170 = sphi 0, %s170
      %s172 = sphi 0, %s170
      %s173 = sphi 0, %s172
      %s187 = sphi 0, %s173
      %s191 = sphi 0, %s191
      %s193 = sphi 0, %s191
      %s194 = sphi 0, %s193
      %s208 = sphi 0, %s194
      %s212 = sphi 0, %s212
      %s214 = sphi 0, %s212
      %s215 = sphi 0, %s214
      %s229 = sphi 0, %s215
      %s233 = sphi 0, %s233
      %s235 = sphi 0, %s233
      %s236 = sphi 0, %s235
      %s250 = sphi 0, %s236
      %s254 = sphi 0, %s254
      %s256 = sphi 0, %s254
      %s257 = sphi 0, %s256
      %s271 = sphi 0, %s257
      %s275 = sphi 0, %s275
      %s277 = sphi 0, %s275
      %s278 = sphi 0, %s277
      %s292 = sphi 0, %s278
      %s296 = sphi 0, %s296
      %s298 = sphi 0, %s296
      %s299 = sphi 0, %s298
      %s313 = sphi 0, %s299
      %s317 = sphi 0, %s317
      %s319 = sphi 0, %s317
      %s320 = sphi 0, %s319
      %s334 = sphi 0, %s320
      %s338 = sphi 0, %s338
      %s340 = sphi 0, %s338
      %s341 = sphi 0, %s340
      %s355 = sphi 0, %s341
      %s359 = sphi 0, %s359
      %s361 = sphi 0, %s359
      %s362 = sphi 0, %s361
      %s376 = sphi 0, %s362
      %s380 = sphi 0, %s380
      %s382 = sphi 0, %s380
      %s383 = sphi 0, %s382
      %s397 = sphi 0, %s383
      %s401 = sphi 0, %s401
      %s403 = sphi 0, %s401
      %s404 = sphi 0, %s403
      %s418 = sphi 0, %s404
      %s424 = sphi 0, %s426
      %s427 = sphi 0, %s424
      %s428 = sphi 0, %s427
      %s444 = sphi 0, %s428
      %s450 = sphi 0, %s452
      %s453 = sphi 0, %s450
      %s454 = sphi 0, %s453
      %s470 = sphi 0, %s454
    $region4: #{vae_forward.1} parent=1 // loop_header_branch
      %29 = sbr.rel (%p27) target = $region8
    $region5: #{vae_forward.1} parent=1 // loop_body
      %s31 = ssub.s32 %s26, 1
      %s32 = ssub.s32 %s26, 2
      %s33 = sadd.s32 %s26, 1
      %s34 = ssub.s32 %s26, %s33
      %p35 = scmp.eq.s32.totalorder %s34, 0
      %s37 = sadd.s32 %s36, 1
      %s38 = scalar_select %p35, %s36, %s37
      %p41 = pneg %p35
      %p42 = scmp.eq.s32.totalorder %s26, 1
      %p43 = por %p41, %p42
      %p44 = scmp.ne.s32.totalorder %s36, %s39
      %p45 = scmp.eq.s32.totalorder %s26, 0
      %p46 = por %p44, %p45
      %p47 = scmp.ne.s32.totalorder %s36, %s39
      %p48 = scmp.eq.s32.totalorder %s31, 1
      %p49 = por %p47, %p48
      %p50 = scmp.ne.s32.totalorder %s39, %s40
      %p51 = scmp.eq.s32.totalorder %s31, 0
      %p52 = por %p50, %p51
      %p53 = scmp.ne.s32.totalorder %s39, %s40
      %p54 = scmp.eq.s32.totalorder %s32, 1
      %p55 = por %p53, %p54
      %p57 = scmp.ne.s32.totalorder %s40, %s56
      %p58 = scmp.eq.s32.totalorder %s32, 0
      %p59 = por %p57, %p58
      %s60 = ssub.s32 %s26, %s33
      %p61 = scmp.eq.s32.totalorder %s60, 0
      %s63 = sadd.s32 %s62, 1
      %s64 = scalar_select %p61, %s62, %s63
      %p67 = pneg %p61
      %p68 = scmp.eq.s32.totalorder %s26, 1
      %p69 = por %p67, %p68
      %p70 = scmp.ne.s32.totalorder %s62, %s65
      %p71 = scmp.eq.s32.totalorder %s26, 0
      %p72 = por %p70, %p71
      %p73 = scmp.ne.s32.totalorder %s62, %s65
      %p74 = scmp.eq.s32.totalorder %s31, 1
      %p75 = por %p73, %p74
      %p76 = scmp.ne.s32.totalorder %s65, %s66
      %p77 = scmp.eq.s32.totalorder %s31, 0
      %p78 = por %p76, %p77
      %p79 = scmp.ne.s32.totalorder %s65, %s66
      %p80 = scmp.eq.s32.totalorder %s32, 1
      %p81 = por %p79, %p80
      %p83 = scmp.ne.s32.totalorder %s66, %s82
      %p84 = scmp.eq.s32.totalorder %s32, 0
      %p85 = por %p83, %p84
      %s87 = sadd.s32 %s86, 1
      %p90 = scmp.eq.s32.totalorder %s26, 1
      %p91 = scmp.ne.s32.totalorder %s86, %s88
      %p92 = scmp.eq.s32.totalorder %s26, 0
      %p93 = por %p91, %p92
      %p94 = scmp.ne.s32.totalorder %s86, %s88
      %p95 = scmp.eq.s32.totalorder %s31, 1
      %p96 = por %p94, %p95
      %p97 = scmp.ne.s32.totalorder %s88, %s89
      %p98 = scmp.eq.s32.totalorder %s31, 0
      %p99 = por %p97, %p98
      %p100 = scmp.ne.s32.totalorder %s88, %s89
      %p101 = scmp.eq.s32.totalorder %s32, 1
      %p102 = por %p100, %p101
      %p104 = scmp.ne.s32.totalorder %s89, %s103
      %p105 = scmp.eq.s32.totalorder %s32, 0
      %p106 = por %p104, %p105
      %s108 = sadd.s32 %s107, 1
      %p111 = scmp.eq.s32.totalorder %s26, 1
      %p112 = scmp.ne.s32.totalorder %s107, %s109
      %p113 = scmp.eq.s32.totalorder %s26, 0
      %p114 = por %p112, %p113
      %p115 = scmp.ne.s32.totalorder %s107, %s109
      %p116 = scmp.eq.s32.totalorder %s31, 1
      %p117 = por %p115, %p116
      %p118 = scmp.ne.s32.totalorder %s109, %s110
      %p119 = scmp.eq.s32.totalorder %s31, 0
      %p120 = por %p118, %p119
      %p121 = scmp.ne.s32.totalorder %s109, %s110
      %p122 = scmp.eq.s32.totalorder %s32, 1
      %p123 = por %p121, %p122
      %p125 = scmp.ne.s32.totalorder %s110, %s124
      %p126 = scmp.eq.s32.totalorder %s32, 0
      %p127 = por %p125, %p126
      %s129 = sadd.s32 %s128, 1
      %p132 = scmp.eq.s32.totalorder %s26, 1
      %p133 = scmp.ne.s32.totalorder %s128, %s130
      %p134 = scmp.eq.s32.totalorder %s26, 0
      %p135 = por %p133, %p134
      %p136 = scmp.ne.s32.totalorder %s128, %s130
      %p137 = scmp.eq.s32.totalorder %s31, 1
      %p138 = por %p136, %p137
      %p139 = scmp.ne.s32.totalorder %s130, %s131
      %p140 = scmp.eq.s32.totalorder %s31, 0
      %p141 = por %p139, %p140
      %p142 = scmp.ne.s32.totalorder %s130, %s131
      %p143 = scmp.eq.s32.totalorder %s32, 1
      %p144 = por %p142, %p143
      %p146 = scmp.ne.s32.totalorder %s131, %s145
      %p147 = scmp.eq.s32.totalorder %s32, 0
      %p148 = por %p146, %p147
      %s150 = sadd.s32 %s149, 1
      %p153 = scmp.eq.s32.totalorder %s26, 1
      %p154 = scmp.ne.s32.totalorder %s149, %s151
      %p155 = scmp.eq.s32.totalorder %s26, 0
      %p156 = por %p154, %p155
      %p157 = scmp.ne.s32.totalorder %s149, %s151
      %p158 = scmp.eq.s32.totalorder %s31, 1
      %p159 = por %p157, %p158
      %p160 = scmp.ne.s32.totalorder %s151, %s152
      %p161 = scmp.eq.s32.totalorder %s31, 0
      %p162 = por %p160, %p161
      %p163 = scmp.ne.s32.totalorder %s151, %s152
      %p164 = scmp.eq.s32.totalorder %s32, 1
      %p165 = por %p163, %p164
      %p167 = scmp.ne.s32.totalorder %s152, %s166
      %p168 = scmp.eq.s32.totalorder %s32, 0
      %p169 = por %p167, %p168
      %s171 = sadd.s32 %s170, 1
      %p174 = scmp.eq.s32.totalorder %s26, 1
      %p175 = scmp.ne.s32.totalorder %s170, %s172
      %p176 = scmp.eq.s32.totalorder %s26, 0
      %p177 = por %p175, %p176
      %p178 = scmp.ne.s32.totalorder %s170, %s172
      %p179 = scmp.eq.s32.totalorder %s31, 1
      %p180 = por %p178, %p179
      %p181 = scmp.ne.s32.totalorder %s172, %s173
      %p182 = scmp.eq.s32.totalorder %s31, 0
      %p183 = por %p181, %p182
      %p184 = scmp.ne.s32.totalorder %s172, %s173
      %p185 = scmp.eq.s32.totalorder %s32, 1
      %p186 = por %p184, %p185
      %p188 = scmp.ne.s32.totalorder %s173, %s187
      %p189 = scmp.eq.s32.totalorder %s32, 0
      %p190 = por %p188, %p189
      %s192 = sadd.s32 %s191, 1
      %p195 = scmp.eq.s32.totalorder %s26, 1
      %p196 = scmp.ne.s32.totalorder %s191, %s193
      %p197 = scmp.eq.s32.totalorder %s26, 0
      %p198 = por %p196, %p197
      %p199 = scmp.ne.s32.totalorder %s191, %s193
      %p200 = scmp.eq.s32.totalorder %s31, 1
      %p201 = por %p199, %p200
      %p202 = scmp.ne.s32.totalorder %s193, %s194
      %p203 = scmp.eq.s32.totalorder %s31, 0
      %p204 = por %p202, %p203
      %p205 = scmp.ne.s32.totalorder %s193, %s194
      %p206 = scmp.eq.s32.totalorder %s32, 1
      %p207 = por %p205, %p206
      %p209 = scmp.ne.s32.totalorder %s194, %s208
      %p210 = scmp.eq.s32.totalorder %s32, 0
      %p211 = por %p209, %p210
      %s213 = sadd.s32 %s212, 1
      %p216 = scmp.eq.s32.totalorder %s26, 1
      %p217 = scmp.ne.s32.totalorder %s212, %s214
      %p218 = scmp.eq.s32.totalorder %s26, 0
      %p219 = por %p217, %p218
      %p220 = scmp.ne.s32.totalorder %s212, %s214
      %p221 = scmp.eq.s32.totalorder %s31, 1
      %p222 = por %p220, %p221
      %p223 = scmp.ne.s32.totalorder %s214, %s215
      %p224 = scmp.eq.s32.totalorder %s31, 0
      %p225 = por %p223, %p224
      %p226 = scmp.ne.s32.totalorder %s214, %s215
      %p227 = scmp.eq.s32.totalorder %s32, 1
      %p228 = por %p226, %p227
      %p230 = scmp.ne.s32.totalorder %s215, %s229
      %p231 = scmp.eq.s32.totalorder %s32, 0
      %p232 = por %p230, %p231
      %s234 = sadd.s32 %s233, 1
      %p237 = scmp.eq.s32.totalorder %s26, 1
      %p238 = scmp.ne.s32.totalorder %s233, %s235
      %p239 = scmp.eq.s32.totalorder %s26, 0
      %p240 = por %p238, %p239
      %p241 = scmp.ne.s32.totalorder %s233, %s235
      %p242 = scmp.eq.s32.totalorder %s31, 1
      %p243 = por %p241, %p242
      %p244 = scmp.ne.s32.totalorder %s235, %s236
      %p245 = scmp.eq.s32.totalorder %s31, 0
      %p246 = por %p244, %p245
      %p247 = scmp.ne.s32.totalorder %s235, %s236
      %p248 = scmp.eq.s32.totalorder %s32, 1
      %p249 = por %p247, %p248
      %p251 = scmp.ne.s32.totalorder %s236, %s250
      %p252 = scmp.eq.s32.totalorder %s32, 0
      %p253 = por %p251, %p252
      %s255 = sadd.s32 %s254, 1
      %p258 = scmp.eq.s32.totalorder %s26, 1
      %p259 = scmp.ne.s32.totalorder %s254, %s256
      %p260 = scmp.eq.s32.totalorder %s26, 0
      %p261 = por %p259, %p260
      %p262 = scmp.ne.s32.totalorder %s254, %s256
      %p263 = scmp.eq.s32.totalorder %s31, 1
      %p264 = por %p262, %p263
      %p265 = scmp.ne.s32.totalorder %s256, %s257
      %p266 = scmp.eq.s32.totalorder %s31, 0
      %p267 = por %p265, %p266
      %p268 = scmp.ne.s32.totalorder %s256, %s257
      %p269 = scmp.eq.s32.totalorder %s32, 1
      %p270 = por %p268, %p269
      %p272 = scmp.ne.s32.totalorder %s257, %s271
      %p273 = scmp.eq.s32.totalorder %s32, 0
      %p274 = por %p272, %p273
      %s276 = sadd.s32 %s275, 1
      %p279 = scmp.eq.s32.totalorder %s26, 1
      %p280 = scmp.ne.s32.totalorder %s275, %s277
      %p281 = scmp.eq.s32.totalorder %s26, 0
      %p282 = por %p280, %p281
      %p283 = scmp.ne.s32.totalorder %s275, %s277
      %p284 = scmp.eq.s32.totalorder %s31, 1
      %p285 = por %p283, %p284
      %p286 = scmp.ne.s32.totalorder %s277, %s278
      %p287 = scmp.eq.s32.totalorder %s31, 0
      %p288 = por %p286, %p287
      %p289 = scmp.ne.s32.totalorder %s277, %s278
      %p290 = scmp.eq.s32.totalorder %s32, 1
      %p291 = por %p289, %p290
      %p293 = scmp.ne.s32.totalorder %s278, %s292
      %p294 = scmp.eq.s32.totalorder %s32, 0
      %p295 = por %p293, %p294
      %s297 = sadd.s32 %s296, 1
      %p300 = scmp.eq.s32.totalorder %s26, 1
      %p301 = scmp.ne.s32.totalorder %s296, %s298
      %p302 = scmp.eq.s32.totalorder %s26, 0
      %p303 = por %p301, %p302
      %p304 = scmp.ne.s32.totalorder %s296, %s298
      %p305 = scmp.eq.s32.totalorder %s31, 1
      %p306 = por %p304, %p305
      %p307 = scmp.ne.s32.totalorder %s298, %s299
      %p308 = scmp.eq.s32.totalorder %s31, 0
      %p309 = por %p307, %p308
      %p310 = scmp.ne.s32.totalorder %s298, %s299
      %p311 = scmp.eq.s32.totalorder %s32, 1
      %p312 = por %p310, %p311
      %p314 = scmp.ne.s32.totalorder %s299, %s313
      %p315 = scmp.eq.s32.totalorder %s32, 0
      %p316 = por %p314, %p315
      %s318 = sadd.s32 %s317, 1
      %p321 = scmp.eq.s32.totalorder %s26, 1
      %p322 = scmp.ne.s32.totalorder %s317, %s319
      %p323 = scmp.eq.s32.totalorder %s26, 0
      %p324 = por %p322, %p323
      %p325 = scmp.ne.s32.totalorder %s317, %s319
      %p326 = scmp.eq.s32.totalorder %s31, 1
      %p327 = por %p325, %p326
      %p328 = scmp.ne.s32.totalorder %s319, %s320
      %p329 = scmp.eq.s32.totalorder %s31, 0
      %p330 = por %p328, %p329
      %p331 = scmp.ne.s32.totalorder %s319, %s320
      %p332 = scmp.eq.s32.totalorder %s32, 1
      %p333 = por %p331, %p332
      %p335 = scmp.ne.s32.totalorder %s320, %s334
      %p336 = scmp.eq.s32.totalorder %s32, 0
      %p337 = por %p335, %p336
      %s339 = sadd.s32 %s338, 1
      %p342 = scmp.eq.s32.totalorder %s26, 1
      %p343 = scmp.ne.s32.totalorder %s338, %s340
      %p344 = scmp.eq.s32.totalorder %s26, 0
      %p345 = por %p343, %p344
      %p346 = scmp.ne.s32.totalorder %s338, %s340
      %p347 = scmp.eq.s32.totalorder %s31, 1
      %p348 = por %p346, %p347
      %p349 = scmp.ne.s32.totalorder %s340, %s341
      %p350 = scmp.eq.s32.totalorder %s31, 0
      %p351 = por %p349, %p350
      %p352 = scmp.ne.s32.totalorder %s340, %s341
      %p353 = scmp.eq.s32.totalorder %s32, 1
      %p354 = por %p352, %p353
      %p356 = scmp.ne.s32.totalorder %s341, %s355
      %p357 = scmp.eq.s32.totalorder %s32, 0
      %p358 = por %p356, %p357
      %s360 = sadd.s32 %s359, 1
      %p363 = scmp.eq.s32.totalorder %s26, 1
      %p364 = scmp.ne.s32.totalorder %s359, %s361
      %p365 = scmp.eq.s32.totalorder %s26, 0
      %p366 = por %p364, %p365
      %p367 = scmp.ne.s32.totalorder %s359, %s361
      %p368 = scmp.eq.s32.totalorder %s31, 1
      %p369 = por %p367, %p368
      %p370 = scmp.ne.s32.totalorder %s361, %s362
      %p371 = scmp.eq.s32.totalorder %s31, 0
      %p372 = por %p370, %p371
      %p373 = scmp.ne.s32.totalorder %s361, %s362
      %p374 = scmp.eq.s32.totalorder %s32, 1
      %p375 = por %p373, %p374
      %p377 = scmp.ne.s32.totalorder %s362, %s376
      %p378 = scmp.eq.s32.totalorder %s32, 0
      %p379 = por %p377, %p378
      %s381 = sadd.s32 %s380, 1
      %p384 = scmp.eq.s32.totalorder %s26, 1
      %p385 = scmp.ne.s32.totalorder %s380, %s382
      %p386 = scmp.eq.s32.totalorder %s26, 0
      %p387 = por %p385, %p386
      %p388 = scmp.ne.s32.totalorder %s380, %s382
      %p389 = scmp.eq.s32.totalorder %s31, 1
      %p390 = por %p388, %p389
      %p391 = scmp.ne.s32.totalorder %s382, %s383
      %p392 = scmp.eq.s32.totalorder %s31, 0
      %p393 = por %p391, %p392
      %p394 = scmp.ne.s32.totalorder %s382, %s383
      %p395 = scmp.eq.s32.totalorder %s32, 1
      %p396 = por %p394, %p395
      %p398 = scmp.ne.s32.totalorder %s383, %s397
      %p399 = scmp.eq.s32.totalorder %s32, 0
      %p400 = por %p398, %p399
      %s402 = sadd.s32 %s401, 1
      %p405 = scmp.eq.s32.totalorder %s26, 1
      %p406 = scmp.ne.s32.totalorder %s401, %s403
      %p407 = scmp.eq.s32.totalorder %s26, 0
      %p408 = por %p406, %p407
      %p409 = scmp.ne.s32.totalorder %s401, %s403
      %p410 = scmp.eq.s32.totalorder %s31, 1
      %p411 = por %p409, %p410
      %p412 = scmp.ne.s32.totalorder %s403, %s404
      %p413 = scmp.eq.s32.totalorder %s31, 0
      %p414 = por %p412, %p413
      %p415 = scmp.ne.s32.totalorder %s403, %s404
      %p416 = scmp.eq.s32.totalorder %s32, 1
      %p417 = por %p415, %p416
      %p419 = scmp.ne.s32.totalorder %s404, %s418
      %p420 = scmp.eq.s32.totalorder %s32, 0
      %p421 = por %p419, %p420
      %s422 = ssub.s32 %s26, %s33
      %p423 = scmp.eq.s32.totalorder %s422, 0
      %s425 = sadd.s32 %s424, 1
      %s426 = scalar_select %p423, %s424, %s425
      %p429 = pneg %p423
      %p430 = scmp.eq.s32.totalorder %s26, 1
      %p431 = por %p429, %p430
      %p432 = scmp.ne.s32.totalorder %s424, %s427
      %p433 = scmp.eq.s32.totalorder %s26, 0
      %p434 = por %p432, %p433
      %p435 = scmp.ne.s32.totalorder %s424, %s427
      %p436 = scmp.eq.s32.totalorder %s31, 1
      %p437 = por %p435, %p436
      %p438 = scmp.ne.s32.totalorder %s427, %s428
      %p439 = scmp.eq.s32.totalorder %s31, 0
      %p440 = por %p438, %p439
      %p441 = scmp.ne.s32.totalorder %s427, %s428
      %p442 = scmp.eq.s32.totalorder %s32, 1
      %p443 = por %p441, %p442
      %p445 = scmp.ne.s32.totalorder %s428, %s444
      %p446 = scmp.eq.s32.totalorder %s32, 0
      %p447 = por %p445, %p446
      %s448 = ssub.s32 %s26, %s33
      %p449 = scmp.eq.s32.totalorder %s448, 0
      %s451 = sadd.s32 %s450, 1
      %s452 = scalar_select %p449, %s450, %s451
      %p455 = pneg %p449
      %p456 = scmp.eq.s32.totalorder %s26, 1
      %p457 = por %p455, %p456
      %p458 = scmp.ne.s32.totalorder %s450, %s453
      %p459 = scmp.eq.s32.totalorder %s26, 0
      %p460 = por %p458, %p459
      %p461 = scmp.ne.s32.totalorder %s450, %s453
      %p462 = scmp.eq.s32.totalorder %s31, 1
      %p463 = por %p461, %p462
      %p464 = scmp.ne.s32.totalorder %s453, %s454
      %p465 = scmp.eq.s32.totalorder %s31, 0
      %p466 = por %p464, %p465
      %p467 = scmp.ne.s32.totalorder %s453, %s454
      %p468 = scmp.eq.s32.totalorder %s32, 1
      %p469 = por %p467, %p468
      %p471 = scmp.ne.s32.totalorder %s454, %s470
      %p472 = scmp.eq.s32.totalorder %s32, 0
      %p473 = por %p471, %p472
      %p474 = scmp.le.s32.totalorder 1, %s26
      %p475 = scmp.lt.s32.totalorder %s26, 3
      %p476 = pnand %p474, %p475
      %p477 = pneg %p476
      // Predicated region
      $region9: #{vae_forward.1} parent=5 // pred_check
        _
      $region10: #{vae_forward.1} parent=5 // pred_check_branch
        %479 = sbr.rel (%p476) target = $region12
      $region11: #{vae_forward.1} parent=5 // pred_region
        %s480 = ssub.s32 %s26, 1
        // Predicated region
        $region13: #{vae_forward.1} parent=11 // pred_check
          %p481 = pneg %p99
        $region14: #{vae_forward.1} parent=11 // pred_check_branch
          %483 = sbr.rel (%p481) target = $region16
        $region15: #{vae_forward.1} parent=11 // pred_region
          _
        $region16: #{vae_forward.1} parent=11 // pred_fallthru
          _
        // Predicated region
        $region17: #{vae_forward.1} parent=11 // pred_check
          %p484 = pneg %p120
        $region18: #{vae_forward.1} parent=11 // pred_check_branch
          %486 = sbr.rel (%p484) target = $region20
        $region19: #{vae_forward.1} parent=11 // pred_region
          _
        $region20: #{vae_forward.1} parent=11 // pred_fallthru
          _
        // Predicated region
        $region21: #{vae_forward.1} parent=11 // pred_check
          %p487 = pneg %p141
        $region22: #{vae_forward.1} parent=11 // pred_check_branch
          %489 = sbr.rel (%p487) target = $region24
        $region23: #{vae_forward.1} parent=11 // pred_region
          _
        $region24: #{vae_forward.1} parent=11 // pred_fallthru
          _
        // Predicated region
        $region25: #{vae_forward.1} parent=11 // pred_check
          %p490 = pneg %p162
        $region26: #{vae_forward.1} parent=11 // pred_check_branch
          %492 = sbr.rel (%p490) target = $region28
        $region27: #{vae_forward.1} parent=11 // pred_region
          _
        $region28: #{vae_forward.1} parent=11 // pred_fallthru
          _
        // Predicated region
        $region29: #{vae_forward.1} parent=11 // pred_check
          %p493 = pneg %p183
        $region30: #{vae_forward.1} parent=11 // pred_check_branch
          %495 = sbr.rel (%p493) target = $region32
        $region31: #{vae_forward.1} parent=11 // pred_region
          _
        $region32: #{vae_forward.1} parent=11 // pred_fallthru
          _
        // Predicated region
        $region33: #{vae_forward.1} parent=11 // pred_check
          %p496 = pneg %p204
        $region34: #{vae_forward.1} parent=11 // pred_check_branch
          %498 = sbr.rel (%p496) target = $region36
        $region35: #{vae_forward.1} parent=11 // pred_region
          _
        $region36: #{vae_forward.1} parent=11 // pred_fallthru
          _
        // Predicated region
        $region37: #{vae_forward.1} parent=11 // pred_check
          %p499 = pneg %p225
        $region38: #{vae_forward.1} parent=11 // pred_check_branch
          %501 = sbr.rel (%p499) target = $region40
        $region39: #{vae_forward.1} parent=11 // pred_region
          _
        $region40: #{vae_forward.1} parent=11 // pred_fallthru
          _
        // Predicated region
        $region41: #{vae_forward.1} parent=11 // pred_check
          %p502 = pneg %p246
        $region42: #{vae_forward.1} parent=11 // pred_check_branch
          %504 = sbr.rel (%p502) target = $region44
        $region43: #{vae_forward.1} parent=11 // pred_region
          _
        $region44: #{vae_forward.1} parent=11 // pred_fallthru
          _
        // Predicated region
        $region45: #{vae_forward.1} parent=11 // pred_check
          %p505 = pneg %p267
        $region46: #{vae_forward.1} parent=11 // pred_check_branch
          %507 = sbr.rel (%p505) target = $region48
        $region47: #{vae_forward.1} parent=11 // pred_region
          _
        $region48: #{vae_forward.1} parent=11 // pred_fallthru
          _
        // Predicated region
        $region49: #{vae_forward.1} parent=11 // pred_check
          %p508 = pneg %p288
        $region50: #{vae_forward.1} parent=11 // pred_check_branch
          %510 = sbr.rel (%p508) target = $region52
        $region51: #{vae_forward.1} parent=11 // pred_region
          _
        $region52: #{vae_forward.1} parent=11 // pred_fallthru
          _
        // Predicated region
        $region53: #{vae_forward.1} parent=11 // pred_check
          %p511 = pneg %p309
        $region54: #{vae_forward.1} parent=11 // pred_check_branch
          %513 = sbr.rel (%p511) target = $region56
        $region55: #{vae_forward.1} parent=11 // pred_region
          _
        $region56: #{vae_forward.1} parent=11 // pred_fallthru
          _
        // Predicated region
        $region57: #{vae_forward.1} parent=11 // pred_check
          %p514 = pneg %p330
        $region58: #{vae_forward.1} parent=11 // pred_check_branch
          %516 = sbr.rel (%p514) target = $region60
        $region59: #{vae_forward.1} parent=11 // pred_region
          _
        $region60: #{vae_forward.1} parent=11 // pred_fallthru
          _
        // Predicated region
        $region61: #{vae_forward.1} parent=11 // pred_check
          %p517 = pneg %p351
        $region62: #{vae_forward.1} parent=11 // pred_check_branch
          %519 = sbr.rel (%p517) target = $region64
        $region63: #{vae_forward.1} parent=11 // pred_region
          _
        $region64: #{vae_forward.1} parent=11 // pred_fallthru
          _
        // Predicated region
        $region65: #{vae_forward.1} parent=11 // pred_check
          %p520 = pneg %p372
        $region66: #{vae_forward.1} parent=11 // pred_check_branch
          %522 = sbr.rel (%p520) target = $region68
        $region67: #{vae_forward.1} parent=11 // pred_region
          _
        $region68: #{vae_forward.1} parent=11 // pred_fallthru
          _
        // Predicated region
        $region69: #{vae_forward.1} parent=11 // pred_check
          %p523 = pneg %p393
        $region70: #{vae_forward.1} parent=11 // pred_check_branch
          %525 = sbr.rel (%p523) target = $region72
        $region71: #{vae_forward.1} parent=11 // pred_region
          _
        $region72: #{vae_forward.1} parent=11 // pred_fallthru
          _
        // Predicated region
        $region73: #{vae_forward.1} parent=11 // pred_check
          %p526 = pneg %p414
        $region74: #{vae_forward.1} parent=11 // pred_check_branch
          %528 = sbr.rel (%p526) target = $region76
        $region75: #{vae_forward.1} parent=11 // pred_region
          _
        $region76: #{vae_forward.1} parent=11 // pred_fallthru
          _
      $region12: #{vae_forward.1} parent=5 // pred_fallthru
        _
      %p529 = scmp.lt.s32.totalorder %s26, 2
      // Predicated region
      $region77: #{vae_forward.1} parent=5 // pred_check
        %p530 = pneg %p529
      $region78: #{vae_forward.1} parent=5 // pred_check_branch
        %532 = sbr.rel (%p530) target = $region80
      $region79: #{vae_forward.1} parent=5 // pred_region
        // Predicated region
        $region81: #{vae_forward.1} parent=79 // pred_check
          %p533 = pneg %p46
        $region82: #{vae_forward.1} parent=79 // pred_check_branch
          %535 = sbr.rel (%p533) target = $region84
        $region83: #{vae_forward.1} parent=79 // pred_region
          %s536 = sand.u32 %s36, 1
          %s537 = sand.u32 %s36, 1
          %s538 = smul.addr %s537, 64
          %s539 = scalar_lea.vmem [#allocation2], %s538
          %s540 = smul.u32 2, %s26
          %s541 = smul.addr %s540, 4
          %s542 = scalar_lea.vmem %s0, %s541
          // Predicated region
          $region85: #{vae_forward.1} parent=83 // pred_check
            _
          $region86: #{vae_forward.1} parent=83 // pred_check_branch
            %544 = sbr.rel (0) target = $region88
          $region87: #{vae_forward.1} parent=83 // pred_region
            // Predicated region
            $region89: #{vae_forward.1} parent=87 // pred_check
              _
            $region90: #{vae_forward.1} parent=87 // pred_check_branch
              %546 = sbr.rel (0) target = $region92
            $region91: #{vae_forward.1} parent=87 // pred_region
              // Predicated region
              $region104: #{vae_forward.1} parent=91 // pred_check
                _
              $region105: #{vae_forward.1} parent=91 // pred_check_branch
                %575 = sbr.rel (0) target = $region107
              $region106: #{vae_forward.1} parent=91 // pred_region
                loop: start=0, step=1, limit=1
                $region108: #{vae_forward.1} parent=106 // loop_pre_header
                  _
                $region109: #{vae_forward.1} parent=106 // loop_header
                  %s577 = sphi 0, %s581
                  %p578 = scmp.ge.s32.totalorder %s577, 1
                  %s582 = sphi %s542, %s542
                  %s583 = sphi %s539, %s539
                $region110: #{vae_forward.1} parent=106 // loop_header_branch
                  %580 = sbr.rel (%p578) target = $region114
                $region111: #{vae_forward.1} parent=106 // loop_body
                  %v584 = vld [vmem:[%s582] sm:$0xff]
                  %585 = vst [vmem:[%s583] sm:$0xff] %v584
                  %v586 = vld [vmem:[%s582 + $0x10] sm:$0xff]
                  %587 = vst [vmem:[%s583 + $0x8] sm:$0xff] %v586
                  %v588 = vld [vmem:[%s582 + $0x20] sm:$0xff]
                  %589 = vst [vmem:[%s583 + $0x10] sm:$0xff] %v588
                  %v590 = vld [vmem:[%s582 + $0x30] sm:$0xff]
                  %591 = vst [vmem:[%s583 + $0x18] sm:$0xff] %v590
                  %v592 = vld [vmem:[%s582 + $0x40] sm:$0xff]
                  %593 = vst [vmem:[%s583 + $0x20] sm:$0xff] %v592
                  %v594 = vld [vmem:[%s582 + $0x50] sm:$0xff]
                  %595 = vst [vmem:[%s583 + $0x28] sm:$0xff] %v594
                  %v596 = vld [vmem:[%s582 + $0x60] sm:$0xff]
                  %597 = vst [vmem:[%s583 + $0x30] sm:$0xff] %v596
                  %v598 = vld [vmem:[%s582 + $0x70] sm:$0xff]
                  %599 = vst [vmem:[%s583 + $0x38] sm:$0xff] %v598
                $region112: #{vae_forward.1} parent=106 // loop_footer
                  %s581 = sadd.s32 1, %s577
                $region113: #{vae_forward.1} parent=106 // loop_footer_branch
                  %576 = sbr.rel target = $region109
                $region114: #{vae_forward.1} parent=106 // loop_exit
                  _
              $region107: #{vae_forward.1} parent=91 // pred_fallthru
                _
              // Predicated region
              $region115: #{vae_forward.1} parent=91 // pred_check
                _
              $region116: #{vae_forward.1} parent=91 // pred_check_branch
                %601 = sbr.rel target = $region118
              $region117: #{vae_forward.1} parent=91 // pred_region
                _
              $region118: #{vae_forward.1} parent=91 // pred_fallthru
                _
            $region92: #{vae_forward.1} parent=87 // pred_fallthru
              _
            // Predicated region
            $region93: #{vae_forward.1} parent=87 // pred_check
              _
            $region94: #{vae_forward.1} parent=87 // pred_check_branch
              %548 = sbr.rel target = $region96
            $region95: #{vae_forward.1} parent=87 // pred_region
              loop: start=0, step=1, limit=1
              $region97: #{vae_forward.1} parent=95 // loop_pre_header
                _
              $region98: #{vae_forward.1} parent=95 // loop_header
                %s551 = sphi 0, %s555
                %p552 = scmp.ge.s32.totalorder %s551, 1
                %s556 = sphi %s542, %s542
                %s557 = sphi %s539, %s539
              $region99: #{vae_forward.1} parent=95 // loop_header_branch
                %554 = sbr.rel (%p552) target = $region103
              $region100: #{vae_forward.1} parent=95 // loop_body
                %v558 = vld [vmem:[%s556] sm:$0xff]
                %559 = vst [vmem:[%s557] sm:$0xff] %v558
                %v560 = vld [vmem:[%s556 + $0x10] sm:$0xff]
                %561 = vst [vmem:[%s557 + $0x8] sm:$0xff] %v560
                %v562 = vld [vmem:[%s556 + $0x20] sm:$0xff]
                %563 = vst [vmem:[%s557 + $0x10] sm:$0xff] %v562
                %v564 = vld [vmem:[%s556 + $0x30] sm:$0xff]
                %565 = vst [vmem:[%s557 + $0x18] sm:$0xff] %v564
                %v566 = vld [vmem:[%s556 + $0x40] sm:$0xff]
                %567 = vst [vmem:[%s557 + $0x20] sm:$0xff] %v566
                %v568 = vld [vmem:[%s556 + $0x50] sm:$0xff]
                %569 = vst [vmem:[%s557 + $0x28] sm:$0xff] %v568
                %v570 = vld [vmem:[%s556 + $0x60] sm:$0xff]
                %571 = vst [vmem:[%s557 + $0x30] sm:$0xff] %v570
                %v572 = vld [vmem:[%s556 + $0x70] sm:$0xff]
                %573 = vst [vmem:[%s557 + $0x38] sm:$0xff] %v572
              $region101: #{vae_forward.1} parent=95 // loop_footer
                %s555 = sadd.s32 1, %s551
              $region102: #{vae_forward.1} parent=95 // loop_footer_branch
                %550 = sbr.rel target = $region98
              $region103: #{vae_forward.1} parent=95 // loop_exit
                _
            $region96: #{vae_forward.1} parent=87 // pred_fallthru
              _
          $region88: #{vae_forward.1} parent=83 // pred_fallthru
            _
          %602 = vnop
        $region84: #{vae_forward.1} parent=79 // pred_fallthru
          _
        // Predicated region
        $region119: #{vae_forward.1} parent=79 // pred_check
          %p603 = pneg %p72
        $region120: #{vae_forward.1} parent=79 // pred_check_branch
          %605 = sbr.rel (%p603) target = $region122
        $region121: #{vae_forward.1} parent=79 // pred_region
          %s606 = smul.u32 2, %s26
          %p607 = scmp.lt.s32.totalorder %s606, 3
          %s608 = scalar_select %p607, %s606, 3
          %s609 = smul.addr %s608, 8
          %s610 = scalar_lea.vmem %s1, %s609
          %s611 = smul.u32 2, %s26
        $region122: #{vae_forward.1} parent=79 // pred_fallthru
          _
      $region80: #{vae_forward.1} parent=5 // pred_fallthru
        _
      %p612 = scmp.le.s32.totalorder 1, %s26
      %p613 = scmp.lt.s32.totalorder %s26, 3
      %p614 = pnand %p612, %p613
      %p615 = pneg %p614
      // Predicated region
      $region123: #{vae_forward.1} parent=5 // pred_check
        _
      $region124: #{vae_forward.1} parent=5 // pred_check_branch
        %617 = sbr.rel (%p614) target = $region126
      $region125: #{vae_forward.1} parent=5 // pred_region
        %s618 = ssub.s32 %s26, 1
        %s619 = sand.u32 %s39, 1
        %s620 = sand.u32 %s39, 1
        %s621 = smul.addr %s620, 64
        %s622 = scalar_lea.vmem [#allocation2], %s621
        // Predicated region
        $region127: #{vae_forward.1} parent=125 // pred_check
          %p623 = pneg %p52
        $region128: #{vae_forward.1} parent=125 // pred_check_branch
          %625 = sbr.rel (%p623) target = $region130
        $region129: #{vae_forward.1} parent=125 // pred_region
          _
        $region130: #{vae_forward.1} parent=125 // pred_fallthru
          _
        %s626 = sand.u32 %s39, 1
        %s627 = sand.u32 %s39, 1
        %s628 = smul.addr %s627, 64
        %s629 = scalar_lea.vmem [#allocation2], %s628
        %p630 = pneg %p52
        %p631 = pneg %p49
        %s632 = smul.u32 2, %s31
        %p633 = scmp.lt.s32.totalorder %s632, 3
        %s634 = scalar_select %p633, %s632, 3
        %s635 = smul.addr %s634, 8
        %s636 = scalar_lea.vmem %s1, %s635
        %p637 = pneg %p78
        %p638 = pneg %p75
        %p639 = pneg %p99
        %p640 = pneg %p96
        %p641 = pneg %p120
        %p642 = pneg %p117
        %p643 = pneg %p141
        %p644 = pneg %p138
        %p645 = pneg %p162
        %p646 = pneg %p159
        %p647 = pneg %p183
        %p648 = pneg %p180
        %p649 = pneg %p204
        %p650 = pneg %p201
        %p651 = pneg %p225
        %p652 = pneg %p222
        %p653 = pneg %p246
        %p654 = pneg %p243
        %p655 = pneg %p267
        %p656 = pneg %p264
        %p657 = pneg %p288
        %p658 = pneg %p285
        %p659 = pneg %p309
        %p660 = pneg %p306
        %p661 = pneg %p330
        %p662 = pneg %p327
        %p663 = pneg %p351
        %p664 = pneg %p348
        %p665 = pneg %p372
        %p666 = pneg %p369
        %p667 = pneg %p393
        %p668 = pneg %p390
        %p669 = pneg %p414
        %p670 = pneg %p411
        %p671 = pneg %p440
        %p672 = pneg %p437
        %s673 = sand.u32 %s427, 1
        %s674 = sand.u32 %s427, 1
        %s675 = smul.addr %s674, 32
        %s676 = scalar_lea.vmem [#allocation3], %s675
        %p677 = pneg %p466
        %p678 = pneg %p463
        %s679 = sand.u32 %s453, 1
        %s680 = sand.u32 %s453, 1
        %s681 = smul.addr %s680, 128
        %s682 = scalar_lea.vmem [#allocation4], %s681
        %s683 = smul.u32 2, %s31
        %s684 = smul.u32 2, %s31
        %p685 = scmp.lt.s32.totalorder %s684, 3
        %s686 = scalar_select %p685, %s684, 3
        %s687 = smul.addr %s686, 8
        %s688 = scalar_lea.vmem %s1, %s687
        %s689 = smul.u32 2, %s31
        %s690 = smul.u32 2, %s31
        %s691 = smul.u32 2, %s31
        %v693 = vld [vmem:[%s622] sm:$0xff]
        %v694 = vld [vmem:[%s622 + $0x8] sm:$0xff]
        %v695 = vld [vmem:[%s622 + $0x10] sm:$0xff]
        %v696 = vld [vmem:[%s622 + $0x18] sm:$0xff]
        %v697 = vld [vmem:[%s622 + $0x20] sm:$0xff]
        %v698 = vld [vmem:[%s622 + $0x28] sm:$0xff]
        %v699 = vld [vmem:[%s622 + $0x30] sm:$0xff]
        %v700 = vld [vmem:[%s622 + $0x38] sm:$0xff]
        %v701 = vld [vmem:[%s2] sm:$0xf]
        %v702 = vld [vmem:[%s2 + $0x4] sm:$0xf]
        %v703 = vld [vmem:[%s2 + $0x8] sm:$0xf]
        %v704 = vld [vmem:[%s2 + $0xc] sm:$0xf]
        %v705 = vld [vmem:[%s2 + $0x10] sm:$0xf]
        %v706 = vld [vmem:[%s2 + $0x14] sm:$0xf]
        %v707 = vld [vmem:[%s3] sm:$0xff]
        %v708 = vld [vmem:[%s3 + $0x8] sm:$0xff]
        %v709 = vld [vmem:[%s3 + $0x10] sm:$0xff]
        %v710 = vld [vmem:[%s3 + $0x18] sm:$0xff]
        %v711 = vld [vmem:[%s3 + $0x20] sm:$0xff]
        %v712 = vld [vmem:[%s3 + $0x28] sm:$0xff]
        %714 = vset.pattern.permute.xlu0 0
        %715 = vperm.xlu0 %714, %v707
        %v716 = vpop.permute.xlu0 %715
        %719 = vset.pattern.permute.xlu0 0
        %720 = vperm.xlu0 %719, %v708
        %v721 = vpop.permute.xlu0 %720
        %724 = vset.pattern.permute.xlu0 0
        %725 = vperm.xlu0 %724, %v709
        %v726 = vpop.permute.xlu0 %725
        %729 = vset.pattern.permute.xlu0 0
        %730 = vperm.xlu0 %729, %v710
        %v731 = vpop.permute.xlu0 %730
        %734 = vset.pattern.permute.xlu0 0
        %735 = vperm.xlu0 %734, %v711
        %v736 = vpop.permute.xlu0 %735
        %739 = vset.pattern.permute.xlu0 0
        %740 = vperm.xlu0 %739, %v712
        %v741 = vpop.permute.xlu0 %740
        %v749 = vunpack.c.l.b16 %v701
        %v750 = vunpack.c.l.b16 %v702
        %v751 = vunpack.c.l.b16 %v703
        %v752 = vunpack.c.l.b16 %v704
        %v753 = vunpack.c.l.b16 %v705
        %v754 = vunpack.c.l.b16 %v706
        %v755 = vpack.c.b16 %v750, %v749
        %v756 = vpack.c.b16 %v752, %v751
        %v757 = vpack.c.b16 %v754, %v753
        %v766 = vunpack.c.l.b16 %v693
        %v767 = vunpack.c.h.b16 %v693
        %v768 = vunpack.c.l.b16 %v694
        %v769 = vunpack.c.h.b16 %v694
        %v770 = vunpack.c.l.b16 %v695
        %v771 = vunpack.c.h.b16 %v695
        %v772 = vunpack.c.l.b16 %v696
        %v773 = vunpack.c.h.b16 %v696
        %v774 = vunpack.c.l.b16 %v697
        %v775 = vunpack.c.h.b16 %v697
        %v776 = vunpack.c.l.b16 %v698
        %v777 = vunpack.c.h.b16 %v698
        %v778 = vunpack.c.l.b16 %v699
        %v779 = vunpack.c.h.b16 %v699
        %v780 = vunpack.c.l.b16 %v700
        %v781 = vunpack.c.h.b16 %v700
        %v782 = vpack.c.b16 %v768, %v766
        %v783 = vpack.c.b16 %v769, %v767
        %v784 = vpack.c.b16 %v772, %v770
        %v785 = vpack.c.b16 %v773, %v771
        %v786 = vpack.c.b16 %v776, %v774
        %v787 = vpack.c.b16 %v777, %v775
        %v788 = vpack.c.b16 %v780, %v778
        %v789 = vpack.c.b16 %v781, %v779
        %vm798 = vcmask 523264
        %v800 = vsel %vm798, %v755, 0
        %v803 = vsel %vm798, %v756, 0
        %v806 = vsel %vm798, %v757, 0
        %808 = vmatprep.subr.bf16.mxu0 %v783
        %809 = vmatpush1.bf16.msra.mxu0 %v782
        %810 = vmatprep.subr.bf16.mxu0 %v785
        %811 = vmatpush1.bf16.msra.mxu0 %v784
        %812 = vmatprep.subr.bf16.mxu0 %v787
        %813 = vmatpush1.bf16.msra.mxu0 %v786
        %814 = vmatprep.subr.bf16.mxu0 %v789
        %815 = vmatpush1.bf16.msra.mxu0 %v788
        %816 = vmatprep.subr.bf16.mxu0 0
        %817 = vmatpush1.bf16.msra.mxu0 0
        %818 = vmatprep.subr.bf16.mxu0 0
        %819 = vmatpush1.bf16.msra.mxu0 0
        %820 = vmatprep.subr.bf16.mxu0 0
        %821 = vmatpush1.bf16.msra.mxu0 0
        %822 = vmatprep.subr.bf16.mxu0 0
        %823 = vmatpush1.bf16.msra.mxu0 0
        %824 = vmatprep.subr.bf16.mxu0 0
        %825 = vmatpush1.bf16.msra.mxu0 0
        %826 = vmatprep.subr.bf16.mxu0 0
        %827 = vmatpush1.bf16.msra.mxu0 0
        %828 = vmatprep.subr.bf16.mxu0 0
        %829 = vmatpush1.bf16.msra.mxu0 0
        %830 = vmatprep.subr.bf16.mxu0 0
        %831 = vmatpush1.bf16.msra.mxu0 0
        %832 = vmatprep.subr.bf16.mxu0 0
        %833 = vmatpush1.bf16.msra.mxu0 0
        %834 = vmatprep.subr.bf16.mxu0 0
        %835 = vmatpush1.bf16.msra.mxu0 0
        %836 = vmatprep.subr.bf16.mxu0 0
        %837 = vmatpush1.bf16.msra.mxu0 0
        %838 = vmatprep.subr.bf16.mxu0 0
        %839 = vmatpush1.bf16.msra.mxu0 0
        %840 = vmatprep.mubr.bf16.mxu0 0
        %841 = vmatmul.mubr.bf16.gmra.mrb[0].mxu0 %v800
        %v842 = vpop.f32.mrb[0].mxu0
        %v843 = vadd.f32 %v716, %v842
        %v844 = vpop.f32.mrb[0].mxu0
        %v845 = vadd.f32 %v716, %v844
        %v846 = vpop.f32.mrb[0].mxu0
        %v847 = vadd.f32 %v721, %v846
        %v848 = vpop.f32.mrb[0].mxu0
        %v849 = vadd.f32 %v721, %v848
        %850 = vmatprep.mubr.bf16.mxu0 0
        %851 = vmatmul.mubr.bf16.gmra.mrb[0].mxu0 %v803
        %v852 = vpop.f32.mrb[0].mxu0
        %v853 = vadd.f32 %v726, %v852
        %v854 = vpop.f32.mrb[0].mxu0
        %v855 = vadd.f32 %v726, %v854
        %v856 = vpop.f32.mrb[0].mxu0
        %v857 = vadd.f32 %v731, %v856
        %v858 = vpop.f32.mrb[0].mxu0
        %v859 = vadd.f32 %v731, %v858
        %860 = vmatprep.mubr.bf16.mxu0 0
        %861 = vmatmul.mubr.bf16.gmra.mrb[0].mxu0 %v806
        %v862 = vpop.f32.mrb[0].mxu0
        %v863 = vadd.f32 %v736, %v862
        %v864 = vpop.f32.mrb[0].mxu0
        %v865 = vadd.f32 %v736, %v864
        %v866 = vpop.f32.mrb[0].mxu0
        %v867 = vadd.f32 %v741, %v866
        %v868 = vpop.f32.mrb[0].mxu0
        %v869 = vadd.f32 %v741, %v868
        %870 = vdwg.mxu0
        %v871 = vmax.f32 %v843, 0.0
        %v872 = vmax.f32 %v845, 0.0
        %v873 = vmax.f32 %v847, 0.0
        %v874 = vmax.f32 %v849, 0.0
        %v875 = vmax.f32 %v853, 0.0
        %v876 = vmax.f32 %v855, 0.0
        %v877 = vmax.f32 %v857, 0.0
        %v878 = vmax.f32 %v859, 0.0
        %v879 = vmax.f32 %v863, 0.0
        %v880 = vmax.f32 %v865, 0.0
        %v881 = vmax.f32 %v867, 0.0
        %v882 = vmax.f32 %v869, 0.0
        %v883 = vld [vmem:[%s4] sm:$0xf]
        %v884 = vld [vmem:[%s4 + $0x4] sm:$0xf]
        %v885 = vld [vmem:[%s4 + $0x8] sm:$0xf]
        %v886 = vld [vmem:[%s4 + $0xc] sm:$0xf]
        %v887 = vpack.c.bf16 %v873, %v871
        %v888 = vpack.c.bf16 %v874, %v872
        %v889 = vpack.c.bf16 %v877, %v875
        %v890 = vpack.c.bf16 %v878, %v876
        %v891 = vpack.c.bf16 %v881, %v879
        %v892 = vpack.c.bf16 %v882, %v880
        %v893 = vld [vmem:[%s5] sm:$0xff]
        %v894 = vld [vmem:[%s5 + $0x8] sm:$0xff]
        %v895 = vld [vmem:[%s5 + $0x10] sm:$0xff]
        %v896 = vld [vmem:[%s5 + $0x18] sm:$0xff]
        %898 = vset.pattern.permute.xlu0 0
        %899 = vperm.xlu0 %898, %v893
        %v900 = vpop.permute.xlu0 %899
        %903 = vset.pattern.permute.xlu0 0
        %904 = vperm.xlu0 %903, %v894
        %v905 = vpop.permute.xlu0 %904
        %908 = vset.pattern.permute.xlu0 0
        %909 = vperm.xlu0 %908, %v895
        %v910 = vpop.permute.xlu0 %909
        %913 = vset.pattern.permute.xlu0 0
        %914 = vperm.xlu0 %913, %v896
        %v915 = vpop.permute.xlu0 %914
        %v921 = vunpack.c.l.b16 %v883
        %v922 = vunpack.c.l.b16 %v884
        %v923 = vunpack.c.l.b16 %v885
        %v924 = vunpack.c.l.b16 %v886
        %v925 = vpack.c.b16 %v922, %v921
        %v926 = vpack.c.b16 %v924, %v923
        %vm927 = vcmask 392192
        %v929 = vsel %vm927, %v925, 0
        %v932 = vsel %vm927, %v926, 0
        %934 = vmatprep.subr.bf16.mxu0 %v888
        %935 = vmatpush1.bf16.msra.mxu0 %v887
        %936 = vmatprep.subr.bf16.mxu0 %v890
        %937 = vmatpush1.bf16.msra.mxu0 %v889
        %938 = vmatprep.subr.bf16.mxu0 %v892
        %939 = vmatpush1.bf16.msra.mxu0 %v891
        %940 = vmatprep.subr.bf16.mxu0 0
        %941 = vmatpush1.bf16.msra.mxu0 0
        %942 = vmatprep.subr.bf16.mxu0 0
        %943 = vmatpush1.bf16.msra.mxu0 0
        %944 = vmatprep.subr.bf16.mxu0 0
        %945 = vmatpush1.bf16.msra.mxu0 0
        %946 = vmatprep.subr.bf16.mxu0 0
        %947 = vmatpush1.bf16.msra.mxu0 0
        %948 = vmatprep.subr.bf16.mxu0 0
        %949 = vmatpush1.bf16.msra.mxu0 0
        %950 = vmatprep.subr.bf16.mxu0 0
        %951 = vmatpush1.bf16.msra.mxu0 0
        %952 = vmatprep.subr.bf16.mxu0 0
        %953 = vmatpush1.bf16.msra.mxu0 0
        %954 = vmatprep.subr.bf16.mxu0 0
        %955 = vmatpush1.bf16.msra.mxu0 0
        %956 = vmatprep.subr.bf16.mxu0 0
        %957 = vmatpush1.bf16.msra.mxu0 0
        %958 = vmatprep.subr.bf16.mxu0 0
        %959 = vmatpush1.bf16.msra.mxu0 0
        %960 = vmatprep.subr.bf16.mxu0 0
        %961 = vmatpush1.bf16.msra.mxu0 0
        %962 = vmatprep.subr.bf16.mxu0 0
        %963 = vmatpush1.bf16.msra.mxu0 0
        %964 = vmatprep.subr.bf16.mxu0 0
        %965 = vmatpush1.bf16.msra.mxu0 0
        %966 = vmatprep.mubr.bf16.mxu0 0
        %967 = vmatmul.mubr.bf16.gmra.mrb[0].mxu0 %v929
        %v968 = vpop.f32.mrb[0].mxu0
        %v969 = vadd.f32 %v900, %v968
        %v970 = vpop.f32.mrb[0].mxu0
        %v971 = vadd.f32 %v900, %v970
        %v972 = vpop.f32.mrb[0].mxu0
        %v973 = vadd.f32 %v905, %v972
        %v974 = vpop.f32.mrb[0].mxu0
        %v975 = vadd.f32 %v905, %v974
        %976 = vmatprep.mubr.bf16.mxu0 0
        %977 = vmatmul.mubr.bf16.gmra.mrb[0].mxu0 %v932
        %v978 = vpop.f32.mrb[0].mxu0
        %v979 = vadd.f32 %v910, %v978
        %v980 = vpop.f32.mrb[0].mxu0
        %v981 = vadd.f32 %v910, %v980
        %v982 = vpop.f32.mrb[0].mxu0
        %v983 = vadd.f32 %v915, %v982
        %v984 = vpop.f32.mrb[0].mxu0
        %v985 = vadd.f32 %v915, %v984
        %986 = vdwg.mxu0
        %v987 = vmax.f32 %v969, 0.0
        %v988 = vmax.f32 %v971, 0.0
        %v989 = vmax.f32 %v973, 0.0
        %v990 = vmax.f32 %v975, 0.0
        %v991 = vmax.f32 %v979, 0.0
        %v992 = vmax.f32 %v981, 0.0
        %v993 = vmax.f32 %v983, 0.0
        %v994 = vmax.f32 %v985, 0.0
        %v995 = vld [vmem:[%s6] sm:$0xf]
        %v996 = vld [vmem:[%s6 + $0x4] sm:$0xf]
        %v997 = vld [vmem:[%s6 + $0x8] sm:$0xf]
        %v998 = vld [vmem:[%s6 + $0xc] sm:$0xf]
        %v999 = vpack.c.bf16 %v989, %v987
        %v1000 = vpack.c.bf16 %v990, %v988
        %v1001 = vpack.c.bf16 %v993, %v991
        %v1002 = vpack.c.bf16 %v994, %v992
        %v1003 = vld [vmem:[%s7] sm:$0xff]
        %v1004 = vld [vmem:[%s7 + $0x8] sm:$0xff]
        %v1005 = vld [vmem:[%s7 + $0x10] sm:$0xff]
        %v1006 = vld [vmem:[%s7 + $0x18] sm:$0xff]
        %1008 = vset.pattern.permute.xlu0 0
        %1009 = vperm.xlu0 %1008, %v1003
        %v1010 = vpop.permute.xlu0 %1009
        %1013 = vset.pattern.permute.xlu0 0
        %1014 = vperm.xlu0 %1013, %v1004
        %v1015 = vpop.permute.xlu0 %1014
        %1018 = vset.pattern.permute.xlu0 0
        %1019 = vperm.xlu0 %1018, %v1005
        %v1020 = vpop.permute.xlu0 %1019
        %1023 = vset.pattern.permute.xlu0 0
        %1024 = vperm.xlu0 %1023, %v1006
        %v1025 = vpop.permute.xlu0 %1024
        %v1031 = vunpack.c.l.b16 %v995
        %v1032 = vunpack.c.l.b16 %v996
        %v1033 = vunpack.c.l.b16 %v997
        %v1034 = vunpack.c.l.b16 %v998
        %v1035 = vpack.c.b16 %v1032, %v1031
        %v1036 = vpack.c.b16 %v1034, %v1033
        %vm1037 = vcmask 261120
        %v1039 = vsel %vm1037, %v1035, 0
        %v1042 = vsel %vm1037, %v1036, 0
        %1044 = vmatprep.subr.bf16.mxu0 %v1000
        %1045 = vmatpush1.bf16.msra.mxu0 %v999
        %1046 = vmatprep.subr.bf16.mxu0 %v1002
        %1047 = vmatpush1.bf16.msra.mxu0 %v1001
        %1048 = vmatprep.subr.bf16.mxu0 0
        %1049 = vmatpush1.bf16.msra.mxu0 0
        %1050 = vmatprep.subr.bf16.mxu0 0
        %1051 = vmatpush1.bf16.msra.mxu0 0
        %1052 = vmatprep.subr.bf16.mxu0 0
        %1053 = vmatpush1.bf16.msra.mxu0 0
        %1054 = vmatprep.subr.bf16.mxu0 0
        %1055 = vmatpush1.bf16.msra.mxu0 0
        %1056 = vmatprep.subr.bf16.mxu0 0
        %1057 = vmatpush1.bf16.msra.mxu0 0
        %1058 = vmatprep.subr.bf16.mxu0 0
        %1059 = vmatpush1.bf16.msra.mxu0 0
        %1060 = vmatprep.subr.bf16.mxu0 0
        %1061 = vmatpush1.bf16.msra.mxu0 0
        %1062 = vmatprep.subr.bf16.mxu0 0
        %1063 = vmatpush1.bf16.msra.mxu0 0
        %1064 = vmatprep.subr.bf16.mxu0 0
        %1065 = vmatpush1.bf16.msra.mxu0 0
        %1066 = vmatprep.subr.bf16.mxu0 0
        %1067 = vmatpush1.bf16.msra.mxu0 0
        %1068 = vmatprep.subr.bf16.mxu0 0
        %1069 = vmatpush1.bf16.msra.mxu0 0
        %1070 = vmatprep.subr.bf16.mxu0 0
        %1071 = vmatpush1.bf16.msra.mxu0 0
        %1072 = vmatprep.subr.bf16.mxu0 0
        %1073 = vmatpush1.bf16.msra.mxu0 0
        %1074 = vmatprep.subr.bf16.mxu0 0
        %1075 = vmatpush1.bf16.msra.mxu0 0
        %1076 = vmatprep.mubr.bf16.mxu0 0
        %1077 = vmatmul.mubr.bf16.gmra.mrb[0].mxu0 %v1039
        %v1078 = vpop.f32.mrb[0].mxu0
        %v1079 = vadd.f32 %v1010, %v1078
        %v1080 = vpop.f32.mrb[0].mxu0
        %v1081 = vadd.f32 %v1010, %v1080
        %v1082 = vpop.f32.mrb[0].mxu0
        %v1083 = vadd.f32 %v1015, %v1082
        %v1084 = vpop.f32.mrb[0].mxu0
        %v1085 = vadd.f32 %v1015, %v1084
        %1086 = vmatprep.mubr.bf16.mxu0 0
        %1087 = vmatmul.mubr.bf16.gmra.mrb[0].mxu0 %v1042
        %v1088 = vpop.f32.mrb[0].mxu0
        %v1089 = vadd.f32 %v1020, %v1088
        %v1090 = vpop.f32.mrb[0].mxu0
        %v1091 = vadd.f32 %v1020, %v1090
        %v1092 = vpop.f32.mrb[0].mxu0
        %v1093 = vadd.f32 %v1025, %v1092
        %v1094 = vpop.f32.mrb[0].mxu0
        %v1095 = vadd.f32 %v1025, %v1094
        %1096 = vdwg.mxu0
        %v1097 = vmax.f32 %v1079, 0.0
        %v1098 = vmax.f32 %v1081, 0.0
        %v1099 = vmax.f32 %v1083, 0.0
        %v1100 = vmax.f32 %v1085, 0.0
        %v1101 = vmax.f32 %v1089, 0.0
        %v1102 = vmax.f32 %v1091, 0.0
        %v1103 = vmax.f32 %v1093, 0.0
        %v1104 = vmax.f32 %v1095, 0.0
        %v1105 = vld [vmem:[%s8] sm:$0xf]
        %v1106 = vld [vmem:[%s8 + $0x4] sm:$0xf]
        %v1107 = vpack.c.bf16 %v1099, %v1097
        %v1108 = vpack.c.bf16 %v1100, %v1098
        %v1109 = vpack.c.bf16 %v1103, %v1101
        %v1110 = vpack.c.bf16 %v1104, %v1102
        %v1111 = vld [vmem:[%s9] sm:$0xff]
        %v1112 = vld [vmem:[%s9 + $0x8] sm:$0xff]
        %1114 = vset.pattern.permute.xlu0 0
        %1115 = vperm.xlu0 %1114, %v1111
        %v1116 = vpop.permute.xlu0 %1115
        %1119 = vset.pattern.permute.xlu0 0
        %1120 = vperm.xlu0 %1119, %v1112
        %v1121 = vpop.permute.xlu0 %1120
        %v1125 = vunpack.c.l.b16 %v1105
        %v1126 = vunpack.c.l.b16 %v1106
        %v1127 = vpack.c.b16 %v1126, %v1125
        %v1129 = vsel %vm1037, %v1127, 0
        %1131 = vmatprep.subr.bf16.mxu0 %v1108
        %1132 = vmatpush1.bf16.msra.mxu0 %v1107
        %1133 = vmatprep.subr.bf16.mxu0 %v1110
        %1134 = vmatpush1.bf16.msra.mxu0 %v1109
        %1135 = vmatprep.subr.bf16.mxu0 0
        %1136 = vmatpush1.bf16.msra.mxu0 0
        %1137 = vmatprep.subr.bf16.mxu0 0
        %1138 = vmatpush1.bf16.msra.mxu0 0
        %1139 = vmatprep.subr.bf16.mxu0 0
        %1140 = vmatpush1.bf16.msra.mxu0 0
        %1141 = vmatprep.subr.bf16.mxu0 0
        %1142 = vmatpush1.bf16.msra.mxu0 0
        %1143 = vmatprep.subr.bf16.mxu0 0
        %1144 = vmatpush1.bf16.msra.mxu0 0
        %1145 = vmatprep.subr.bf16.mxu0 0
        %1146 = vmatpush1.bf16.msra.mxu0 0
        %1147 = vmatprep.subr.bf16.mxu0 0
        %1148 = vmatpush1.bf16.msra.mxu0 0
        %1149 = vmatprep.subr.bf16.mxu0 0
        %1150 = vmatpush1.bf16.msra.mxu0 0
        %1151 = vmatprep.subr.bf16.mxu0 0
        %1152 = vmatpush1.bf16.msra.mxu0 0
        %1153 = vmatprep.subr.bf16.mxu0 0
        %1154 = vmatpush1.bf16.msra.mxu0 0
        %1155 = vmatprep.subr.bf16.mxu0 0
        %1156 = vmatpush1.bf16.msra.mxu0 0
        %1157 = vmatprep.subr.bf16.mxu0 0
        %1158 = vmatpush1.bf16.msra.mxu0 0
        %1159 = vmatprep.subr.bf16.mxu0 0
        %1160 = vmatpush1.bf16.msra.mxu0 0
        %1161 = vmatprep.subr.bf16.mxu0 0
        %1162 = vmatpush1.bf16.msra.mxu0 0
        %1163 = vmatprep.mubr.bf16.mxu0 0
        %1164 = vmatmul.mubr.bf16.gmra.mrb[0].mxu0 %v1129
        %v1165 = vpop.f32.mrb[0].mxu0
        %v1166 = vadd.f32 %v1116, %v1165
        %v1167 = vpop.f32.mrb[0].mxu0
        %v1168 = vadd.f32 %v1116, %v1167
        %v1169 = vpop.f32.mrb[0].mxu0
        %v1170 = vadd.f32 %v1121, %v1169
        %v1171 = vpop.f32.mrb[0].mxu0
        %v1172 = vadd.f32 %v1121, %v1171
        %1173 = vdwg.mxu0
        %1174 = vst [vmem:[%s676] sm:$0xff] %v1166
        %1175 = vst [vmem:[%s676 + $0x8] sm:$0xff] %v1168
        %1176 = vst [vmem:[%s676 + $0x10] sm:$0xff] %v1170
        %1177 = vst [vmem:[%s676 + $0x18] sm:$0xff] %v1172
        %v1178 = vld [vmem:[%s688] sm:$0xff]
        %v1179 = vld [vmem:[%s688 + $0x8] sm:$0xff]
        %v1180 = vmul.f32 %v1170, 0.5
        %v1181 = vmul.f32 %v1172, 0.5
        %v1182 = vmul.f32 %v1180, 1.442695
        %v1183 = vpow.pop %v1182
        %v1184 = vmul.f32 %v1181, 1.442695
        %v1185 = vpow.pop %v1184
        %v1186 = vmul.f32 %v1178, %v1183
        %v1187 = vmul.f32 %v1179, %v1185
        %v1188 = vadd.f32 %v1186, %v1166
        %v1189 = vadd.f32 %v1187, %v1168
        %v1190 = vld [vmem:[%s10] sm:$0xf]
        %v1191 = vld [vmem:[%s10 + $0x4] sm:$0xf]
        %v1192 = vld [vmem:[%s10 + $0x8] sm:$0xf]
        %v1193 = vld [vmem:[%s10 + $0xc] sm:$0xf]
        %v1194 = vpack.c.bf16 %v1188, %v1188
        %v1195 = vpack.c.bf16 %v1189, %v1189
        %v1196 = vld [vmem:[%s11] sm:$0xff]
        %v1197 = vld [vmem:[%s11 + $0x8] sm:$0xff]
        %v1198 = vld [vmem:[%s11 + $0x10] sm:$0xff]
        %v1199 = vld [vmem:[%s11 + $0x18] sm:$0xff]
        %1201 = vset.pattern.permute.xlu0 0
        %1202 = vperm.xlu0 %1201, %v1196
        %v1203 = vpop.permute.xlu0 %1202
        %1206 = vset.pattern.permute.xlu0 0
        %1207 = vperm.xlu0 %1206, %v1197
        %v1208 = vpop.permute.xlu0 %1207
        %1211 = vset.pattern.permute.xlu0 0
        %1212 = vperm.xlu0 %1211, %v1198
        %v1213 = vpop.permute.xlu0 %1212
        %1216 = vset.pattern.permute.xlu0 0
        %1217 = vperm.xlu0 %1216, %v1199
        %v1218 = vpop.permute.xlu0 %1217
        %v1224 = vunpack.c.l.b16 %v1190
        %v1225 = vunpack.c.l.b16 %v1191
        %v1226 = vunpack.c.l.b16 %v1192
        %v1227 = vunpack.c.l.b16 %v1193
        %v1228 = vpack.c.b16 %v1225, %v1224
        %v1229 = vpack.c.b16 %v1227, %v1226
        %vm1230 = vcmask 64512
        %v1232 = vsel %vm1230, %v1228, 0
        %v1235 = vsel %vm1230, %v1229, 0
        %vm1237 = vcmask 1043456
        %v1239 = vsel %vm1237, %v1194, 0
        %v1242 = vsel %vm1237, %v1195, 0
        %1244 = vmatprep.subr.bf16.mxu0 %v1242
        %1245 = vmatpush1.bf16.msra.mxu0 %v1239
        %1246 = vmatprep.subr.bf16.mxu0 0
        %1247 = vmatpush1.bf16.msra.mxu0 0
        %1248 = vmatprep.subr.bf16.mxu0 0
        %1249 = vmatpush1.bf16.msra.mxu0 0
        %1250 = vmatprep.subr.bf16.mxu0 0
        %1251 = vmatpush1.bf16.msra.mxu0 0
        %1252 = vmatprep.subr.bf16.mxu0 0
        %1253 = vmatpush1.bf16.msra.mxu0 0
        %1254 = vmatprep.subr.bf16.mxu0 0
        %1255 = vmatpush1.bf16.msra.mxu0 0
        %1256 = vmatprep.subr.bf16.mxu0 0
        %1257 = vmatpush1.bf16.msra.mxu0 0
        %1258 = vmatprep.subr.bf16.mxu0 0
        %1259 = vmatpush1.bf16.msra.mxu0 0
        %1260 = vmatprep.subr.bf16.mxu0 0
        %1261 = vmatpush1.bf16.msra.mxu0 0
        %1262 = vmatprep.subr.bf16.mxu0 0
        %1263 = vmatpush1.bf16.msra.mxu0 0
        %1264 = vmatprep.subr.bf16.mxu0 0
        %1265 = vmatpush1.bf16.msra.mxu0 0
        %1266 = vmatprep.subr.bf16.mxu0 0
        %1267 = vmatpush1.bf16.msra.mxu0 0
        %1268 = vmatprep.subr.bf16.mxu0 0
        %1269 = vmatpush1.bf16.msra.mxu0 0
        %1270 = vmatprep.subr.bf16.mxu0 0
        %1271 = vmatpush1.bf16.msra.mxu0 0
        %1272 = vmatprep.subr.bf16.mxu0 0
        %1273 = vmatpush1.bf16.msra.mxu0 0
        %1274 = vmatprep.subr.bf16.mxu0 0
        %1275 = vmatpush1.bf16.msra.mxu0 0
        %1276 = vmatprep.mubr.bf16.mxu0 0
        %1277 = vmatmul.mubr.bf16.gmra.mrb[0].mxu0 %v1232
        %v1278 = vpop.f32.mrb[0].mxu0
        %v1279 = vadd.f32 %v1203, %v1278
        %v1280 = vpop.f32.mrb[0].mxu0
        %v1281 = vadd.f32 %v1203, %v1280
        %v1282 = vpop.f32.mrb[0].mxu0
        %v1283 = vadd.f32 %v1208, %v1282
        %v1284 = vpop.f32.mrb[0].mxu0
        %v1285 = vadd.f32 %v1208, %v1284
        %1286 = vmatprep.mubr.bf16.mxu0 0
        %1287 = vmatmul.mubr.bf16.gmra.mrb[0].mxu0 %v1235
        %v1288 = vpop.f32.mrb[0].mxu0
        %v1289 = vadd.f32 %v1213, %v1288
        %v1290 = vpop.f32.mrb[0].mxu0
        %v1291 = vadd.f32 %v1213, %v1290
        %v1292 = vpop.f32.mrb[0].mxu0
        %v1293 = vadd.f32 %v1218, %v1292
        %v1294 = vpop.f32.mrb[0].mxu0
        %v1295 = vadd.f32 %v1218, %v1294
        %1296 = vdwg.mxu0
        %v1297 = vmax.f32 %v1279, 0.0
        %v1298 = vmax.f32 %v1281, 0.0
        %v1299 = vmax.f32 %v1283, 0.0
        %v1300 = vmax.f32 %v1285, 0.0
        %v1301 = vmax.f32 %v1289, 0.0
        %v1302 = vmax.f32 %v1291, 0.0
        %v1303 = vmax.f32 %v1293, 0.0
        %v1304 = vmax.f32 %v1295, 0.0
        %v1305 = vld [vmem:[%s12] sm:$0xf]
        %v1306 = vld [vmem:[%s12 + $0x4] sm:$0xf]
        %v1307 = vld [vmem:[%s12 + $0x8] sm:$0xf]
        %v1308 = vld [vmem:[%s12 + $0xc] sm:$0xf]
        %v1309 = vpack.c.bf16 %v1299, %v1297
        %v1310 = vpack.c.bf16 %v1300, %v1298
        %v1311 = vpack.c.bf16 %v1303, %v1301
        %v1312 = vpack.c.bf16 %v1304, %v1302
        %v1313 = vld [vmem:[%s13] sm:$0xff]
        %v1314 = vld [vmem:[%s13 + $0x8] sm:$0xff]
        %v1315 = vld [vmem:[%s13 + $0x10] sm:$0xff]
        %v1316 = vld [vmem:[%s13 + $0x18] sm:$0xff]
        %1318 = vset.pattern.permute.xlu0 0
        %1319 = vperm.xlu0 %1318, %v1313
        %v1320 = vpop.permute.xlu0 %1319
        %1323 = vset.pattern.permute.xlu0 0
        %1324 = vperm.xlu0 %1323, %v1314
        %v1325 = vpop.permute.xlu0 %1324
        %1328 = vset.pattern.permute.xlu0 0
        %1329 = vperm.xlu0 %1328, %v1315
        %v1330 = vpop.permute.xlu0 %1329
        %1333 = vset.pattern.permute.xlu0 0
        %1334 = vperm.xlu0 %1333, %v1316
        %v1335 = vpop.permute.xlu0 %1334
        %v1341 = vunpack.c.l.b16 %v1305
        %v1342 = vunpack.c.l.b16 %v1306
        %v1343 = vunpack.c.l.b16 %v1307
        %v1344 = vunpack.c.l.b16 %v1308
        %v1345 = vpack.c.b16 %v1342, %v1341
        %v1346 = vpack.c.b16 %v1344, %v1343
        %v1348 = vsel %vm1037, %v1345, 0
        %v1351 = vsel %vm1037, %v1346, 0
        %1353 = vmatprep.subr.bf16.mxu0 %v1310
        %1354 = vmatpush1.bf16.msra.mxu0 %v1309
        %1355 = vmatprep.subr.bf16.mxu0 %v1312
        %1356 = vmatpush1.bf16.msra.mxu0 %v1311
        %1357 = vmatprep.subr.bf16.mxu0 0
        %1358 = vmatpush1.bf16.msra.mxu0 0
        %1359 = vmatprep.subr.bf16.mxu0 0
        %1360 = vmatpush1.bf16.msra.mxu0 0
        %1361 = vmatprep.subr.bf16.mxu0 0
        %1362 = vmatpush1.bf16.msra.mxu0 0
        %1363 = vmatprep.subr.bf16.mxu0 0
        %1364 = vmatpush1.bf16.msra.mxu0 0
        %1365 = vmatprep.subr.bf16.mxu0 0
        %1366 = vmatpush1.bf16.msra.mxu0 0
        %1367 = vmatprep.subr.bf16.mxu0 0
        %1368 = vmatpush1.bf16.msra.mxu0 0
        %1369 = vmatprep.subr.bf16.mxu0 0
        %1370 = vmatpush1.bf16.msra.mxu0 0
        %1371 = vmatprep.subr.bf16.mxu0 0
        %1372 = vmatpush1.bf16.msra.mxu0 0
        %1373 = vmatprep.subr.bf16.mxu0 0
        %1374 = vmatpush1.bf16.msra.mxu0 0
        %1375 = vmatprep.subr.bf16.mxu0 0
        %1376 = vmatpush1.bf16.msra.mxu0 0
        %1377 = vmatprep.subr.bf16.mxu0 0
        %1378 = vmatpush1.bf16.msra.mxu0 0
        %1379 = vmatprep.subr.bf16.mxu0 0
        %1380 = vmatpush1.bf16.msra.mxu0 0
        %1381 = vmatprep.subr.bf16.mxu0 0
        %1382 = vmatpush1.bf16.msra.mxu0 0
        %1383 = vmatprep.subr.bf16.mxu0 0
        %1384 = vmatpush1.bf16.msra.mxu0 0
        %1385 = vmatprep.mubr.bf16.mxu0 0
        %1386 = vmatmul.mubr.bf16.gmra.mrb[0].mxu0 %v1348
        %v1387 = vpop.f32.mrb[0].mxu0
        %v1388 = vadd.f32 %v1320, %v1387
        %v1389 = vpop.f32.mrb[0].mxu0
        %v1390 = vadd.f32 %v1320, %v1389
        %v1391 = vpop.f32.mrb[0].mxu0
        %v1392 = vadd.f32 %v1325, %v1391
        %v1393 = vpop.f32.mrb[0].mxu0
        %v1394 = vadd.f32 %v1325, %v1393
        %1395 = vmatprep.mubr.bf16.mxu0 0
        %1396 = vmatmul.mubr.bf16.gmra.mrb[0].mxu0 %v1351
        %v1397 = vpop.f32.mrb[0].mxu0
        %v1398 = vadd.f32 %v1330, %v1397
        %v1399 = vpop.f32.mrb[0].mxu0
        %v1400 = vadd.f32 %v1330, %v1399
        %v1401 = vpop.f32.mrb[0].mxu0
        %v1402 = vadd.f32 %v1335, %v1401
        %v1403 = vpop.f32.mrb[0].mxu0
        %v1404 = vadd.f32 %v1335, %v1403
        %1405 = vdwg.mxu0
        %v1406 = vmax.f32 %v1388, 0.0
        %v1407 = vmax.f32 %v1390, 0.0
        %v1408 = vmax.f32 %v1392, 0.0
        %v1409 = vmax.f32 %v1394, 0.0
        %v1410 = vmax.f32 %v1398, 0.0
        %v1411 = vmax.f32 %v1400, 0.0
        %v1412 = vmax.f32 %v1402, 0.0
        %v1413 = vmax.f32 %v1404, 0.0
        %v1414 = vld [vmem:[%s14] sm:$0xf]
        %v1415 = vld [vmem:[%s14 + $0x4] sm:$0xf]
        %v1416 = vld [vmem:[%s14 + $0x8] sm:$0xf]
        %v1417 = vld [vmem:[%s14 + $0xc] sm:$0xf]
        %v1418 = vld [vmem:[%s14 + $0x10] sm:$0xf]
        %v1419 = vld [vmem:[%s14 + $0x14] sm:$0xf]
        %v1420 = vpack.c.bf16 %v1408, %v1406
        %v1421 = vpack.c.bf16 %v1409, %v1407
        %v1422 = vpack.c.bf16 %v1412, %v1410
        %v1423 = vpack.c.bf16 %v1413, %v1411
        %v1424 = vld [vmem:[%s15] sm:$0xff]
        %v1425 = vld [vmem:[%s15 + $0x8] sm:$0xff]
        %v1426 = vld [vmem:[%s15 + $0x10] sm:$0xff]
        %v1427 = vld [vmem:[%s15 + $0x18] sm:$0xff]
        %v1428 = vld [vmem:[%s15 + $0x20] sm:$0xff]
        %v1429 = vld [vmem:[%s15 + $0x28] sm:$0xff]
        %1431 = vset.pattern.permute.xlu0 0
        %1432 = vperm.xlu0 %1431, %v1424
        %v1433 = vpop.permute.xlu0 %1432
        %1436 = vset.pattern.permute.xlu0 0
        %1437 = vperm.xlu0 %1436, %v1425
        %v1438 = vpop.permute.xlu0 %1437
        %1441 = vset.pattern.permute.xlu0 0
        %1442 = vperm.xlu0 %1441, %v1426
        %v1443 = vpop.permute.xlu0 %1442
        %1446 = vset.pattern.permute.xlu0 0
        %1447 = vperm.xlu0 %1446, %v1427
        %v1448 = vpop.permute.xlu0 %1447
        %1451 = vset.pattern.permute.xlu0 0
        %1452 = vperm.xlu0 %1451, %v1428
        %v1453 = vpop.permute.xlu0 %1452
        %1456 = vset.pattern.permute.xlu0 0
        %1457 = vperm.xlu0 %1456, %v1429
        %v1458 = vpop.permute.xlu0 %1457
        %v1466 = vunpack.c.l.b16 %v1414
        %v1467 = vunpack.c.l.b16 %v1415
        %v1468 = vunpack.c.l.b16 %v1416
        %v1469 = vunpack.c.l.b16 %v1417
        %v1470 = vunpack.c.l.b16 %v1418
        %v1471 = vunpack.c.l.b16 %v1419
        %v1472 = vpack.c.b16 %v1467, %v1466
        %v1473 = vpack.c.b16 %v1469, %v1468
        %v1474 = vpack.c.b16 %v1471, %v1470
        %v1476 = vsel %vm1037, %v1472, 0
        %v1479 = vsel %vm1037, %v1473, 0
        %v1482 = vsel %vm1037, %v1474, 0
        %1484 = vmatprep.subr.bf16.mxu0 %v1421
        %1485 = vmatpush1.bf16.msra.mxu0 %v1420
        %1486 = vmatprep.subr.bf16.mxu0 %v1423
        %1487 = vmatpush1.bf16.msra.mxu0 %v1422
        %1488 = vmatprep.subr.bf16.mxu0 0
        %1489 = vmatpush1.bf16.msra.mxu0 0
        %1490 = vmatprep.subr.bf16.mxu0 0
        %1491 = vmatpush1.bf16.msra.mxu0 0
        %1492 = vmatprep.subr.bf16.mxu0 0
        %1493 = vmatpush1.bf16.msra.mxu0 0
        %1494 = vmatprep.subr.bf16.mxu0 0
        %1495 = vmatpush1.bf16.msra.mxu0 0
        %1496 = vmatprep.subr.bf16.mxu0 0
        %1497 = vmatpush1.bf16.msra.mxu0 0
        %1498 = vmatprep.subr.bf16.mxu0 0
        %1499 = vmatpush1.bf16.msra.mxu0 0
        %1500 = vmatprep.subr.bf16.mxu0 0
        %1501 = vmatpush1.bf16.msra.mxu0 0
        %1502 = vmatprep.subr.bf16.mxu0 0
        %1503 = vmatpush1.bf16.msra.mxu0 0
        %1504 = vmatprep.subr.bf16.mxu0 0
        %1505 = vmatpush1.bf16.msra.mxu0 0
        %1506 = vmatprep.subr.bf16.mxu0 0
        %1507 = vmatpush1.bf16.msra.mxu0 0
        %1508 = vmatprep.subr.bf16.mxu0 0
        %1509 = vmatpush1.bf16.msra.mxu0 0
        %1510 = vmatprep.subr.bf16.mxu0 0
        %1511 = vmatpush1.bf16.msra.mxu0 0
        %1512 = vmatprep.subr.bf16.mxu0 0
        %1513 = vmatpush1.bf16.msra.mxu0 0
        %1514 = vmatprep.subr.bf16.mxu0 0
        %1515 = vmatpush1.bf16.msra.mxu0 0
        %1516 = vmatprep.mubr.bf16.mxu0 0
        %1517 = vmatmul.mubr.bf16.gmra.mrb[0].mxu0 %v1476
        %v1518 = vpop.f32.mrb[0].mxu0
        %v1519 = vadd.f32 %v1433, %v1518
        %v1520 = vpop.f32.mrb[0].mxu0
        %v1521 = vadd.f32 %v1433, %v1520
        %v1522 = vpop.f32.mrb[0].mxu0
        %v1523 = vadd.f32 %v1438, %v1522
        %v1524 = vpop.f32.mrb[0].mxu0
        %v1525 = vadd.f32 %v1438, %v1524
        %1526 = vmatprep.mubr.bf16.mxu0 0
        %1527 = vmatmul.mubr.bf16.gmra.mrb[0].mxu0 %v1479
        %v1528 = vpop.f32.mrb[0].mxu0
        %v1529 = vadd.f32 %v1443, %v1528
        %v1530 = vpop.f32.mrb[0].mxu0
        %v1531 = vadd.f32 %v1443, %v1530
        %v1532 = vpop.f32.mrb[0].mxu0
        %v1533 = vadd.f32 %v1448, %v1532
        %v1534 = vpop.f32.mrb[0].mxu0
        %v1535 = vadd.f32 %v1448, %v1534
        %1536 = vmatprep.mubr.bf16.mxu0 0
        %1537 = vmatmul.mubr.bf16.gmra.mrb[0].mxu0 %v1482
        %v1538 = vpop.f32.mrb[0].mxu0
        %v1539 = vadd.f32 %v1453, %v1538
        %v1540 = vpop.f32.mrb[0].mxu0
        %v1541 = vadd.f32 %v1453, %v1540
        %v1542 = vpop.f32.mrb[0].mxu0
        %v1543 = vadd.f32 %v1458, %v1542
        %v1544 = vpop.f32.mrb[0].mxu0
        %v1545 = vadd.f32 %v1458, %v1544
        %1546 = vdwg.mxu0
        %v1547 = vmax.f32 %v1519, 0.0
        %v1548 = vmax.f32 %v1521, 0.0
        %v1549 = vmax.f32 %v1523, 0.0
        %v1550 = vmax.f32 %v1525, 0.0
        %v1551 = vmax.f32 %v1529, 0.0
        %v1552 = vmax.f32 %v1531, 0.0
        %v1553 = vmax.f32 %v1533, 0.0
        %v1554 = vmax.f32 %v1535, 0.0
        %v1555 = vmax.f32 %v1539, 0.0
        %v1556 = vmax.f32 %v1541, 0.0
        %v1557 = vmax.f32 %v1543, 0.0
        %v1558 = vmax.f32 %v1545, 0.0
        %v1559 = vld [vmem:[%s16] sm:$0xf]
        %v1560 = vld [vmem:[%s16 + $0x4] sm:$0xf]
        %v1561 = vld [vmem:[%s16 + $0x8] sm:$0xf]
        %v1562 = vld [vmem:[%s16 + $0xc] sm:$0xf]
        %v1563 = vld [vmem:[%s16 + $0x10] sm:$0xf]
        %v1564 = vld [vmem:[%s16 + $0x14] sm:$0xf]
        %v1565 = vld [vmem:[%s16 + $0x18] sm:$0xf]
        %v1566 = vld [vmem:[%s16 + $0x1c] sm:$0xf]
        %v1567 = vpack.c.bf16 %v1549, %v1547
        %v1568 = vpack.c.bf16 %v1550, %v1548
        %v1569 = vpack.c.bf16 %v1553, %v1551
        %v1570 = vpack.c.bf16 %v1554, %v1552
        %v1571 = vpack.c.bf16 %v1557, %v1555
        %v1572 = vpack.c.bf16 %v1558, %v1556
        %v1573 = vld [vmem:[%s17] sm:$0xff]
        %v1574 = vld [vmem:[%s17 + $0x8] sm:$0xff]
        %v1575 = vld [vmem:[%s17 + $0x10] sm:$0xff]
        %v1576 = vld [vmem:[%s17 + $0x18] sm:$0xff]
        %v1577 = vld [vmem:[%s17 + $0x20] sm:$0xff]
        %v1578 = vld [vmem:[%s17 + $0x28] sm:$0xff]
        %v1579 = vld [vmem:[%s17 + $0x30] sm:$0xff]
        %v1580 = vld [vmem:[%s17 + $0x38] sm:$0xff]
        %1582 = vset.pattern.permute.xlu0 0
        %1583 = vperm.xlu0 %1582, %v1573
        %v1584 = vpop.permute.xlu0 %1583
        %1587 = vset.pattern.permute.xlu0 0
        %1588 = vperm.xlu0 %1587, %v1574
        %v1589 = vpop.permute.xlu0 %1588
        %1592 = vset.pattern.permute.xlu0 0
        %1593 = vperm.xlu0 %1592, %v1575
        %v1594 = vpop.permute.xlu0 %1593
        %1597 = vset.pattern.permute.xlu0 0
        %1598 = vperm.xlu0 %1597, %v1576
        %v1599 = vpop.permute.xlu0 %1598
        %1602 = vset.pattern.permute.xlu0 0
        %1603 = vperm.xlu0 %1602, %v1577
        %v1604 = vpop.permute.xlu0 %1603
        %1607 = vset.pattern.permute.xlu0 0
        %1608 = vperm.xlu0 %1607, %v1578
        %v1609 = vpop.permute.xlu0 %1608
        %1612 = vset.pattern.permute.xlu0 0
        %1613 = vperm.xlu0 %1612, %v1579
        %v1614 = vpop.permute.xlu0 %1613
        %1617 = vset.pattern.permute.xlu0 0
        %1618 = vperm.xlu0 %1617, %v1580
        %v1619 = vpop.permute.xlu0 %1618
        %v1629 = vunpack.c.l.b16 %v1559
        %v1630 = vunpack.c.l.b16 %v1560
        %v1631 = vunpack.c.l.b16 %v1561
        %v1632 = vunpack.c.l.b16 %v1562
        %v1633 = vunpack.c.l.b16 %v1563
        %v1634 = vunpack.c.l.b16 %v1564
        %v1635 = vunpack.c.l.b16 %v1565
        %v1636 = vunpack.c.l.b16 %v1566
        %v1637 = vpack.c.b16 %v1630, %v1629
        %v1638 = vpack.c.b16 %v1632, %v1631
        %v1639 = vpack.c.b16 %v1634, %v1633
        %v1640 = vpack.c.b16 %v1636, %v1635
        %v1642 = vsel %vm927, %v1637, 0
        %v1645 = vsel %vm927, %v1638, 0
        %v1648 = vsel %vm927, %v1639, 0
        %v1651 = vsel %vm927, %v1640, 0
        %1653 = vmatprep.subr.bf16.mxu0 %v1568
        %1654 = vmatpush1.bf16.msra.mxu0 %v1567
        %1655 = vmatprep.subr.bf16.mxu0 %v1570
        %1656 = vmatpush1.bf16.msra.mxu0 %v1569
        %1657 = vmatprep.subr.bf16.mxu0 %v1572
        %1658 = vmatpush1.bf16.msra.mxu0 %v1571
        %1659 = vmatprep.subr.bf16.mxu0 0
        %1660 = vmatpush1.bf16.msra.mxu0 0
        %1661 = vmatprep.subr.bf16.mxu0 0
        %1662 = vmatpush1.bf16.msra.mxu0 0
        %1663 = vmatprep.subr.bf16.mxu0 0
        %1664 = vmatpush1.bf16.msra.mxu0 0
        %1665 = vmatprep.subr.bf16.mxu0 0
        %1666 = vmatpush1.bf16.msra.mxu0 0
        %1667 = vmatprep.subr.bf16.mxu0 0
        %1668 = vmatpush1.bf16.msra.mxu0 0
        %1669 = vmatprep.subr.bf16.mxu0 0
        %1670 = vmatpush1.bf16.msra.mxu0 0
        %1671 = vmatprep.subr.bf16.mxu0 0
        %1672 = vmatpush1.bf16.msra.mxu0 0
        %1673 = vmatprep.subr.bf16.mxu0 0
        %1674 = vmatpush1.bf16.msra.mxu0 0
        %1675 = vmatprep.subr.bf16.mxu0 0
        %1676 = vmatpush1.bf16.msra.mxu0 0
        %1677 = vmatprep.subr.bf16.mxu0 0
        %1678 = vmatpush1.bf16.msra.mxu0 0
        %1679 = vmatprep.subr.bf16.mxu0 0
        %1680 = vmatpush1.bf16.msra.mxu0 0
        %1681 = vmatprep.subr.bf16.mxu0 0
        %1682 = vmatpush1.bf16.msra.mxu0 0
        %1683 = vmatprep.subr.bf16.mxu0 0
        %1684 = vmatpush1.bf16.msra.mxu0 0
        %1685 = vmatprep.mubr.bf16.mxu0 0
        %1686 = vmatmul.mubr.bf16.gmra.mrb[0].mxu0 %v1642
        %v1687 = vpop.f32.mrb[0].mxu0
        %v1688 = vadd.f32 %v1584, %v1687
        %v1689 = vpop.f32.mrb[0].mxu0
        %v1690 = vadd.f32 %v1584, %v1689
        %v1691 = vpop.f32.mrb[0].mxu0
        %v1692 = vadd.f32 %v1589, %v1691
        %v1693 = vpop.f32.mrb[0].mxu0
        %v1694 = vadd.f32 %v1589, %v1693
        %1695 = vmatprep.mubr.bf16.mxu0 0
        %1696 = vmatmul.mubr.bf16.gmra.mrb[0].mxu0 %v1645
        %v1697 = vpop.f32.mrb[0].mxu0
        %v1698 = vadd.f32 %v1594, %v1697
        %v1699 = vpop.f32.mrb[0].mxu0
        %v1700 = vadd.f32 %v1594, %v1699
        %v1701 = vpop.f32.mrb[0].mxu0
        %v1702 = vadd.f32 %v1599, %v1701
        %v1703 = vpop.f32.mrb[0].mxu0
        %v1704 = vadd.f32 %v1599, %v1703
        %1705 = vmatprep.mubr.bf16.mxu0 0
        %1706 = vmatmul.mubr.bf16.gmra.mrb[0].mxu0 %v1648
        %v1707 = vpop.f32.mrb[0].mxu0
        %v1708 = vadd.f32 %v1604, %v1707
        %v1709 = vpop.f32.mrb[0].mxu0
        %v1710 = vadd.f32 %v1604, %v1709
        %v1711 = vpop.f32.mrb[0].mxu0
        %v1712 = vadd.f32 %v1609, %v1711
        %v1713 = vpop.f32.mrb[0].mxu0
        %v1714 = vadd.f32 %v1609, %v1713
        %1715 = vmatprep.mubr.bf16.mxu0 0
        %1716 = vmatmul.mubr.bf16.gmra.mrb[0].mxu0 %v1651
        %v1717 = vpop.f32.mrb[0].mxu0
        %v1718 = vadd.f32 %v1614, %v1717
        %v1719 = vpop.f32.mrb[0].mxu0
        %v1720 = vadd.f32 %v1614, %v1719
        %v1721 = vpop.f32.mrb[0].mxu0
        %v1722 = vadd.f32 %v1619, %v1721
        %v1723 = vpop.f32.mrb[0].mxu0
        %v1724 = vadd.f32 %v1619, %v1723
        %1725 = vdwg.mxu0
        %1726 = vst [vmem:[%s682] sm:$0xff] %v1688
        %1727 = vst [vmem:[%s682 + $0x8] sm:$0xff] %v1690
        %1728 = vst [vmem:[%s682 + $0x10] sm:$0xff] %v1692
        %1729 = vst [vmem:[%s682 + $0x18] sm:$0xff] %v1694
        %1730 = vst [vmem:[%s682 + $0x20] sm:$0xff] %v1698
        %1731 = vst [vmem:[%s682 + $0x28] sm:$0xff] %v1700
        %1732 = vst [vmem:[%s682 + $0x30] sm:$0xff] %v1702
        %1733 = vst [vmem:[%s682 + $0x38] sm:$0xff] %v1704
        %1734 = vst [vmem:[%s682 + $0x40] sm:$0xff] %v1708
        %1735 = vst [vmem:[%s682 + $0x48] sm:$0xff] %v1710
        %1736 = vst [vmem:[%s682 + $0x50] sm:$0xff] %v1712
        %1737 = vst [vmem:[%s682 + $0x58] sm:$0xff] %v1714
        %1738 = vst [vmem:[%s682 + $0x60] sm:$0xff] %v1718
        %1739 = vst [vmem:[%s682 + $0x68] sm:$0xff] %v1720
        %1740 = vst [vmem:[%s682 + $0x70] sm:$0xff] %v1722
        %1741 = vst [vmem:[%s682 + $0x78] sm:$0xff] %v1724
        %s1742 = sand.u32 %s427, 1
        %s1743 = sand.u32 %s427, 1
        %s1744 = smul.addr %s1743, 32
        %s1745 = scalar_lea.vmem [#allocation3], %s1744
        %s1746 = sand.u32 %s453, 1
        %s1747 = sand.u32 %s453, 1
        %s1748 = smul.addr %s1747, 128
        %s1749 = scalar_lea.vmem [#allocation4], %s1748
        // Predicated region
        $region131: #{vae_forward.1} parent=125 // pred_check
          %p1750 = pneg %p437
        $region132: #{vae_forward.1} parent=125 // pred_check_branch
          %1752 = sbr.rel (%p1750) target = $region134
        $region133: #{vae_forward.1} parent=125 // pred_region
          %s1753 = smul.u32 2, %s31
          %s1754 = smul.addr %s1753, 8
          %s1755 = scalar_lea.vmem %s18, %s1754
          // Predicated region
          $region135: #{vae_forward.1} parent=133 // pred_check
            _
          $region136: #{vae_forward.1} parent=133 // pred_check_branch
            %1757 = sbr.rel (0) target = $region138
          $region137: #{vae_forward.1} parent=133 // pred_region
            // Predicated region
            $region139: #{vae_forward.1} parent=137 // pred_check
              _
            $region140: #{vae_forward.1} parent=137 // pred_check_branch
              %1759 = sbr.rel (0) target = $region142
            $region141: #{vae_forward.1} parent=137 // pred_region
              loop: start=0, step=1, limit=1
              $region143: #{vae_forward.1} parent=141 // loop_pre_header
                _
              $region144: #{vae_forward.1} parent=141 // loop_header
                %s1761 = sphi 0, %s1765
                %p1762 = scmp.ge.s32.totalorder %s1761, 1
                %s1766 = sphi %s1745, %s1745
                %s1767 = sphi %s1755, %s1755
              $region145: #{vae_forward.1} parent=141 // loop_header_branch
                %1764 = sbr.rel (%p1762) target = $region149
              $region146: #{vae_forward.1} parent=141 // loop_body
                %v1768 = vld [vmem:[%s1766] sm:$0xff]
                %1769 = vst [vmem:[%s1767] sm:$0xff] %v1768
                %v1770 = vld [vmem:[%s1766 + $0x8] sm:$0xff]
                %1771 = vst [vmem:[%s1767 + $0x8] sm:$0xff] %v1770
                %v1772 = vld [vmem:[%s1766 + $0x10] sm:$0xff]
                %1773 = vst [vmem:[%s1767 + $0x20] sm:$0xff] %v1772
                %v1774 = vld [vmem:[%s1766 + $0x18] sm:$0xff]
                %1775 = vst [vmem:[%s1767 + $0x28] sm:$0xff] %v1774
              $region147: #{vae_forward.1} parent=141 // loop_footer
                %s1765 = sadd.s32 1, %s1761
              $region148: #{vae_forward.1} parent=141 // loop_footer_branch
                %1760 = sbr.rel target = $region144
              $region149: #{vae_forward.1} parent=141 // loop_exit
                _
            $region142: #{vae_forward.1} parent=137 // pred_fallthru
              _
            // Predicated region
            $region150: #{vae_forward.1} parent=137 // pred_check
              _
            $region151: #{vae_forward.1} parent=137 // pred_check_branch
              %1777 = sbr.rel target = $region153
            $region152: #{vae_forward.1} parent=137 // pred_region
              _
            $region153: #{vae_forward.1} parent=137 // pred_fallthru
              _
          $region138: #{vae_forward.1} parent=133 // pred_fallthru
            _
          %1778 = vnop
        $region134: #{vae_forward.1} parent=125 // pred_fallthru
          _
        // Predicated region
        $region154: #{vae_forward.1} parent=125 // pred_check
          %p1779 = pneg %p463
        $region155: #{vae_forward.1} parent=125 // pred_check_branch
          %1781 = sbr.rel (%p1779) target = $region157
        $region156: #{vae_forward.1} parent=125 // pred_region
          %s1782 = smul.u32 2, %s31
          %s1783 = smul.addr %s1782, 8
          %s1784 = scalar_lea.vmem %s19, %s1783
          // Predicated region
          $region158: #{vae_forward.1} parent=156 // pred_check
            _
          $region159: #{vae_forward.1} parent=156 // pred_check_branch
            %1786 = sbr.rel (0) target = $region161
          $region160: #{vae_forward.1} parent=156 // pred_region
            // Predicated region
            $region162: #{vae_forward.1} parent=160 // pred_check
              _
            $region163: #{vae_forward.1} parent=160 // pred_check_branch
              %1788 = sbr.rel (0) target = $region165
            $region164: #{vae_forward.1} parent=160 // pred_region
              loop: start=0, step=1, limit=1
              $region166: #{vae_forward.1} parent=164 // loop_pre_header
                _
              $region167: #{vae_forward.1} parent=164 // loop_header
                %s1790 = sphi 0, %s1794
                %p1791 = scmp.ge.s32.totalorder %s1790, 1
                %s1795 = sphi %s1749, %s1749
                %s1796 = sphi %s1784, %s1784
              $region168: #{vae_forward.1} parent=164 // loop_header_branch
                %1793 = sbr.rel (%p1791) target = $region172
              $region169: #{vae_forward.1} parent=164 // loop_body
                %v1797 = vld [vmem:[%s1795] sm:$0xff]
                %1798 = vst [vmem:[%s1796] sm:$0xff] %v1797
                %v1799 = vld [vmem:[%s1795 + $0x8] sm:$0xff]
                %1800 = vst [vmem:[%s1796 + $0x8] sm:$0xff] %v1799
                %v1801 = vld [vmem:[%s1795 + $0x10] sm:$0xff]
                %1802 = vst [vmem:[%s1796 + $0x20] sm:$0xff] %v1801
                %v1803 = vld [vmem:[%s1795 + $0x18] sm:$0xff]
                %1804 = vst [vmem:[%s1796 + $0x28] sm:$0xff] %v1803
                %v1805 = vld [vmem:[%s1795 + $0x20] sm:$0xff]
                %1806 = vst [vmem:[%s1796 + $0x40] sm:$0xff] %v1805
                %v1807 = vld [vmem:[%s1795 + $0x28] sm:$0xff]
                %1808 = vst [vmem:[%s1796 + $0x48] sm:$0xff] %v1807
                %v1809 = vld [vmem:[%s1795 + $0x30] sm:$0xff]
                %1810 = vst [vmem:[%s1796 + $0x60] sm:$0xff] %v1809
                %v1811 = vld [vmem:[%s1795 + $0x38] sm:$0xff]
                %1812 = vst [vmem:[%s1796 + $0x68] sm:$0xff] %v1811
                %v1813 = vld [vmem:[%s1795 + $0x40] sm:$0xff]
                %1814 = vst [vmem:[%s1796 + $0x80] sm:$0xff] %v1813
                %v1815 = vld [vmem:[%s1795 + $0x48] sm:$0xff]
                %1816 = vst [vmem:[%s1796 + $0x88] sm:$0xff] %v1815
                %v1817 = vld [vmem:[%s1795 + $0x50] sm:$0xff]
                %1818 = vst [vmem:[%s1796 + $0xa0] sm:$0xff] %v1817
                %v1819 = vld [vmem:[%s1795 + $0x58] sm:$0xff]
                %1820 = vst [vmem:[%s1796 + $0xa8] sm:$0xff] %v1819
                %v1821 = vld [vmem:[%s1795 + $0x60] sm:$0xff]
                %1822 = vst [vmem:[%s1796 + $0xc0] sm:$0xff] %v1821
                %v1823 = vld [vmem:[%s1795 + $0x68] sm:$0xff]
                %1824 = vst [vmem:[%s1796 + $0xc8] sm:$0xff] %v1823
                %v1825 = vld [vmem:[%s1795 + $0x70] sm:$0xff]
                %1826 = vst [vmem:[%s1796 + $0xe0] sm:$0xff] %v1825
                %v1827 = vld [vmem:[%s1795 + $0x78] sm:$0xff]
                %1828 = vst [vmem:[%s1796 + $0xe8] sm:$0xff] %v1827
              $region170: #{vae_forward.1} parent=164 // loop_footer
                %s1794 = sadd.s32 1, %s1790
              $region171: #{vae_forward.1} parent=164 // loop_footer_branch
                %1789 = sbr.rel target = $region167
              $region172: #{vae_forward.1} parent=164 // loop_exit
                _
            $region165: #{vae_forward.1} parent=160 // pred_fallthru
              _
            // Predicated region
            $region173: #{vae_forward.1} parent=160 // pred_check
              _
            $region174: #{vae_forward.1} parent=160 // pred_check_branch
              %1830 = sbr.rel target = $region176
            $region175: #{vae_forward.1} parent=160 // pred_region
              _
            $region176: #{vae_forward.1} parent=160 // pred_fallthru
              _
          $region161: #{vae_forward.1} parent=156 // pred_fallthru
            _
          %1831 = vnop
        $region157: #{vae_forward.1} parent=125 // pred_fallthru
          _
      $region126: #{vae_forward.1} parent=5 // pred_fallthru
        _
      %p1832 = scmp.le.s32.totalorder 2, %s26
      // Predicated region
      $region177: #{vae_forward.1} parent=5 // pred_check
        %p1833 = pneg %p1832
      $region178: #{vae_forward.1} parent=5 // pred_check_branch
        %1835 = sbr.rel (%p1833) target = $region180
      $region179: #{vae_forward.1} parent=5 // pred_region
        %s1836 = ssub.s32 %s26, 2
        // Predicated region
        $region181: #{vae_forward.1} parent=179 // pred_check
          %p1837 = pneg %p443
        $region182: #{vae_forward.1} parent=179 // pred_check_branch
          %1839 = sbr.rel (%p1837) target = $region184
        $region183: #{vae_forward.1} parent=179 // pred_region
          %s1840 = sand.u32 %s428, 1
          %s1841 = sand.u32 %s428, 1
          %s1842 = smul.addr %s1841, 32
          %s1843 = scalar_lea.vmem [#allocation3], %s1842
        $region184: #{vae_forward.1} parent=179 // pred_fallthru
          _
        // Predicated region
        $region185: #{vae_forward.1} parent=179 // pred_check
          %p1844 = pneg %p469
        $region186: #{vae_forward.1} parent=179 // pred_check_branch
          %1846 = sbr.rel (%p1844) target = $region188
        $region187: #{vae_forward.1} parent=179 // pred_region
          %s1847 = sand.u32 %s454, 1
          %s1848 = sand.u32 %s454, 1
          %s1849 = smul.addr %s1848, 128
          %s1850 = scalar_lea.vmem [#allocation4], %s1849
        $region188: #{vae_forward.1} parent=179 // pred_fallthru
          _
      $region180: #{vae_forward.1} parent=5 // pred_fallthru
        _
    $region6: #{vae_forward.1} parent=1 // loop_footer
      %s30 = sadd.s32 1, %s26
    $region7: #{vae_forward.1} parent=1 // loop_footer_branch
      %25 = sbr.rel target = $region3
    $region8: #{vae_forward.1} parent=1 // loop_exit
      _

// kernel: vae_forward.1
$region0: #{vae_forward.1}
  #allocation0 [shape = 'u32[]', space=smem, size = 0x4, offset = 0x4, fixed_abs, tag = 'smem constant byte address 0x4 - core index']
  #allocation1 [shape = 'u32[144,128]{1,0:T(1,128)}', space=vmem, size = 0x12000, scoped, tag = 'internal scratch']
  %s0 = inlined_call_operand.vmem [shape: bf16[64,512], index: 0, kind: input, shape index: {}]
  %s1 = inlined_call_operand.vmem [shape: f32[8,512], index: 1, kind: input, shape index: {}]
  %s2 = inlined_call_operand.vmem [shape: bf16[48,64], index: 2, kind: input, shape index: {}]
  %s3 = inlined_call_operand.vmem [shape: f32[48,1], index: 3, kind: input, shape index: {}]
  %s4 = inlined_call_operand.vmem [shape: bf16[32,48], index: 4, kind: input, shape index: {}]
  %s5 = inlined_call_operand.vmem [shape: f32[32,1], index: 5, kind: input, shape index: {}]
  %s6 = inlined_call_operand.vmem [shape: bf16[32,32], index: 6, kind: input, shape index: {}]
  %s7 = inlined_call_operand.vmem [shape: f32[32,1], index: 7, kind: input, shape index: {}]
  %s8 = inlined_call_operand.vmem [shape: bf16[16,32], index: 8, kind: input, shape index: {}]
  %s9 = inlined_call_operand.vmem [shape: f32[16,1], index: 9, kind: input, shape index: {}]
  %s10 = inlined_call_operand.vmem [shape: bf16[32,8], index: 10, kind: input, shape index: {}]
  %s11 = inlined_call_operand.vmem [shape: f32[32,1], index: 11, kind: input, shape index: {}]
  %s12 = inlined_call_operand.vmem [shape: bf16[32,32], index: 12, kind: input, shape index: {}]
  %s13 = inlined_call_operand.vmem [shape: f32[32,1], index: 13, kind: input, shape index: {}]
  %s14 = inlined_call_operand.vmem [shape: bf16[48,32], index: 14, kind: input, shape index: {}]
  %s15 = inlined_call_operand.vmem [shape: f32[48,1], index: 15, kind: input, shape index: {}]
  %s16 = inlined_call_operand.vmem [shape: bf16[64,48], index: 16, kind: input, shape index: {}]
  %s17 = inlined_call_operand.vmem [shape: f32[64,1], index: 17, kind: input, shape index: {}]
  %s18 = inlined_call_operand.vmem [shape: f32[16,512], index: 18, kind: output, shape index: {0}]
  %s19 = inlined_call_operand.vmem [shape: f32[64,512], index: 19, kind: output, shape index: {1}]
  %20 = xla_tuple %s18, %s19
  %s21 = sld [smem:[#allocation0]]
  $region189: #{vae_forward.1} parent=0
    _
  %s23 = ssub.s32 1, %s21
  %s24 = scalar_select 0, %s23, %s21
  $region1: #{vae_forward.1} parent=0
    #allocation2 [shape = 'u8[65536]{0}', space=vmem, size = 0x10000, scoped, tag = 'input window, operand 0']
    #allocation3 [shape = 'u8[32768]{0}', space=vmem, size = 0x8000, scoped, tag = 'output window, operand 0']
    #allocation4 [shape = 'u8[131072]{0}', space=vmem, size = 0x20000, scoped, tag = 'output window, operand 1']
    loop: start=0, step=1, limit=4
    $region2: #{vae_forward.1} parent=1 // loop_pre_header
      _
    $region3: #{vae_forward.1} parent=1 // loop_header
      %s26 = sphi 0, %s30
      %p27 = scmp.ge.s32.totalorder %s26, 4
      %s36 = sphi 0, %s38
      %s39 = sphi 0, %s36
      %s40 = sphi 0, %s39
      %s56 = sphi 0, %s40
      %s62 = sphi 0, %s64
      %s65 = sphi 0, %s62
      %s66 = sphi 0, %s65
      %s82 = sphi 0, %s66
      %s86 = sphi 0, %s86
      %s88 = sphi 0, %s86
      %s89 = sphi 0, %s88
      %s103 = sphi 0, %s89
      %s107 = sphi 0, %s107
      %s109 = sphi 0, %s107
      %s110 = sphi 0, %s109
      %s124 = sphi 0, %s110
      %s128 = sphi 0, %s128
      %s130 = sphi 0, %s128
      %s131 = sphi 0, %s130
      %s145 = sphi 0, %s131
      %s149 = sphi 0, %s149
      %s151 = sphi 0, %s149
      %s152 = sphi 0, %s151
      %s166 = sphi 0, %s152
      %s170 = sphi 0, %s170
      %s172 = sphi 0, %s170
      %s173 = sphi 0, %s172
      %s187 = sphi 0, %s173
      %s191 = sphi 0, %s191
      %s193 = sphi 0, %s191
      %s194 = sphi 0, %s193
      %s208 = sphi 0, %s194
      %s212 = sphi 0, %s212
      %s214 = sphi 0, %s212
      %s215 = sphi 0, %s214
      %s229 = sphi 0, %s215
      %s233 = sphi 0, %s233
      %s235 = sphi 0, %s233
      %s236 = sphi 0, %s235
      %s250 = sphi 0, %s236
      %s254 = sphi 0, %s254
      %s256 = sphi 0, %s254
      %s257 = sphi 0, %s256
      %s271 = sphi 0, %s257
      %s275 = sphi 0, %s275
      %s277 = sphi 0, %s275
      %s278 = sphi 0, %s277
      %s292 = sphi 0, %s278
      %s296 = sphi 0, %s296
      %s298 = sphi 0, %s296
      %s299 = sphi 0, %s298
      %s313 = sphi 0, %s299
      %s317 = sphi 0, %s317
      %s319 = sphi 0, %s317
      %s320 = sphi 0, %s319
      %s334 = sphi 0, %s320
      %s338 = sphi 0, %s338
      %s340 = sphi 0, %s338
      %s341 = sphi 0, %s340
      %s355 = sphi 0, %s341
      %s359 = sphi 0, %s359
      %s361 = sphi 0, %s359
      %s362 = sphi 0, %s361
      %s376 = sphi 0, %s362
      %s380 = sphi 0, %s380
      %s382 = sphi 0, %s380
      %s383 = sphi 0, %s382
      %s397 = sphi 0, %s383
      %s401 = sphi 0, %s401
      %s403 = sphi 0, %s401
      %s404 = sphi 0, %s403
      %s418 = sphi 0, %s404
      %s424 = sphi 0, %s426
      %s427 = sphi 0, %s424
      %s428 = sphi 0, %s427
      %s444 = sphi 0, %s428
      %s450 = sphi 0, %s452
      %s453 = sphi 0, %s450
      %s454 = sphi 0, %s453
      %s470 = sphi 0, %s454
    $region4: #{vae_forward.1} parent=1 // loop_header_branch
      %29 = sbr.rel (%p27) target = $region8
    $region5: #{vae_forward.1} parent=1 // loop_body
      %s31 = ssub.s32 %s26, 1
      %s32 = ssub.s32 %s26, 2
      %s33 = sadd.s32 %s26, 1
      %s34 = ssub.s32 %s26, %s33
      %p35 = scmp.eq.s32.totalorder %s34, 0
      %s37 = sadd.s32 %s36, 1
      %s38 = scalar_select %p35, %s36, %s37
      %p41 = pneg %p35
      %p42 = scmp.eq.s32.totalorder %s26, 1
      %p43 = por %p41, %p42
      %p44 = scmp.ne.s32.totalorder %s36, %s39
      %p45 = scmp.eq.s32.totalorder %s26, 0
      %p46 = por %p44, %p45
      %p47 = scmp.ne.s32.totalorder %s36, %s39
      %p48 = scmp.eq.s32.totalorder %s31, 1
      %p49 = por %p47, %p48
      %p50 = scmp.ne.s32.totalorder %s39, %s40
      %p51 = scmp.eq.s32.totalorder %s31, 0
      %p52 = por %p50, %p51
      %p53 = scmp.ne.s32.totalorder %s39, %s40
      %p54 = scmp.eq.s32.totalorder %s32, 1
      %p55 = por %p53, %p54
      %p57 = scmp.ne.s32.totalorder %s40, %s56
      %p58 = scmp.eq.s32.totalorder %s32, 0
      %p59 = por %p57, %p58
      %s60 = ssub.s32 %s26, %s33
      %p61 = scmp.eq.s32.totalorder %s60, 0
      %s63 = sadd.s32 %s62, 1
      %s64 = scalar_select %p61, %s62, %s63
      %p67 = pneg %p61
      %p68 = scmp.eq.s32.totalorder %s26, 1
      %p69 = por %p67, %p68
      %p70 = scmp.ne.s32.totalorder %s62, %s65
      %p71 = scmp.eq.s32.totalorder %s26, 0
      %p72 = por %p70, %p71
      %p73 = scmp.ne.s32.totalorder %s62, %s65
      %p74 = scmp.eq.s32.totalorder %s31, 1
      %p75 = por %p73, %p74
      %p76 = scmp.ne.s32.totalorder %s65, %s66
      %p77 = scmp.eq.s32.totalorder %s31, 0
      %p78 = por %p76, %p77
      %p79 = scmp.ne.s32.totalorder %s65, %s66
      %p80 = scmp.eq.s32.totalorder %s32, 1
      %p81 = por %p79, %p80
      %p83 = scmp.ne.s32.totalorder %s66, %s82
      %p84 = scmp.eq.s32.totalorder %s32, 0
      %p85 = por %p83, %p84
      %s87 = sadd.s32 %s86, 1
      %p90 = scmp.eq.s32.totalorder %s26, 1
      %p91 = scmp.ne.s32.totalorder %s86, %s88
      %p92 = scmp.eq.s32.totalorder %s26, 0
      %p93 = por %p91, %p92
      %p94 = scmp.ne.s32.totalorder %s86, %s88
      %p95 = scmp.eq.s32.totalorder %s31, 1
      %p96 = por %p94, %p95
      %p97 = scmp.ne.s32.totalorder %s88, %s89
      %p98 = scmp.eq.s32.totalorder %s31, 0
      %p99 = por %p97, %p98
      %p100 = scmp.ne.s32.totalorder %s88, %s89
      %p101 = scmp.eq.s32.totalorder %s32, 1
      %p102 = por %p100, %p101
      %p104 = scmp.ne.s32.totalorder %s89, %s103
      %p105 = scmp.eq.s32.totalorder %s32, 0
      %p106 = por %p104, %p105
      %s108 = sadd.s32 %s107, 1
      %p111 = scmp.eq.s32.totalorder %s26, 1
      %p112 = scmp.ne.s32.totalorder %s107, %s109
      %p113 = scmp.eq.s32.totalorder %s26, 0
      %p114 = por %p112, %p113
      %p115 = scmp.ne.s32.totalorder %s107, %s109
      %p116 = scmp.eq.s32.totalorder %s31, 1
      %p117 = por %p115, %p116
      %p118 = scmp.ne.s32.totalorder %s109, %s110
      %p119 = scmp.eq.s32.totalorder %s31, 0
      %p120 = por %p118, %p119
      %p121 = scmp.ne.s32.totalorder %s109, %s110
      %p122 = scmp.eq.s32.totalorder %s32, 1
      %p123 = por %p121, %p122
      %p125 = scmp.ne.s32.totalorder %s110, %s124
      %p126 = scmp.eq.s32.totalorder %s32, 0
      %p127 = por %p125, %p126
      %s129 = sadd.s32 %s128, 1
      %p132 = scmp.eq.s32.totalorder %s26, 1
      %p133 = scmp.ne.s32.totalorder %s128, %s130
      %p134 = scmp.eq.s32.totalorder %s26, 0
      %p135 = por %p133, %p134
      %p136 = scmp.ne.s32.totalorder %s128, %s130
      %p137 = scmp.eq.s32.totalorder %s31, 1
      %p138 = por %p136, %p137
      %p139 = scmp.ne.s32.totalorder %s130, %s131
      %p140 = scmp.eq.s32.totalorder %s31, 0
      %p141 = por %p139, %p140
      %p142 = scmp.ne.s32.totalorder %s130, %s131
      %p143 = scmp.eq.s32.totalorder %s32, 1
      %p144 = por %p142, %p143
      %p146 = scmp.ne.s32.totalorder %s131, %s145
      %p147 = scmp.eq.s32.totalorder %s32, 0
      %p148 = por %p146, %p147
      %s150 = sadd.s32 %s149, 1
      %p153 = scmp.eq.s32.totalorder %s26, 1
      %p154 = scmp.ne.s32.totalorder %s149, %s151
      %p155 = scmp.eq.s32.totalorder %s26, 0
      %p156 = por %p154, %p155
      %p157 = scmp.ne.s32.totalorder %s149, %s151
      %p158 = scmp.eq.s32.totalorder %s31, 1
      %p159 = por %p157, %p158
      %p160 = scmp.ne.s32.totalorder %s151, %s152
      %p161 = scmp.eq.s32.totalorder %s31, 0
      %p162 = por %p160, %p161
      %p163 = scmp.ne.s32.totalorder %s151, %s152
      %p164 = scmp.eq.s32.totalorder %s32, 1
      %p165 = por %p163, %p164
      %p167 = scmp.ne.s32.totalorder %s152, %s166
      %p168 = scmp.eq.s32.totalorder %s32, 0
      %p169 = por %p167, %p168
      %s171 = sadd.s32 %s170, 1
      %p174 = scmp.eq.s32.totalorder %s26, 1
      %p175 = scmp.ne.s32.totalorder %s170, %s172
      %p176 = scmp.eq.s32.totalorder %s26, 0
      %p177 = por %p175, %p176
      %p178 = scmp.ne.s32.totalorder %s170, %s172
      %p179 = scmp.eq.s32.totalorder %s31, 1
      %p180 = por %p178, %p179
      %p181 = scmp.ne.s32.totalorder %s172, %s173
      %p182 = scmp.eq.s32.totalorder %s31, 0
      %p183 = por %p181, %p182
      %p184 = scmp.ne.s32.totalorder %s172, %s173
      %p185 = scmp.eq.s32.totalorder %s32, 1
      %p186 = por %p184, %p185
      %p188 = scmp.ne.s32.totalorder %s173, %s187
      %p189 = scmp.eq.s32.totalorder %s32, 0
      %p190 = por %p188, %p189
      %s192 = sadd.s32 %s191, 1
      %p195 = scmp.eq.s32.totalorder %s26, 1
      %p196 = scmp.ne.s32.totalorder %s191, %s193
      %p197 = scmp.eq.s32.totalorder %s26, 0
      %p198 = por %p196, %p197
      %p199 = scmp.ne.s32.totalorder %s191, %s193
      %p200 = scmp.eq.s32.totalorder %s31, 1
      %p201 = por %p199, %p200
      %p202 = scmp.ne.s32.totalorder %s193, %s194
      %p203 = scmp.eq.s32.totalorder %s31, 0
      %p204 = por %p202, %p203
      %p205 = scmp.ne.s32.totalorder %s193, %s194
      %p206 = scmp.eq.s32.totalorder %s32, 1
      %p207 = por %p205, %p206
      %p209 = scmp.ne.s32.totalorder %s194, %s208
      %p210 = scmp.eq.s32.totalorder %s32, 0
      %p211 = por %p209, %p210
      %s213 = sadd.s32 %s212, 1
      %p216 = scmp.eq.s32.totalorder %s26, 1
      %p217 = scmp.ne.s32.totalorder %s212, %s214
      %p218 = scmp.eq.s32.totalorder %s26, 0
      %p219 = por %p217, %p218
      %p220 = scmp.ne.s32.totalorder %s212, %s214
      %p221 = scmp.eq.s32.totalorder %s31, 1
      %p222 = por %p220, %p221
      %p223 = scmp.ne.s32.totalorder %s214, %s215
      %p224 = scmp.eq.s32.totalorder %s31, 0
      %p225 = por %p223, %p224
      %p226 = scmp.ne.s32.totalorder %s214, %s215
      %p227 = scmp.eq.s32.totalorder %s32, 1
      %p228 = por %p226, %p227
      %p230 = scmp.ne.s32.totalorder %s215, %s229
      %p231 = scmp.eq.s32.totalorder %s32, 0
      %p232 = por %p230, %p231
      %s234 = sadd.s32 %s233, 1
      %p237 = scmp.eq.s32.totalorder %s26, 1
      %p238 = scmp.ne.s32.totalorder %s233, %s235
      %p239 = scmp.eq.s32.totalorder %s26, 0
      %p240 = por %p238, %p239
      %p241 = scmp.ne.s32.totalorder %s233, %s235
      %p242 = scmp.eq.s32.totalorder %s31, 1
      %p243 = por %p241, %p242
      %p244 = scmp.ne.s32.totalorder %s235, %s236
      %p245 = scmp.eq.s32.totalorder %s31, 0
      %p246 = por %p244, %p245
      %p247 = scmp.ne.s32.totalorder %s235, %s236
      %p248 = scmp.eq.s32.totalorder %s32, 1
      %p249 = por %p247, %p248
      %p251 = scmp.ne.s32.totalorder %s236, %s250
      %p252 = scmp.eq.s32.totalorder %s32, 0
      %p253 = por %p251, %p252
      %s255 = sadd.s32 %s254, 1
      %p258 = scmp.eq.s32.totalorder %s26, 1
      %p259 = scmp.ne.s32.totalorder %s254, %s256
      %p260 = scmp.eq.s32.totalorder %s26, 0
      %p261 = por %p259, %p260
      %p262 = scmp.ne.s32.totalorder %s254, %s256
      %p263 = scmp.eq.s32.totalorder %s31, 1
      %p264 = por %p262, %p263
      %p265 = scmp.ne.s32.totalorder %s256, %s257
      %p266 = scmp.eq.s32.totalorder %s31, 0
      %p267 = por %p265, %p266
      %p268 = scmp.ne.s32.totalorder %s256, %s257
      %p269 = scmp.eq.s32.totalorder %s32, 1
      %p270 = por %p268, %p269
      %p272 = scmp.ne.s32.totalorder %s257, %s271
      %p273 = scmp.eq.s32.totalorder %s32, 0
      %p274 = por %p272, %p273
      %s276 = sadd.s32 %s275, 1
      %p279 = scmp.eq.s32.totalorder %s26, 1
      %p280 = scmp.ne.s32.totalorder %s275, %s277
      %p281 = scmp.eq.s32.totalorder %s26, 0
      %p282 = por %p280, %p281
      %p283 = scmp.ne.s32.totalorder %s275, %s277
      %p284 = scmp.eq.s32.totalorder %s31, 1
      %p285 = por %p283, %p284
      %p286 = scmp.ne.s32.totalorder %s277, %s278
      %p287 = scmp.eq.s32.totalorder %s31, 0
      %p288 = por %p286, %p287
      %p289 = scmp.ne.s32.totalorder %s277, %s278
      %p290 = scmp.eq.s32.totalorder %s32, 1
      %p291 = por %p289, %p290
      %p293 = scmp.ne.s32.totalorder %s278, %s292
      %p294 = scmp.eq.s32.totalorder %s32, 0
      %p295 = por %p293, %p294
      %s297 = sadd.s32 %s296, 1
      %p300 = scmp.eq.s32.totalorder %s26, 1
      %p301 = scmp.ne.s32.totalorder %s296, %s298
      %p302 = scmp.eq.s32.totalorder %s26, 0
      %p303 = por %p301, %p302
      %p304 = scmp.ne.s32.totalorder %s296, %s298
      %p305 = scmp.eq.s32.totalorder %s31, 1
      %p306 = por %p304, %p305
      %p307 = scmp.ne.s32.totalorder %s298, %s299
      %p308 = scmp.eq.s32.totalorder %s31, 0
      %p309 = por %p307, %p308
      %p310 = scmp.ne.s32.totalorder %s298, %s299
      %p311 = scmp.eq.s32.totalorder %s32, 1
      %p312 = por %p310, %p311
      %p314 = scmp.ne.s32.totalorder %s299, %s313
      %p315 = scmp.eq.s32.totalorder %s32, 0
      %p316 = por %p314, %p315
      %s318 = sadd.s32 %s317, 1
      %p321 = scmp.eq.s32.totalorder %s26, 1
      %p322 = scmp.ne.s32.totalorder %s317, %s319
      %p323 = scmp.eq.s32.totalorder %s26, 0
      %p324 = por %p322, %p323
      %p325 = scmp.ne.s32.totalorder %s317, %s319
      %p326 = scmp.eq.s32.totalorder %s31, 1
      %p327 = por %p325, %p326
      %p328 = scmp.ne.s32.totalorder %s319, %s320
      %p329 = scmp.eq.s32.totalorder %s31, 0
      %p330 = por %p328, %p329
      %p331 = scmp.ne.s32.totalorder %s319, %s320
      %p332 = scmp.eq.s32.totalorder %s32, 1
      %p333 = por %p331, %p332
      %p335 = scmp.ne.s32.totalorder %s320, %s334
      %p336 = scmp.eq.s32.totalorder %s32, 0
      %p337 = por %p335, %p336
      %s339 = sadd.s32 %s338, 1
      %p342 = scmp.eq.s32.totalorder %s26, 1
      %p343 = scmp.ne.s32.totalorder %s338, %s340
      %p344 = scmp.eq.s32.totalorder %s26, 0
      %p345 = por %p343, %p344
      %p346 = scmp.ne.s32.totalorder %s338, %s340
      %p347 = scmp.eq.s32.totalorder %s31, 1
      %p348 = por %p346, %p347
      %p349 = scmp.ne.s32.totalorder %s340, %s341
      %p350 = scmp.eq.s32.totalorder %s31, 0
      %p351 = por %p349, %p350
      %p352 = scmp.ne.s32.totalorder %s340, %s341
      %p353 = scmp.eq.s32.totalorder %s32, 1
      %p354 = por %p352, %p353
      %p356 = scmp.ne.s32.totalorder %s341, %s355
      %p357 = scmp.eq.s32.totalorder %s32, 0
      %p358 = por %p356, %p357
      %s360 = sadd.s32 %s359, 1
      %p363 = scmp.eq.s32.totalorder %s26, 1
      %p364 = scmp.ne.s32.totalorder %s359, %s361
      %p365 = scmp.eq.s32.totalorder %s26, 0
      %p366 = por %p364, %p365
      %p367 = scmp.ne.s32.totalorder %s359, %s361
      %p368 = scmp.eq.s32.totalorder %s31, 1
      %p369 = por %p367, %p368
      %p370 = scmp.ne.s32.totalorder %s361, %s362
      %p371 = scmp.eq.s32.totalorder %s31, 0
      %p372 = por %p370, %p371
      %p373 = scmp.ne.s32.totalorder %s361, %s362
      %p374 = scmp.eq.s32.totalorder %s32, 1
      %p375 = por %p373, %p374
      %p377 = scmp.ne.s32.totalorder %s362, %s376
      %p378 = scmp.eq.s32.totalorder %s32, 0
      %p379 = por %p377, %p378
      %s381 = sadd.s32 %s380, 1
      %p384 = scmp.eq.s32.totalorder %s26, 1
      %p385 = scmp.ne.s32.totalorder %s380, %s382
      %p386 = scmp.eq.s32.totalorder %s26, 0
      %p387 = por %p385, %p386
      %p388 = scmp.ne.s32.totalorder %s380, %s382
      %p389 = scmp.eq.s32.totalorder %s31, 1
      %p390 = por %p388, %p389
      %p391 = scmp.ne.s32.totalorder %s382, %s383
      %p392 = scmp.eq.s32.totalorder %s31, 0
      %p393 = por %p391, %p392
      %p394 = scmp.ne.s32.totalorder %s382, %s383
      %p395 = scmp.eq.s32.totalorder %s32, 1
      %p396 = por %p394, %p395
      %p398 = scmp.ne.s32.totalorder %s383, %s397
      %p399 = scmp.eq.s32.totalorder %s32, 0
      %p400 = por %p398, %p399
      %s402 = sadd.s32 %s401, 1
      %p405 = scmp.eq.s32.totalorder %s26, 1
      %p406 = scmp.ne.s32.totalorder %s401, %s403
      %p407 = scmp.eq.s32.totalorder %s26, 0
      %p408 = por %p406, %p407
      %p409 = scmp.ne.s32.totalorder %s401, %s403
      %p410 = scmp.eq.s32.totalorder %s31, 1
      %p411 = por %p409, %p410
      %p412 = scmp.ne.s32.totalorder %s403, %s404
      %p413 = scmp.eq.s32.totalorder %s31, 0
      %p414 = por %p412, %p413
      %p415 = scmp.ne.s32.totalorder %s403, %s404
      %p416 = scmp.eq.s32.totalorder %s32, 1
      %p417 = por %p415, %p416
      %p419 = scmp.ne.s32.totalorder %s404, %s418
      %p420 = scmp.eq.s32.totalorder %s32, 0
      %p421 = por %p419, %p420
      %s422 = ssub.s32 %s26, %s33
      %p423 = scmp.eq.s32.totalorder %s422, 0
      %s425 = sadd.s32 %s424, 1
      %s426 = scalar_select %p423, %s424, %s425
      %p429 = pneg %p423
      %p430 = scmp.eq.s32.totalorder %s26, 1
      %p431 = por %p429, %p430
      %p432 = scmp.ne.s32.totalorder %s424, %s427
      %p433 = scmp.eq.s32.totalorder %s26, 0
      %p434 = por %p432, %p433
      %p435 = scmp.ne.s32.totalorder %s424, %s427
      %p436 = scmp.eq.s32.totalorder %s31, 1
      %p437 = por %p435, %p436
      %p438 = scmp.ne.s32.totalorder %s427, %s428
      %p439 = scmp.eq.s32.totalorder %s31, 0
      %p440 = por %p438, %p439
      %p441 = scmp.ne.s32.totalorder %s427, %s428
      %p442 = scmp.eq.s32.totalorder %s32, 1
      %p443 = por %p441, %p442
      %p445 = scmp.ne.s32.totalorder %s428, %s444
      %p446 = scmp.eq.s32.totalorder %s32, 0
      %p447 = por %p445, %p446
      %s448 = ssub.s32 %s26, %s33
      %p449 = scmp.eq.s32.totalorder %s448, 0
      %s451 = sadd.s32 %s450, 1
      %s452 = scalar_select %p449, %s450, %s451
      %p455 = pneg %p449
      %p456 = scmp.eq.s32.totalorder %s26, 1
      %p457 = por %p455, %p456
      %p458 = scmp.ne.s32.totalorder %s450, %s453
      %p459 = scmp.eq.s32.totalorder %s26, 0
      %p460 = por %p458, %p459
      %p461 = scmp.ne.s32.totalorder %s450, %s453
      %p462 = scmp.eq.s32.totalorder %s31, 1
      %p463 = por %p461, %p462
      %p464 = scmp.ne.s32.totalorder %s453, %s454
      %p465 = scmp.eq.s32.totalorder %s31, 0
      %p466 = por %p464, %p465
      %p467 = scmp.ne.s32.totalorder %s453, %s454
      %p468 = scmp.eq.s32.totalorder %s32, 1
      %p469 = por %p467, %p468
      %p471 = scmp.ne.s32.totalorder %s454, %s470
      %p472 = scmp.eq.s32.totalorder %s32, 0
      %p473 = por %p471, %p472
      %p474 = scmp.le.s32.totalorder 1, %s26
      %p475 = scmp.lt.s32.totalorder %s26, 3
      %p476 = pnand %p474, %p475
      %p477 = pneg %p476
      // Predicated region
      $region9: #{vae_forward.1} parent=5 // pred_check
        _
      $region10: #{vae_forward.1} parent=5 // pred_check_branch
        %479 = sbr.rel (%p476) target = $region12
      $region11: #{vae_forward.1} parent=5 // pred_region
        %s480 = ssub.s32 %s26, 1
        // Predicated region
        $region13: #{vae_forward.1} parent=11 // pred_check
          %p481 = pneg %p99
        $region14: #{vae_forward.1} parent=11 // pred_check_branch
          %483 = sbr.rel (%p481) target = $region16
        $region15: #{vae_forward.1} parent=11 // pred_region
          _
        $region16: #{vae_forward.1} parent=11 // pred_fallthru
          _
        // Predicated region
        $region17: #{vae_forward.1} parent=11 // pred_check
          %p484 = pneg %p120
        $region18: #{vae_forward.1} parent=11 // pred_check_branch
          %486 = sbr.rel (%p484) target = $region20
        $region19: #{vae_forward.1} parent=11 // pred_region
          _
        $region20: #{vae_forward.1} parent=11 // pred_fallthru
          _
        // Predicated region
        $region21: #{vae_forward.1} parent=11 // pred_check
          %p487 = pneg %p141
        $region22: #{vae_forward.1} parent=11 // pred_check_branch
          %489 = sbr.rel (%p487) target = $region24
        $region23: #{vae_forward.1} parent=11 // pred_region
          _
        $region24: #{vae_forward.1} parent=11 // pred_fallthru
          _
        // Predicated region
        $region25: #{vae_forward.1} parent=11 // pred_check
          %p490 = pneg %p162
        $region26: #{vae_forward.1} parent=11 // pred_check_branch
          %492 = sbr.rel (%p490) target = $region28
        $region27: #{vae_forward.1} parent=11 // pred_region
          _
        $region28: #{vae_forward.1} parent=11 // pred_fallthru
          _
        // Predicated region
        $region29: #{vae_forward.1} parent=11 // pred_check
          %p493 = pneg %p183
        $region30: #{vae_forward.1} parent=11 // pred_check_branch
          %495 = sbr.rel (%p493) target = $region32
        $region31: #{vae_forward.1} parent=11 // pred_region
          _
        $region32: #{vae_forward.1} parent=11 // pred_fallthru
          _
        // Predicated region
        $region33: #{vae_forward.1} parent=11 // pred_check
          %p496 = pneg %p204
        $region34: #{vae_forward.1} parent=11 // pred_check_branch
          %498 = sbr.rel (%p496) target = $region36
        $region35: #{vae_forward.1} parent=11 // pred_region
          _
        $region36: #{vae_forward.1} parent=11 // pred_fallthru
          _
        // Predicated region
        $region37: #{vae_forward.1} parent=11 // pred_check
          %p499 = pneg %p225
        $region38: #{vae_forward.1} parent=11 // pred_check_branch
          %501 = sbr.rel (%p499) target = $region40
        $region39: #{vae_forward.1} parent=11 // pred_region
          _
        $region40: #{vae_forward.1} parent=11 // pred_fallthru
          _
        // Predicated region
        $region41: #{vae_forward.1} parent=11 // pred_check
          %p502 = pneg %p246
        $region42: #{vae_forward.1} parent=11 // pred_check_branch
          %504 = sbr.rel (%p502) target = $region44
        $region43: #{vae_forward.1} parent=11 // pred_region
          _
        $region44: #{vae_forward.1} parent=11 // pred_fallthru
          _
        // Predicated region
        $region45: #{vae_forward.1} parent=11 // pred_check
          %p505 = pneg %p267
        $region46: #{vae_forward.1} parent=11 // pred_check_branch
          %507 = sbr.rel (%p505) target = $region48
        $region47: #{vae_forward.1} parent=11 // pred_region
          _
        $region48: #{vae_forward.1} parent=11 // pred_fallthru
          _
        // Predicated region
        $region49: #{vae_forward.1} parent=11 // pred_check
          %p508 = pneg %p288
        $region50: #{vae_forward.1} parent=11 // pred_check_branch
          %510 = sbr.rel (%p508) target = $region52
        $region51: #{vae_forward.1} parent=11 // pred_region
          _
        $region52: #{vae_forward.1} parent=11 // pred_fallthru
          _
        // Predicated region
        $region53: #{vae_forward.1} parent=11 // pred_check
          %p511 = pneg %p309
        $region54: #{vae_forward.1} parent=11 // pred_check_branch
          %513 = sbr.rel (%p511) target = $region56
        $region55: #{vae_forward.1} parent=11 // pred_region
          _
        $region56: #{vae_forward.1} parent=11 // pred_fallthru
          _
        // Predicated region
        $region57: #{vae_forward.1} parent=11 // pred_check
          %p514 = pneg %p330
        $region58: #{vae_forward.1} parent=11 // pred_check_branch
          %516 = sbr.rel (%p514) target = $region60
        $region59: #{vae_forward.1} parent=11 // pred_region
          _
        $region60: #{vae_forward.1} parent=11 // pred_fallthru
          _
        // Predicated region
        $region61: #{vae_forward.1} parent=11 // pred_check
          %p517 = pneg %p351
        $region62: #{vae_forward.1} parent=11 // pred_check_branch
          %519 = sbr.rel (%p517) target = $region64
        $region63: #{vae_forward.1} parent=11 // pred_region
          _
        $region64: #{vae_forward.1} parent=11 // pred_fallthru
          _
        // Predicated region
        $region65: #{vae_forward.1} parent=11 // pred_check
          %p520 = pneg %p372
        $region66: #{vae_forward.1} parent=11 // pred_check_branch
          %522 = sbr.rel (%p520) target = $region68
        $region67: #{vae_forward.1} parent=11 // pred_region
          _
        $region68: #{vae_forward.1} parent=11 // pred_fallthru
          _
        // Predicated region
        $region69: #{vae_forward.1} parent=11 // pred_check
          %p523 = pneg %p393
        $region70: #{vae_forward.1} parent=11 // pred_check_branch
          %525 = sbr.rel (%p523) target = $region72
        $region71: #{vae_forward.1} parent=11 // pred_region
          _
        $region72: #{vae_forward.1} parent=11 // pred_fallthru
          _
        // Predicated region
        $region73: #{vae_forward.1} parent=11 // pred_check
          %p526 = pneg %p414
        $region74: #{vae_forward.1} parent=11 // pred_check_branch
          %528 = sbr.rel (%p526) target = $region76
        $region75: #{vae_forward.1} parent=11 // pred_region
          _
        $region76: #{vae_forward.1} parent=11 // pred_fallthru
          _
      $region12: #{vae_forward.1} parent=5 // pred_fallthru
        _
      %p529 = scmp.lt.s32.totalorder %s26, 2
      // Predicated region
      $region77: #{vae_forward.1} parent=5 // pred_check
        %p530 = pneg %p529
      $region78: #{vae_forward.1} parent=5 // pred_check_branch
        %532 = sbr.rel (%p530) target = $region80
      $region79: #{vae_forward.1} parent=5 // pred_region
        // Predicated region
        $region81: #{vae_forward.1} parent=79 // pred_check
          %p533 = pneg %p46
        $region82: #{vae_forward.1} parent=79 // pred_check_branch
          %535 = sbr.rel (%p533) target = $region84
        $region83: #{vae_forward.1} parent=79 // pred_region
          %s536 = sand.u32 %s36, 1
          %s537 = sand.u32 %s36, 1
          %s538 = smul.addr %s537, 64
          %s539 = scalar_lea.vmem [#allocation2], %s538
          %s540 = smul.u32 2, %s26
          %s541 = smul.addr %s540, 4
          %s542 = scalar_lea.vmem %s0, %s541
          // Predicated region
          $region85: #{vae_forward.1} parent=83 // pred_check
            _
          $region86: #{vae_forward.1} parent=83 // pred_check_branch
            %544 = sbr.rel (0) target = $region88
          $region87: #{vae_forward.1} parent=83 // pred_region
            // Predicated region
            $region89: #{vae_forward.1} parent=87 // pred_check
              _
            $region90: #{vae_forward.1} parent=87 // pred_check_branch
              %546 = sbr.rel (0) target = $region92
            $region91: #{vae_forward.1} parent=87 // pred_region
              // Predicated region
              $region104: #{vae_forward.1} parent=91 // pred_check
                _
              $region105: #{vae_forward.1} parent=91 // pred_check_branch
                %575 = sbr.rel (0) target = $region107
              $region106: #{vae_forward.1} parent=91 // pred_region
                loop: start=0, step=1, limit=1
                $region108: #{vae_forward.1} parent=106 // loop_pre_header
                  _
                $region109: #{vae_forward.1} parent=106 // loop_header
                  %s577 = sphi 0, %s581
                  %p578 = scmp.ge.s32.totalorder %s577, 1
                  %s582 = sphi %s542, %s542
                  %s583 = sphi %s539, %s539
                $region110: #{vae_forward.1} parent=106 // loop_header_branch
                  %580 = sbr.rel (%p578) target = $region114
                $region111: #{vae_forward.1} parent=106 // loop_body
                  %v584 = vld [vmem:[%s582] sm:$0xff]
                  %585 = vst [vmem:[%s583] sm:$0xff] %v584
                  %v586 = vld [vmem:[%s582 + $0x10] sm:$0xff]
                  %587 = vst [vmem:[%s583 + $0x8] sm:$0xff] %v586
                  %v588 = vld [vmem:[%s582 + $0x20] sm:$0xff]
                  %589 = vst [vmem:[%s583 + $0x10] sm:$0xff] %v588
                  %v590 = vld [vmem:[%s582 + $0x30] sm:$0xff]
                  %591 = vst [vmem:[%s583 + $0x18] sm:$0xff] %v590
                  %v592 = vld [vmem:[%s582 + $0x40] sm:$0xff]
                  %593 = vst [vmem:[%s583 + $0x20] sm:$0xff] %v592
                  %v594 = vld [vmem:[%s582 + $0x50] sm:$0xff]
                  %595 = vst [vmem:[%s583 + $0x28] sm:$0xff] %v594
                  %v596 = vld [vmem:[%s582 + $0x60] sm:$0xff]
                  %597 = vst [vmem:[%s583 + $0x30] sm:$0xff] %v596
                  %v598 = vld [vmem:[%s582 + $0x70] sm:$0xff]
                  %599 = vst [vmem:[%s583 + $0x38] sm:$0xff] %v598
                $region112: #{vae_forward.1} parent=106 // loop_footer
                  %s581 = sadd.s32 1, %s577
                $region113: #{vae_forward.1} parent=106 // loop_footer_branch
                  %576 = sbr.rel target = $region109
                $region114: #{vae_forward.1} parent=106 // loop_exit
                  _
              $region107: #{vae_forward.1} parent=91 // pred_fallthru
                _
              // Predicated region
              $region115: #{vae_forward.1} parent=91 // pred_check
                _
              $region116: #{vae_forward.1} parent=91 // pred_check_branch
                %601 = sbr.rel target = $region118
              $region117: #{vae_forward.1} parent=91 // pred_region
                _
              $region118: #{vae_forward.1} parent=91 // pred_fallthru
                _
            $region92: #{vae_forward.1} parent=87 // pred_fallthru
              _
            // Predicated region
            $region93: #{vae_forward.1} parent=87 // pred_check
              _
            $region94: #{vae_forward.1} parent=87 // pred_check_branch
              %548 = sbr.rel target = $region96
            $region95: #{vae_forward.1} parent=87 // pred_region
              loop: start=0, step=1, limit=1
              $region97: #{vae_forward.1} parent=95 // loop_pre_header
                _
              $region98: #{vae_forward.1} parent=95 // loop_header
                %s551 = sphi 0, %s555
                %p552 = scmp.ge.s32.totalorder %s551, 1
                %s556 = sphi %s542, %s542
                %s557 = sphi %s539, %s539
              $region99: #{vae_forward.1} parent=95 // loop_header_branch
                %554 = sbr.rel (%p552) target = $region103
              $region100: #{vae_forward.1} parent=95 // loop_body
                %v558 = vld [vmem:[%s556] sm:$0xff]
                %559 = vst [vmem:[%s557] sm:$0xff] %v558
                %v560 = vld [vmem:[%s556 + $0x10] sm:$0xff]
                %561 = vst [vmem:[%s557 + $0x8] sm:$0xff] %v560
                %v562 = vld [vmem:[%s556 + $0x20] sm:$0xff]
                %563 = vst [vmem:[%s557 + $0x10] sm:$0xff] %v562
                %v564 = vld [vmem:[%s556 + $0x30] sm:$0xff]
                %565 = vst [vmem:[%s557 + $0x18] sm:$0xff] %v564
                %v566 = vld [vmem:[%s556 + $0x40] sm:$0xff]
                %567 = vst [vmem:[%s557 + $0x20] sm:$0xff] %v566
                %v568 = vld [vmem:[%s556 + $0x50] sm:$0xff]
                %569 = vst [vmem:[%s557 + $0x28] sm:$0xff] %v568
                %v570 = vld [vmem:[%s556 + $0x60] sm:$0xff]
                %571 = vst [vmem:[%s557 + $0x30] sm:$0xff] %v570
                %v572 = vld [vmem:[%s556 + $0x70] sm:$0xff]
                %573 = vst [vmem:[%s557 + $0x38] sm:$0xff] %v572
              $region101: #{vae_forward.1} parent=95 // loop_footer
                %s555 = sadd.s32 1, %s551
              $region102: #{vae_forward.1} parent=95 // loop_footer_branch
                %550 = sbr.rel target = $region98
              $region103: #{vae_forward.1} parent=95 // loop_exit
                _
            $region96: #{vae_forward.1} parent=87 // pred_fallthru
              _
          $region88: #{vae_forward.1} parent=83 // pred_fallthru
            _
          %602 = vnop
        $region84: #{vae_forward.1} parent=79 // pred_fallthru
          _
        // Predicated region
        $region119: #{vae_forward.1} parent=79 // pred_check
          %p603 = pneg %p72
        $region120: #{vae_forward.1} parent=79 // pred_check_branch
          %605 = sbr.rel (%p603) target = $region122
        $region121: #{vae_forward.1} parent=79 // pred_region
          %s606 = smul.u32 2, %s26
          %p607 = scmp.lt.s32.totalorder %s606, 3
          %s608 = scalar_select %p607, %s606, 3
          %s609 = smul.addr %s608, 8
          %s610 = scalar_lea.vmem %s1, %s609
          %s611 = smul.u32 2, %s26
        $region122: #{vae_forward.1} parent=79 // pred_fallthru
          _
      $region80: #{vae_forward.1} parent=5 // pred_fallthru
        _
      %p612 = scmp.le.s32.totalorder 1, %s26
      %p613 = scmp.lt.s32.totalorder %s26, 3
      %p614 = pnand %p612, %p613
      %p615 = pneg %p614
      // Predicated region
      $region123: #{vae_forward.1} parent=5 // pred_check
        _
      $region124: #{vae_forward.1} parent=5 // pred_check_branch
        %617 = sbr.rel (%p614) target = $region126
      $region125: #{vae_forward.1} parent=5 // pred_region
        %s618 = ssub.s32 %s26, 1
        %s619 = sand.u32 %s39, 1
        %s620 = sand.u32 %s39, 1
        %s621 = smul.addr %s620, 64
        %s622 = scalar_lea.vmem [#allocation2], %s621
        // Predicated region
        $region127: #{vae_forward.1} parent=125 // pred_check
          %p623 = pneg %p52
        $region128: #{vae_forward.1} parent=125 // pred_check_branch
          %625 = sbr.rel (%p623) target = $region130
        $region129: #{vae_forward.1} parent=125 // pred_region
          _
        $region130: #{vae_forward.1} parent=125 // pred_fallthru
          _
        %s626 = sand.u32 %s39, 1
        %s627 = sand.u32 %s39, 1
        %s628 = smul.addr %s627, 64
        %s629 = scalar_lea.vmem [#allocation2], %s628
        %p630 = pneg %p52
        %p631 = pneg %p49
        %s632 = smul.u32 2, %s31
        %p633 = scmp.lt.s32.totalorder %s632, 3
        %s634 = scalar_select %p633, %s632, 3
        %s635 = smul.addr %s634, 8
        %s636 = scalar_lea.vmem %s1, %s635
        %p637 = pneg %p78
        %p638 = pneg %p75
        %p639 = pneg %p99
        %p640 = pneg %p96
        %p641 = pneg %p120
        %p642 = pneg %p117
        %p643 = pneg %p141
        %p644 = pneg %p138
        %p645 = pneg %p162
        %p646 = pneg %p159
        %p647 = pneg %p183
        %p648 = pneg %p180
        %p649 = pneg %p204
        %p650 = pneg %p201
        %p651 = pneg %p225
        %p652 = pneg %p222
        %p653 = pneg %p246
        %p654 = pneg %p243
        %p655 = pneg %p267
        %p656 = pneg %p264
        %p657 = pneg %p288
        %p658 = pneg %p285
        %p659 = pneg %p309
        %p660 = pneg %p306
        %p661 = pneg %p330
        %p662 = pneg %p327
        %p663 = pneg %p351
        %p664 = pneg %p348
        %p665 = pneg %p372
        %p666 = pneg %p369
        %p667 = pneg %p393
        %p668 = pneg %p390
        %p669 = pneg %p414
        %p670 = pneg %p411
        %p671 = pneg %p440
        %p672 = pneg %p437
        %s673 = sand.u32 %s427, 1
        %s674 = sand.u32 %s427, 1
        %s675 = smul.addr %s674, 32
        %s676 = scalar_lea.vmem [#allocation3], %s675
        %p677 = pneg %p466
        %p678 = pneg %p463
        %s679 = sand.u32 %s453, 1
        %s680 = sand.u32 %s453, 1
        %s681 = smul.addr %s680, 128
        %s682 = scalar_lea.vmem [#allocation4], %s681
        %s683 = smul.u32 2, %s31
        %s684 = smul.u32 2, %s31
        %p685 = scmp.lt.s32.totalorder %s684, 3
        %s686 = scalar_select %p685, %s684, 3
        %s687 = smul.addr %s686, 8
        %s688 = scalar_lea.vmem %s1, %s687
        %s689 = smul.u32 2, %s31
        %s690 = smul.u32 2, %s31
        %s691 = smul.u32 2, %s31
        %v693 = vld [vmem:[%s622] sm:$0xff]
        %v694 = vld [vmem:[%s622 + $0x8] sm:$0xff]
        %v695 = vld [vmem:[%s622 + $0x10] sm:$0xff]
        %v696 = vld [vmem:[%s622 + $0x18] sm:$0xff]
        %v697 = vld [vmem:[%s622 + $0x20] sm:$0xff]
        %v698 = vld [vmem:[%s622 + $0x28] sm:$0xff]
        %v699 = vld [vmem:[%s622 + $0x30] sm:$0xff]
        %v700 = vld [vmem:[%s622 + $0x38] sm:$0xff]
        %v701 = vld [vmem:[%s2] sm:$0xf]
        %v702 = vld [vmem:[%s2 + $0x4] sm:$0xf]
        %v703 = vld [vmem:[%s2 + $0x8] sm:$0xf]
        %v704 = vld [vmem:[%s2 + $0xc] sm:$0xf]
        %v705 = vld [vmem:[%s2 + $0x10] sm:$0xf]
        %v706 = vld [vmem:[%s2 + $0x14] sm:$0xf]
        %v707 = vld [vmem:[%s3] sm:$0xff]
        %v708 = vld [vmem:[%s3 + $0x8] sm:$0xff]
        %v709 = vld [vmem:[%s3 + $0x10] sm:$0xff]
        %v710 = vld [vmem:[%s3 + $0x18] sm:$0xff]
        %v711 = vld [vmem:[%s3 + $0x20] sm:$0xff]
        %v712 = vld [vmem:[%s3 + $0x28] sm:$0xff]
        %714 = vset.pattern.permute.xlu0 0
        %715 = vperm.xlu0 %714, %v707
        %v716 = vpop.permute.xlu0 %715
        %719 = vset.pattern.permute.xlu0 0
        %720 = vperm.xlu0 %719, %v708
        %v721 = vpop.permute.xlu0 %720
        %724 = vset.pattern.permute.xlu0 0
        %725 = vperm.xlu0 %724, %v709
        %v726 = vpop.permute.xlu0 %725
        %729 = vset.pattern.permute.xlu0 0
        %730 = vperm.xlu0 %729, %v710
        %v731 = vpop.permute.xlu0 %730
        %734 = vset.pattern.permute.xlu0 0
        %735 = vperm.xlu0 %734, %v711
        %v736 = vpop.permute.xlu0 %735
        %739 = vset.pattern.permute.xlu0 0
        %740 = vperm.xlu0 %739, %v712
        %v741 = vpop.permute.xlu0 %740
        %v749 = vunpack.c.l.b16 %v701
        %v750 = vunpack.c.l.b16 %v702
        %v751 = vunpack.c.l.b16 %v703
        %v752 = vunpack.c.l.b16 %v704
        %v753 = vunpack.c.l.b16 %v705
        %v754 = vunpack.c.l.b16 %v706
        %v755 = vpack.c.b16 %v750, %v749
        %v756 = vpack.c.b16 %v752, %v751
        %v757 = vpack.c.b16 %v754, %v753
        %v766 = vunpack.c.l.b16 %v693
        %v767 = vunpack.c.h.b16 %v693
        %v768 = vunpack.c.l.b16 %v694
        %v769 = vunpack.c.h.b16 %v694
        %v770 = vunpack.c.l.b16 %v695
        %v771 = vunpack.c.h.b16 %v695
        %v772 = vunpack.c.l.b16 %v696
        %v773 = vunpack.c.h.b16 %v696
        %v774 = vunpack.c.l.b16 %v697
        %v775 = vunpack.c.h.b16 %v697
        %v776 = vunpack.c.l.b16 %v698
        %v777 = vunpack.c.h.b16 %v698
        %v778 = vunpack.c.l.b16 %v699
        %v779 = vunpack.c.h.b16 %v699
        %v780 = vunpack.c.l.b16 %v700
        %v781 = vunpack.c.h.b16 %v700
        %v782 = vpack.c.b16 %v768, %v766
        %v783 = vpack.c.b16 %v769, %v767
        %v784 = vpack.c.b16 %v772, %v770
        %v785 = vpack.c.b16 %v773, %v771
        %v786 = vpack.c.b16 %v776, %v774
        %v787 = vpack.c.b16 %v777, %v775
        %v788 = vpack.c.b16 %v780, %v778
        %v789 = vpack.c.b16 %v781, %v779
        %vm798 = vcmask 523264
        %v800 = vsel %vm798, %v755, 0
        %v803 = vsel %vm798, %v756, 0
        %v806 = vsel %vm798, %v757, 0
        %808 = vmatprep.subr.bf16.mxu0 %v783
        %809 = vmatpush1.bf16.msra.mxu0 %v782
        %810 = vmatprep.subr.bf16.mxu0 %v785
        %811 = vmatpush1.bf16.msra.mxu0 %v784
        %812 = vmatprep.subr.bf16.mxu0 %v787
        %813 = vmatpush1.bf16.msra.mxu0 %v786
        %814 = vmatprep.subr.bf16.mxu0 %v789
        %815 = vmatpush1.bf16.msra.mxu0 %v788
        %816 = vmatprep.subr.bf16.mxu0 0
        %817 = vmatpush1.bf16.msra.mxu0 0
        %818 = vmatprep.subr.bf16.mxu0 0
        %819 = vmatpush1.bf16.msra.mxu0 0
        %820 = vmatprep.subr.bf16.mxu0 0
        %821 = vmatpush1.bf16.msra.mxu0 0
        %822 = vmatprep.subr.bf16.mxu0 0
        %823 = vmatpush1.bf16.msra.mxu0 0
        %824 = vmatprep.subr.bf16.mxu0 0
        %825 = vmatpush1.bf16.msra.mxu0 0
        %826 = vmatprep.subr.bf16.mxu0 0
        %827 = vmatpush1.bf16.msra.mxu0 0
        %828 = vmatprep.subr.bf16.mxu0 0
        %829 = vmatpush1.bf16.msra.mxu0 0
        %830 = vmatprep.subr.bf16.mxu0 0
        %831 = vmatpush1.bf16.msra.mxu0 0
        %832 = vmatprep.subr.bf16.mxu0 0
        %833 = vmatpush1.bf16.msra.mxu0 0
        %834 = vmatprep.subr.bf16.mxu0 0
        %835 = vmatpush1.bf16.msra.mxu0 0
        %836 = vmatprep.subr.bf16.mxu0 0
        %837 = vmatpush1.bf16.msra.mxu0 0
        %838 = vmatprep.subr.bf16.mxu0 0
        %839 = vmatpush1.bf16.msra.mxu0 0
        %840 = vmatprep.mubr.bf16.mxu0 0
        %841 = vmatmul.mubr.bf16.gmra.mrb[0].mxu0 %v800
        %v842 = vpop.f32.mrb[0].mxu0
        %v843 = vadd.f32 %v716, %v842
        %v844 = vpop.f32.mrb[0].mxu0
        %v845 = vadd.f32 %v716, %v844
        %v846 = vpop.f32.mrb[0].mxu0
        %v847 = vadd.f32 %v721, %v846
        %v848 = vpop.f32.mrb[0].mxu0
        %v849 = vadd.f32 %v721, %v848
        %850 = vmatprep.mubr.bf16.mxu0 0
        %851 = vmatmul.mubr.bf16.gmra.mrb[0].mxu0 %v803
        %v852 = vpop.f32.mrb[0].mxu0
        %v853 = vadd.f32 %v726, %v852
        %v854 = vpop.f32.mrb[0].mxu0
        %v855 = vadd.f32 %v726, %v854
        %v856 = vpop.f32.mrb[0].mxu0
        %v857 = vadd.f32 %v731, %v856
        %v858 = vpop.f32.mrb[0].mxu0
        %v859 = vadd.f32 %v731, %v858
        %860 = vmatprep.mubr.bf16.mxu0 0
        %861 = vmatmul.mubr.bf16.gmra.mrb[0].mxu0 %v806
        %v862 = vpop.f32.mrb[0].mxu0
        %v863 = vadd.f32 %v736, %v862
        %v864 = vpop.f32.mrb[0].mxu0
        %v865 = vadd.f32 %v736, %v864
        %v866 = vpop.f32.mrb[0].mxu0
        %v867 = vadd.f32 %v741, %v866
        %v868 = vpop.f32.mrb[0].mxu0
        %v869 = vadd.f32 %v741, %v868
        %870 = vdwg.mxu0
        %v871 = vmax.f32 %v843, 0.0
        %v872 = vmax.f32 %v845, 0.0
        %v873 = vmax.f32 %v847, 0.0
        %v874 = vmax.f32 %v849, 0.0
        %v875 = vmax.f32 %v853, 0.0
        %v876 = vmax.f32 %v855, 0.0
        %v877 = vmax.f32 %v857, 0.0
        %v878 = vmax.f32 %v859, 0.0
        %v879 = vmax.f32 %v863, 0.0
        %v880 = vmax.f32 %v865, 0.0
        %v881 = vmax.f32 %v867, 0.0
        %v882 = vmax.f32 %v869, 0.0
        %v883 = vld [vmem:[%s4] sm:$0xf]
        %v884 = vld [vmem:[%s4 + $0x4] sm:$0xf]
        %v885 = vld [vmem:[%s4 + $0x8] sm:$0xf]
        %v886 = vld [vmem:[%s4 + $0xc] sm:$0xf]
        %v887 = vpack.c.bf16 %v873, %v871
        %v888 = vpack.c.bf16 %v874, %v872
        %v889 = vpack.c.bf16 %v877, %v875
        %v890 = vpack.c.bf16 %v878, %v876
        %v891 = vpack.c.bf16 %v881, %v879
        %v892 = vpack.c.bf16 %v882, %v880
        %v893 = vld [vmem:[%s5] sm:$0xff]
        %v894 = vld [vmem:[%s5 + $0x8] sm:$0xff]
        %v895 = vld [vmem:[%s5 + $0x10] sm:$0xff]
        %v896 = vld [vmem:[%s5 + $0x18] sm:$0xff]
        %898 = vset.pattern.permute.xlu0 0
        %899 = vperm.xlu0 %898, %v893
        %v900 = vpop.permute.xlu0 %899
        %903 = vset.pattern.permute.xlu0 0
        %904 = vperm.xlu0 %903, %v894
        %v905 = vpop.permute.xlu0 %904
        %908 = vset.pattern.permute.xlu0 0
        %909 = vperm.xlu0 %908, %v895
        %v910 = vpop.permute.xlu0 %909
        %913 = vset.pattern.permute.xlu0 0
        %914 = vperm.xlu0 %913, %v896
        %v915 = vpop.permute.xlu0 %914
        %v921 = vunpack.c.l.b16 %v883
        %v922 = vunpack.c.l.b16 %v884
        %v923 = vunpack.c.l.b16 %v885
        %v924 = vunpack.c.l.b16 %v886
        %v925 = vpack.c.b16 %v922, %v921
        %v926 = vpack.c.b16 %v924, %v923
        %vm927 = vcmask 392192
        %v929 = vsel %vm927, %v925, 0
        %v932 = vsel %vm927, %v926, 0
        %934 = vmatprep.subr.bf16.mxu0 %v888
        %935 = vmatpush1.bf16.msra.mxu0 %v887
        %936 = vmatprep.subr.bf16.mxu0 %v890
        %937 = vmatpush1.bf16.msra.mxu0 %v889
        %938 = vmatprep.subr.bf16.mxu0 %v892
        %939 = vmatpush1.bf16.msra.mxu0 %v891
        %940 = vmatprep.subr.bf16.mxu0 0
        %941 = vmatpush1.bf16.msra.mxu0 0
        %942 = vmatprep.subr.bf16.mxu0 0
        %943 = vmatpush1.bf16.msra.mxu0 0
        %944 = vmatprep.subr.bf16.mxu0 0
        %945 = vmatpush1.bf16.msra.mxu0 0
        %946 = vmatprep.subr.bf16.mxu0 0
        %947 = vmatpush1.bf16.msra.mxu0 0
        %948 = vmatprep.subr.bf16.mxu0 0
        %949 = vmatpush1.bf16.msra.mxu0 0
        %950 = vmatprep.subr.bf16.mxu0 0
        %951 = vmatpush1.bf16.msra.mxu0 0
        %952 = vmatprep.subr.bf16.mxu0 0
        %953 = vmatpush1.bf16.msra.mxu0 0
        %954 = vmatprep.subr.bf16.mxu0 0
        %955 = vmatpush1.bf16.msra.mxu0 0
        %956 = vmatprep.subr.bf16.mxu0 0
        %957 = vmatpush1.bf16.msra.mxu0 0
        %958 = vmatprep.subr.bf16.mxu0 0
        %959 = vmatpush1.bf16.msra.mxu0 0
        %960 = vmatprep.subr.bf16.mxu0 0
        %961 = vmatpush1.bf16.msra.mxu0 0
        %962 = vmatprep.subr.bf16.mxu0 0
        %963 = vmatpush1.bf16.msra.mxu0 0
        %964 = vmatprep.subr.bf16.mxu0 0
        %965 = vmatpush1.bf16.msra.mxu0 0
        %966 = vmatprep.mubr.bf16.mxu0 0
        %967 = vmatmul.mubr.bf16.gmra.mrb[0].mxu0 %v929
        %v968 = vpop.f32.mrb[0].mxu0
        %v969 = vadd.f32 %v900, %v968
        %v970 = vpop.f32.mrb[0].mxu0
        %v971 = vadd.f32 %v900, %v970
        %v972 = vpop.f32.mrb[0].mxu0
        %v973 = vadd.f32 %v905, %v972
        %v974 = vpop.f32.mrb[0].mxu0
        %v975 = vadd.f32 %v905, %v974
        %976 = vmatprep.mubr.bf16.mxu0 0
        %977 = vmatmul.mubr.bf16.gmra.mrb[0].mxu0 %v932
        %v978 = vpop.f32.mrb[0].mxu0
        %v979 = vadd.f32 %v910, %v978
        %v980 = vpop.f32.mrb[0].mxu0
        %v981 = vadd.f32 %v910, %v980
        %v982 = vpop.f32.mrb[0].mxu0
        %v983 = vadd.f32 %v915, %v982
        %v984 = vpop.f32.mrb[0].mxu0
        %v985 = vadd.f32 %v915, %v984
        %986 = vdwg.mxu0
        %v987 = vmax.f32 %v969, 0.0
        %v988 = vmax.f32 %v971, 0.0
        %v989 = vmax.f32 %v973, 0.0
        %v990 = vmax.f32 %v975, 0.0
        %v991 = vmax.f32 %v979, 0.0
        %v992 = vmax.f32 %v981, 0.0
        %v993 = vmax.f32 %v983, 0.0
        %v994 = vmax.f32 %v985, 0.0
        %v995 = vld [vmem:[%s6] sm:$0xf]
        %v996 = vld [vmem:[%s6 + $0x4] sm:$0xf]
        %v997 = vld [vmem:[%s6 + $0x8] sm:$0xf]
        %v998 = vld [vmem:[%s6 + $0xc] sm:$0xf]
        %v999 = vpack.c.bf16 %v989, %v987
        %v1000 = vpack.c.bf16 %v990, %v988
        %v1001 = vpack.c.bf16 %v993, %v991
        %v1002 = vpack.c.bf16 %v994, %v992
        %v1003 = vld [vmem:[%s7] sm:$0xff]
        %v1004 = vld [vmem:[%s7 + $0x8] sm:$0xff]
        %v1005 = vld [vmem:[%s7 + $0x10] sm:$0xff]
        %v1006 = vld [vmem:[%s7 + $0x18] sm:$0xff]
        %1008 = vset.pattern.permute.xlu0 0
        %1009 = vperm.xlu0 %1008, %v1003
        %v1010 = vpop.permute.xlu0 %1009
        %1013 = vset.pattern.permute.xlu0 0
        %1014 = vperm.xlu0 %1013, %v1004
        %v1015 = vpop.permute.xlu0 %1014
        %1018 = vset.pattern.permute.xlu0 0
        %1019 = vperm.xlu0 %1018, %v1005
        %v1020 = vpop.permute.xlu0 %1019
        %1023 = vset.pattern.permute.xlu0 0
        %1024 = vperm.xlu0 %1023, %v1006
        %v1025 = vpop.permute.xlu0 %1024
        %v1031 = vunpack.c.l.b16 %v995
        %v1032 = vunpack.c.l.b16 %v996
        %v1033 = vunpack.c.l.b16 %v997
        %v1034 = vunpack.c.l.b16 %v998
        %v1035 = vpack.c.b16 %v1032, %v1031
        %v1036 = vpack.c.b16 %v1034, %v1033
        %vm1037 = vcmask 261120
        %v1039 = vsel %vm1037, %v1035, 0
        %v1042 = vsel %vm1037, %v1036, 0
        %1044 = vmatprep.subr.bf16.mxu0 %v1000
        %1045 = vmatpush1.bf16.msra.mxu0 %v999
        %1046 = vmatprep.subr.bf16.mxu0 %v1002
        %1047 = vmatpush1.bf16.msra.mxu0 %v1001
        %1048 = vmatprep.subr.bf16.mxu0 0
        %1049 = vmatpush1.bf16.msra.mxu0 0
        %1050 = vmatprep.subr.bf16.mxu0 0
        %1051 = vmatpush1.bf16.msra.mxu0 0
        %1052 = vmatprep.subr.bf16.mxu0 0
        %1053 = vmatpush1.bf16.msra.mxu0 0
        %1054 = vmatprep.subr.bf16.mxu0 0
        %1055 = vmatpush1.bf16.msra.mxu0 0
        %1056 = vmatprep.subr.bf16.mxu0 0
        %1057 = vmatpush1.bf16.msra.mxu0 0
        %1058 = vmatprep.subr.bf16.mxu0 0
        %1059 = vmatpush1.bf16.msra.mxu0 0
        %1060 = vmatprep.subr.bf16.mxu0 0
        %1061 = vmatpush1.bf16.msra.mxu0 0
        %1062 = vmatprep.subr.bf16.mxu0 0
        %1063 = vmatpush1.bf16.msra.mxu0 0
        %1064 = vmatprep.subr.bf16.mxu0 0
        %1065 = vmatpush1.bf16.msra.mxu0 0
        %1066 = vmatprep.subr.bf16.mxu0 0
        %1067 = vmatpush1.bf16.msra.mxu0 0
        %1068 = vmatprep.subr.bf16.mxu0 0
        %1069 = vmatpush1.bf16.msra.mxu0 0
        %1070 = vmatprep.subr.bf16.mxu0 0
        %1071 = vmatpush1.bf16.msra.mxu0 0
        %1072 = vmatprep.subr.bf16.mxu0 0
        %1073 = vmatpush1.bf16.msra.mxu0 0
        %1074 = vmatprep.subr.bf16.mxu0 0
        %1075 = vmatpush1.bf16.msra.mxu0 0
        %1076 = vmatprep.mubr.bf16.mxu0 0
        %1077 = vmatmul.mubr.bf16.gmra.mrb[0].mxu0 %v1039
        %v1078 = vpop.f32.mrb[0].mxu0
        %v1079 = vadd.f32 %v1010, %v1078
        %v1080 = vpop.f32.mrb[0].mxu0
        %v1081 = vadd.f32 %v1010, %v1080
        %v1082 = vpop.f32.mrb[0].mxu0
        %v1083 = vadd.f32 %v1015, %v1082
        %v1084 = vpop.f32.mrb[0].mxu0
        %v1085 = vadd.f32 %v1015, %v1084
        %1086 = vmatprep.mubr.bf16.mxu0 0
        %1087 = vmatmul.mubr.bf16.gmra.mrb[0].mxu0 %v1042
        %v1088 = vpop.f32.mrb[0].mxu0
        %v1089 = vadd.f32 %v1020, %v1088
        %v1090 = vpop.f32.mrb[0].mxu0
        %v1091 = vadd.f32 %v1020, %v1090
        %v1092 = vpop.f32.mrb[0].mxu0
        %v1093 = vadd.f32 %v1025, %v1092
        %v1094 = vpop.f32.mrb[0].mxu0
        %v1095 = vadd.f32 %v1025, %v1094
        %1096 = vdwg.mxu0
        %v1097 = vmax.f32 %v1079, 0.0
        %v1098 = vmax.f32 %v1081, 0.0
        %v1099 = vmax.f32 %v1083, 0.0
        %v1100 = vmax.f32 %v1085, 0.0
        %v1101 = vmax.f32 %v1089, 0.0
        %v1102 = vmax.f32 %v1091, 0.0
        %v1103 = vmax.f32 %v1093, 0.0
        %v1104 = vmax.f32 %v1095, 0.0
        %v1105 = vld [vmem:[%s8] sm:$0xf]
        %v1106 = vld [vmem:[%s8 + $0x4] sm:$0xf]
        %v1107 = vpack.c.bf16 %v1099, %v1097
        %v1108 = vpack.c.bf16 %v1100, %v1098
        %v1109 = vpack.c.bf16 %v1103, %v1101
        %v1110 = vpack.c.bf16 %v1104, %v1102
        %v1111 = vld [vmem:[%s9] sm:$0xff]
        %v1112 = vld [vmem:[%s9 + $0x8] sm:$0xff]
        %1114 = vset.pattern.permute.xlu0 0
        %1115 = vperm.xlu0 %1114, %v1111
        %v1116 = vpop.permute.xlu0 %1115
        %1119 = vset.pattern.permute.xlu0 0
        %1120 = vperm.xlu0 %1119, %v1112
        %v1121 = vpop.permute.xlu0 %1120
        %v1125 = vunpack.c.l.b16 %v1105
        %v1126 = vunpack.c.l.b16 %v1106
        %v1127 = vpack.c.b16 %v1126, %v1125
        %v1129 = vsel %vm1037, %v1127, 0
        %1131 = vmatprep.subr.bf16.mxu0 %v1108
        %1132 = vmatpush1.bf16.msra.mxu0 %v1107
        %1133 = vmatprep.subr.bf16.mxu0 %v1110
        %1134 = vmatpush1.bf16.msra.mxu0 %v1109
        %1135 = vmatprep.subr.bf16.mxu0 0
        %1136 = vmatpush1.bf16.msra.mxu0 0
        %1137 = vmatprep.subr.bf16.mxu0 0
        %1138 = vmatpush1.bf16.msra.mxu0 0
        %1139 = vmatprep.subr.bf16.mxu0 0
        %1140 = vmatpush1.bf16.msra.mxu0 0
        %1141 = vmatprep.subr.bf16.mxu0 0
        %1142 = vmatpush1.bf16.msra.mxu0 0
        %1143 = vmatprep.subr.bf16.mxu0 0
        %1144 = vmatpush1.bf16.msra.mxu0 0
        %1145 = vmatprep.subr.bf16.mxu0 0
        %1146 = vmatpush1.bf16.msra.mxu0 0
        %1147 = vmatprep.subr.bf16.mxu0 0
        %1148 = vmatpush1.bf16.msra.mxu0 0
        %1149 = vmatprep.subr.bf16.mxu0 0
        %1150 = vmatpush1.bf16.msra.mxu0 0
        %1151 = vmatprep.subr.bf16.mxu0 0
        %1152 = vmatpush1.bf16.msra.mxu0 0
        %1153 = vmatprep.subr.bf16.mxu0 0
        %1154 = vmatpush1.bf16.msra.mxu0 0
        %1155 = vmatprep.subr.bf16.mxu0 0
        %1156 = vmatpush1.bf16.msra.mxu0 0
        %1157 = vmatprep.subr.bf16.mxu0 0
        %1158 = vmatpush1.bf16.msra.mxu0 0
        %1159 = vmatprep.subr.bf16.mxu0 0
        %1160 = vmatpush1.bf16.msra.mxu0 0
        %1161 = vmatprep.subr.bf16.mxu0 0
        %1162 = vmatpush1.bf16.msra.mxu0 0
        %1163 = vmatprep.mubr.bf16.mxu0 0
        %1164 = vmatmul.mubr.bf16.gmra.mrb[0].mxu0 %v1129
        %v1165 = vpop.f32.mrb[0].mxu0
        %v1166 = vadd.f32 %v1116, %v1165
        %v1167 = vpop.f32.mrb[0].mxu0
        %v1168 = vadd.f32 %v1116, %v1167
        %v1169 = vpop.f32.mrb[0].mxu0
        %v1170 = vadd.f32 %v1121, %v1169
        %v1171 = vpop.f32.mrb[0].mxu0
        %v1172 = vadd.f32 %v1121, %v1171
        %1173 = vdwg.mxu0
        %1174 = vst [vmem:[%s676] sm:$0xff] %v1166
        %1175 = vst [vmem:[%s676 + $0x8] sm:$0xff] %v1168
        %1176 = vst [vmem:[%s676 + $0x10] sm:$0xff] %v1170
        %1177 = vst [vmem:[%s676 + $0x18] sm:$0xff] %v1172
        %v1178 = vld [vmem:[%s688] sm:$0xff]
        %v1179 = vld [vmem:[%s688 + $0x8] sm:$0xff]
        %v1180 = vmul.f32 %v1170, 0.5
        %v1181 = vmul.f32 %v1172, 0.5
        %v1182 = vmul.f32 %v1180, 1.442695
        %v1183 = vpow.pop %v1182
        %v1184 = vmul.f32 %v1181, 1.442695
        %v1185 = vpow.pop %v1184
        %v1186 = vmul.f32 %v1178, %v1183
        %v1187 = vmul.f32 %v1179, %v1185
        %v1188 = vadd.f32 %v1186, %v1166
        %v1189 = vadd.f32 %v1187, %v1168
        %v1190 = vld [vmem:[%s10] sm:$0xf]
        %v1191 = vld [vmem:[%s10 + $0x4] sm:$0xf]
        %v1192 = vld [vmem:[%s10 + $0x8] sm:$0xf]
        %v1193 = vld [vmem:[%s10 + $0xc] sm:$0xf]
        %v1194 = vpack.c.bf16 %v1188, %v1188
        %v1195 = vpack.c.bf16 %v1189, %v1189
        %v1196 = vld [vmem:[%s11] sm:$0xff]
        %v1197 = vld [vmem:[%s11 + $0x8] sm:$0xff]
        %v1198 = vld [vmem:[%s11 + $0x10] sm:$0xff]
        %v1199 = vld [vmem:[%s11 + $0x18] sm:$0xff]
        %1201 = vset.pattern.permute.xlu0 0
        %1202 = vperm.xlu0 %1201, %v1196
        %v1203 = vpop.permute.xlu0 %1202
        %1206 = vset.pattern.permute.xlu0 0
        %1207 = vperm.xlu0 %1206, %v1197
        %v1208 = vpop.permute.xlu0 %1207
        %1211 = vset.pattern.permute.xlu0 0
        %1212 = vperm.xlu0 %1211, %v1198
        %v1213 = vpop.permute.xlu0 %1212
        %1216 = vset.pattern.permute.xlu0 0
        %1217 = vperm.xlu0 %1216, %v1199
        %v1218 = vpop.permute.xlu0 %1217
        %v1224 = vunpack.c.l.b16 %v1190
        %v1225 = vunpack.c.l.b16 %v1191
        %v1226 = vunpack.c.l.b16 %v1192
        %v1227 = vunpack.c.l.b16 %v1193
        %v1228 = vpack.c.b16 %v1225, %v1224
        %v1229 = vpack.c.b16 %v1227, %v1226
        %vm1230 = vcmask 64512
        %v1232 = vsel %vm1230, %v1228, 0
        %v1235 = vsel %vm1230, %v1229, 0
        %vm1237 = vcmask 1043456
        %v1239 = vsel %vm1237, %v1194, 0
        %v1242 = vsel %vm1237, %v1195, 0
        %1244 = vmatprep.subr.bf16.mxu0 %v1242
        %1245 = vmatpush1.bf16.msra.mxu0 %v1239
        %1246 = vmatprep.subr.bf16.mxu0 0
        %1247 = vmatpush1.bf16.msra.mxu0 0
        %1248 = vmatprep.subr.bf16.mxu0 0
        %1249 = vmatpush1.bf16.msra.mxu0 0
        %1250 = vmatprep.subr.bf16.mxu0 0
        %1251 = vmatpush1.bf16.msra.mxu0 0
        %1252 = vmatprep.subr.bf16.mxu0 0
        %1253 = vmatpush1.bf16.msra.mxu0 0
        %1254 = vmatprep.subr.bf16.mxu0 0
        %1255 = vmatpush1.bf16.msra.mxu0 0
        %1256 = vmatprep.subr.bf16.mxu0 0
        %1257 = vmatpush1.bf16.msra.mxu0 0
        %1258 = vmatprep.subr.bf16.mxu0 0
        %1259 = vmatpush1.bf16.msra.mxu0 0
        %1260 = vmatprep.subr.bf16.mxu0 0
        %1261 = vmatpush1.bf16.msra.mxu0 0
        %1262 = vmatprep.subr.bf16.mxu0 0
        %1263 = vmatpush1.bf16.msra.mxu0 0
        %1264 = vmatprep.subr.bf16.mxu0 0
        %1265 = vmatpush1.bf16.msra.mxu0 0
        %1266 = vmatprep.subr.bf16.mxu0 0
        %1267 = vmatpush1.bf16.msra.mxu0 0
        %1268 = vmatprep.subr.bf16.mxu0 0
        %1269 = vmatpush1.bf16.msra.mxu0 0
        %1270 = vmatprep.subr.bf16.mxu0 0
        %1271 = vmatpush1.bf16.msra.mxu0 0
        %1272 = vmatprep.subr.bf16.mxu0 0
        %1273 = vmatpush1.bf16.msra.mxu0 0
        %1274 = vmatprep.subr.bf16.mxu0 0
        %1275 = vmatpush1.bf16.msra.mxu0 0
        %1276 = vmatprep.mubr.bf16.mxu0 0
        %1277 = vmatmul.mubr.bf16.gmra.mrb[0].mxu0 %v1232
        %v1278 = vpop.f32.mrb[0].mxu0
        %v1279 = vadd.f32 %v1203, %v1278
        %v1280 = vpop.f32.mrb[0].mxu0
        %v1281 = vadd.f32 %v1203, %v1280
        %v1282 = vpop.f32.mrb[0].mxu0
        %v1283 = vadd.f32 %v1208, %v1282
        %v1284 = vpop.f32.mrb[0].mxu0
        %v1285 = vadd.f32 %v1208, %v1284
        %1286 = vmatprep.mubr.bf16.mxu0 0
        %1287 = vmatmul.mubr.bf16.gmra.mrb[0].mxu0 %v1235
        %v1288 = vpop.f32.mrb[0].mxu0
        %v1289 = vadd.f32 %v1213, %v1288
        %v1290 = vpop.f32.mrb[0].mxu0
        %v1291 = vadd.f32 %v1213, %v1290
        %v1292 = vpop.f32.mrb[0].mxu0
        %v1293 = vadd.f32 %v1218, %v1292
        %v1294 = vpop.f32.mrb[0].mxu0
        %v1295 = vadd.f32 %v1218, %v1294
        %1296 = vdwg.mxu0
        %v1297 = vmax.f32 %v1279, 0.0
        %v1298 = vmax.f32 %v1281, 0.0
        %v1299 = vmax.f32 %v1283, 0.0
        %v1300 = vmax.f32 %v1285, 0.0
        %v1301 = vmax.f32 %v1289, 0.0
        %v1302 = vmax.f32 %v1291, 0.0
        %v1303 = vmax.f32 %v1293, 0.0
        %v1304 = vmax.f32 %v1295, 0.0
        %v1305 = vld [vmem:[%s12] sm:$0xf]
        %v1306 = vld [vmem:[%s12 + $0x4] sm:$0xf]
        %v1307 = vld [vmem:[%s12 + $0x8] sm:$0xf]
        %v1308 = vld [vmem:[%s12 + $0xc] sm:$0xf]
        %v1309 = vpack.c.bf16 %v1299, %v1297
        %v1310 = vpack.c.bf16 %v1300, %v1298
        %v1311 = vpack.c.bf16 %v1303, %v1301
        %v1312 = vpack.c.bf16 %v1304, %v1302
        %v1313 = vld [vmem:[%s13] sm:$0xff]
        %v1314 = vld [vmem:[%s13 + $0x8] sm:$0xff]
        %v1315 = vld [vmem:[%s13 + $0x10] sm:$0xff]
        %v1316 = vld [vmem:[%s13 + $0x18] sm:$0xff]
        %1318 = vset.pattern.permute.xlu0 0
        %1319 = vperm.xlu0 %1318, %v1313
        %v1320 = vpop.permute.xlu0 %1319
        %1323 = vset.pattern.permute.xlu0 0
        %1324 = vperm.xlu0 %1323, %v1314
        %v1325 = vpop.permute.xlu0 %1324
        %1328 = vset.pattern.permute.xlu0 0
        %1329 = vperm.xlu0 %1328, %v1315
        %v1330 = vpop.permute.xlu0 %1329
        %1333 = vset.pattern.permute.xlu0 0
        %1334 = vperm.xlu0 %1333, %v1316
        %v1335 = vpop.permute.xlu0 %1334
        %v1341 = vunpack.c.l.b16 %v1305
        %v1342 = vunpack.c.l.b16 %v1306
        %v1343 = vunpack.c.l.b16 %v1307
        %v1344 = vunpack.c.l.b16 %v1308
        %v1345 = vpack.c.b16 %v1342, %v1341
        %v1346 = vpack.c.b16 %v1344, %v1343
        %v1348 = vsel %vm1037, %v1345, 0
        %v1351 = vsel %vm1037, %v1346, 0
        %1353 = vmatprep.subr.bf16.mxu0 %v1310
        %1354 = vmatpush1.bf16.msra.mxu0 %v1309
        %1355 = vmatprep.subr.bf16.mxu0 %v1312
        %1356 = vmatpush1.bf16.msra.mxu0 %v1311
        %1357 = vmatprep.subr.bf16.mxu0 0
        %1358 = vmatpush1.bf16.msra.mxu0 0
        %1359 = vmatprep.subr.bf16.mxu0 0
        %1360 = vmatpush1.bf16.msra.mxu0 0
        %1361 = vmatprep.subr.bf16.mxu0 0
        %1362 = vmatpush1.bf16.msra.mxu0 0
        %1363 = vmatprep.subr.bf16.mxu0 0
        %1364 = vmatpush1.bf16.msra.mxu0 0
        %1365 = vmatprep.subr.bf16.mxu0 0
        %1366 = vmatpush1.bf16.msra.mxu0 0
        %1367 = vmatprep.subr.bf16.mxu0 0
        %1368 = vmatpush1.bf16.msra.mxu0 0
        %1369 = vmatprep.subr.bf16.mxu0 0
        %1370 = vmatpush1.bf16.msra.mxu0 0
        %1371 = vmatprep.subr.bf16.mxu0 0
        %1372 = vmatpush1.bf16.msra.mxu0 0
        %1373 = vmatprep.subr.bf16.mxu0 0
        %1374 = vmatpush1.bf16.msra.mxu0 0
        %1375 = vmatprep.subr.bf16.mxu0 0
        %1376 = vmatpush1.bf16.msra.mxu0 0
        %1377 = vmatprep.subr.bf16.mxu0 0
        %1378 = vmatpush1.bf16.msra.mxu0 0
        %1379 = vmatprep.subr.bf16.mxu0 0
        %1380 = vmatpush1.bf16.msra.mxu0 0
        %1381 = vmatprep.subr.bf16.mxu0 0
        %1382 = vmatpush1.bf16.msra.mxu0 0
        %1383 = vmatprep.subr.bf16.mxu0 0
        %1384 = vmatpush1.bf16.msra.mxu0 0
        %1385 = vmatprep.mubr.bf16.mxu0 0
        %1386 = vmatmul.mubr.bf16.gmra.mrb[0].mxu0 %v1348
        %v1387 = vpop.f32.mrb[0].mxu0
        %v1388 = vadd.f32 %v1320, %v1387
        %v1389 = vpop.f32.mrb[0].mxu0
        %v1390 = vadd.f32 %v1320, %v1389
        %v1391 = vpop.f32.mrb[0].mxu0
        %v1392 = vadd.f32 %v1325, %v1391
        %v1393 = vpop.f32.mrb[0].mxu0
        %v1394 = vadd.f32 %v1325, %v1393
        %1395 = vmatprep.mubr.bf16.mxu0 0
        %1396 = vmatmul.mubr.bf16.gmra.mrb[0].mxu0 %v1351
        %v1397 = vpop.f32.mrb[0].mxu0
        %v1398 = vadd.f32 %v1330, %v1397
        %v1399 = vpop.f32.mrb[0].mxu0
        %v1400 = vadd.f32 %v1330, %v1399
        %v1401 = vpop.f32.mrb[0].mxu0
        %v1402 = vadd.f32 %v1335, %v1401
        %v1403 = vpop.f32.mrb[0].mxu0
        %v1404 = vadd.f32 %v1335, %v1403
        %1405 = vdwg.mxu0
        %v1406 = vmax.f32 %v1388, 0.0
        %v1407 = vmax.f32 %v1390, 0.0
        %v1408 = vmax.f32 %v1392, 0.0
        %v1409 = vmax.f32 %v1394, 0.0
        %v1410 = vmax.f32 %v1398, 0.0
        %v1411 = vmax.f32 %v1400, 0.0
        %v1412 = vmax.f32 %v1402, 0.0
        %v1413 = vmax.f32 %v1404, 0.0
        %v1414 = vld [vmem:[%s14] sm:$0xf]
        %v1415 = vld [vmem:[%s14 + $0x4] sm:$0xf]
        %v1416 = vld [vmem:[%s14 + $0x8] sm:$0xf]
        %v1417 = vld [vmem:[%s14 + $0xc] sm:$0xf]
        %v1418 = vld [vmem:[%s14 + $0x10] sm:$0xf]
        %v1419 = vld [vmem:[%s14 + $0x14] sm:$0xf]
        %v1420 = vpack.c.bf16 %v1408, %v1406
        %v1421 = vpack.c.bf16 %v1409, %v1407
        %v1422 = vpack.c.bf16 %v1412, %v1410
        %v1423 = vpack.c.bf16 %v1413, %v1411
        %v1424 = vld [vmem:[%s15] sm:$0xff]
        %v1425 = vld [vmem:[%s15 + $0x8] sm:$0xff]
        %v1426 = vld [vmem:[%s15 + $0x10] sm:$0xff]
        %v1427 = vld [vmem:[%s15 + $0x18] sm:$0xff]
        %v1428 = vld [vmem:[%s15 + $0x20] sm:$0xff]
        %v1429 = vld [vmem:[%s15 + $0x28] sm:$0xff]
        %1431 = vset.pattern.permute.xlu0 0
        %1432 = vperm.xlu0 %1431, %v1424
        %v1433 = vpop.permute.xlu0 %1432
        %1436 = vset.pattern.permute.xlu0 0
        %1437 = vperm.xlu0 %1436, %v1425
        %v1438 = vpop.permute.xlu0 %1437
        %1441 = vset.pattern.permute.xlu0 0
        %1442 = vperm.xlu0 %1441, %v1426
        %v1443 = vpop.permute.xlu0 %1442
        %1446 = vset.pattern.permute.xlu0 0
        %1447 = vperm.xlu0 %1446, %v1427
        %v1448 = vpop.permute.xlu0 %1447
        %1451 = vset.pattern.permute.xlu0 0
        %1452 = vperm.xlu0 %1451, %v1428
        %v1453 = vpop.permute.xlu0 %1452
        %1456 = vset.pattern.permute.xlu0 0
        %1457 = vperm.xlu0 %1456, %v1429
        %v1458 = vpop.permute.xlu0 %1457
        %v1466 = vunpack.c.l.b16 %v1414
        %v1467 = vunpack.c.l.b16 %v1415
        %v1468 = vunpack.c.l.b16 %v1416
        %v1469 = vunpack.c.l.b16 %v1417
        %v1470 = vunpack.c.l.b16 %v1418
        %v1471 = vunpack.c.l.b16 %v1419
        %v1472 = vpack.c.b16 %v1467, %v1466
        %v1473 = vpack.c.b16 %v1469, %v1468
        %v1474 = vpack.c.b16 %v1471, %v1470
        %v1476 = vsel %vm1037, %v1472, 0
        %v1479 = vsel %vm1037, %v1473, 0
        %v1482 = vsel %vm1037, %v1474, 0
        %1484 = vmatprep.subr.bf16.mxu0 %v1421
        %1485 = vmatpush1.bf16.msra.mxu0 %v1420
        %1486 = vmatprep.subr.bf16.mxu0 %v1423
        %1487 = vmatpush1.bf16.msra.mxu0 %v1422
        %1488 = vmatprep.subr.bf16.mxu0 0
        %1489 = vmatpush1.bf16.msra.mxu0 0
        %1490 = vmatprep.subr.bf16.mxu0 0
        %1491 = vmatpush1.bf16.msra.mxu0 0
        %1492 = vmatprep.subr.bf16.mxu0 0
        %1493 = vmatpush1.bf16.msra.mxu0 0
        %1494 = vmatprep.subr.bf16.mxu0 0
        %1495 = vmatpush1.bf16.msra.mxu0 0
        %1496 = vmatprep.subr.bf16.mxu0 0
        %1497 = vmatpush1.bf16.msra.mxu0 0
        %1498 = vmatprep.subr.bf16.mxu0 0
        %1499 = vmatpush1.bf16.msra.mxu0 0
        %1500 = vmatprep.subr.bf16.mxu0 0
        %1501 = vmatpush1.bf16.msra.mxu0 0
        %1502 = vmatprep.subr.bf16.mxu0 0
        %1503 = vmatpush1.bf16.msra.mxu0 0
        %1504 = vmatprep.subr.bf16.mxu0 0
        %1505 = vmatpush1.bf16.msra.mxu0 0
        %1506 = vmatprep.subr.bf16.mxu0 0
        %1507 = vmatpush1.bf16.msra.mxu0 0
        %1508 = vmatprep.subr.bf16.mxu0 0
        %1509 = vmatpush1.bf16.msra.mxu0 0
        %1510 = vmatprep.subr.bf16.mxu0 0
        %1511 = vmatpush1.bf16.msra.mxu0 0
        %1512 = vmatprep.subr.bf16.mxu0 0
        %1513 = vmatpush1.bf16.msra.mxu0 0
        %1514 = vmatprep.subr.bf16.mxu0 0
        %1515 = vmatpush1.bf16.msra.mxu0 0
        %1516 = vmatprep.mubr.bf16.mxu0 0
        %1517 = vmatmul.mubr.bf16.gmra.mrb[0].mxu0 %v1476
        %v1518 = vpop.f32.mrb[0].mxu0
        %v1519 = vadd.f32 %v1433, %v1518
        %v1520 = vpop.f32.mrb[0].mxu0
        %v1521 = vadd.f32 %v1433, %v1520
        %v1522 = vpop.f32.mrb[0].mxu0
        %v1523 = vadd.f32 %v1438, %v1522
        %v1524 = vpop.f32.mrb[0].mxu0
        %v1525 = vadd.f32 %v1438, %v1524
        %1526 = vmatprep.mubr.bf16.mxu0 0
        %1527 = vmatmul.mubr.bf16.gmra.mrb[0].mxu0 %v1479
        %v1528 = vpop.f32.mrb[0].mxu0
        %v1529 = vadd.f32 %v1443, %v1528
        %v1530 = vpop.f32.mrb[0].mxu0
        %v1531 = vadd.f32 %v1443, %v1530
        %v1532 = vpop.f32.mrb[0].mxu0
        %v1533 = vadd.f32 %v1448, %v1532
        %v1534 = vpop.f32.mrb[0].mxu0
        %v1535 = vadd.f32 %v1448, %v1534
        %1536 = vmatprep.mubr.bf16.mxu0 0
        %1537 = vmatmul.mubr.bf16.gmra.mrb[0].mxu0 %v1482
        %v1538 = vpop.f32.mrb[0].mxu0
        %v1539 = vadd.f32 %v1453, %v1538
        %v1540 = vpop.f32.mrb[0].mxu0
        %v1541 = vadd.f32 %v1453, %v1540
        %v1542 = vpop.f32.mrb[0].mxu0
        %v1543 = vadd.f32 %v1458, %v1542
        %v1544 = vpop.f32.mrb[0].mxu0
        %v1545 = vadd.f32 %v1458, %v1544
        %1546 = vdwg.mxu0
        %v1547 = vmax.f32 %v1519, 0.0
        %v1548 = vmax.f32 %v1521, 0.0
        %v1549 = vmax.f32 %v1523, 0.0
        %v1550 = vmax.f32 %v1525, 0.0
        %v1551 = vmax.f32 %v1529, 0.0
        %v1552 = vmax.f32 %v1531, 0.0
        %v1553 = vmax.f32 %v1533, 0.0
        %v1554 = vmax.f32 %v1535, 0.0
        %v1555 = vmax.f32 %v1539, 0.0
        %v1556 = vmax.f32 %v1541, 0.0
        %v1557 = vmax.f32 %v1543, 0.0
        %v1558 = vmax.f32 %v1545, 0.0
        %v1559 = vld [vmem:[%s16] sm:$0xf]
        %v1560 = vld [vmem:[%s16 + $0x4] sm:$0xf]
        %v1561 = vld [vmem:[%s16 + $0x8] sm:$0xf]
        %v1562 = vld [vmem:[%s16 + $0xc] sm:$0xf]
        %v1563 = vld [vmem:[%s16 + $0x10] sm:$0xf]
        %v1564 = vld [vmem:[%s16 + $0x14] sm:$0xf]
        %v1565 = vld [vmem:[%s16 + $0x18] sm:$0xf]
        %v1566 = vld [vmem:[%s16 + $0x1c] sm:$0xf]
        %v1567 = vpack.c.bf16 %v1549, %v1547
        %v1568 = vpack.c.bf16 %v1550, %v1548
        %v1569 = vpack.c.bf16 %v1553, %v1551
        %v1570 = vpack.c.bf16 %v1554, %v1552
        %v1571 = vpack.c.bf16 %v1557, %v1555
        %v1572 = vpack.c.bf16 %v1558, %v1556
        %v1573 = vld [vmem:[%s17] sm:$0xff]
        %v1574 = vld [vmem:[%s17 + $0x8] sm:$0xff]
        %v1575 = vld [vmem:[%s17 + $0x10] sm:$0xff]
        %v1576 = vld [vmem:[%s17 + $0x18] sm:$0xff]
        %v1577 = vld [vmem:[%s17 + $0x20] sm:$0xff]
        %v1578 = vld [vmem:[%s17 + $0x28] sm:$0xff]
        %v1579 = vld [vmem:[%s17 + $0x30] sm:$0xff]
        %v1580 = vld [vmem:[%s17 + $0x38] sm:$0xff]
        %1582 = vset.pattern.permute.xlu0 0
        %1583 = vperm.xlu0 %1582, %v1573
        %v1584 = vpop.permute.xlu0 %1583
        %1587 = vset.pattern.permute.xlu0 0
        %1588 = vperm.xlu0 %1587, %v1574
        %v1589 = vpop.permute.xlu0 %1588
        %1592 = vset.pattern.permute.xlu0 0
        %1593 = vperm.xlu0 %1592, %v1575
        %v1594 = vpop.permute.xlu0 %1593
        %1597 = vset.pattern.permute.xlu0 0
        %1598 = vperm.xlu0 %1597, %v1576
        %v1599 = vpop.permute.xlu0 %1598
        %1602 = vset.pattern.permute.xlu0 0
        %1603 = vperm.xlu0 %1602, %v1577
        %v1604 = vpop.permute.xlu0 %1603
        %1607 = vset.pattern.permute.xlu0 0
        %1608 = vperm.xlu0 %1607, %v1578
        %v1609 = vpop.permute.xlu0 %1608
        %1612 = vset.pattern.permute.xlu0 0
        %1613 = vperm.xlu0 %1612, %v1579
        %v1614 = vpop.permute.xlu0 %1613
        %1617 = vset.pattern.permute.xlu0 0
        %1618 = vperm.xlu0 %1617, %v1580
        %v1619 = vpop.permute.xlu0 %1618
        %v1629 = vunpack.c.l.b16 %v1559
        %v1630 = vunpack.c.l.b16 %v1560
        %v1631 = vunpack.c.l.b16 %v1561
        %v1632 = vunpack.c.l.b16 %v1562
        %v1633 = vunpack.c.l.b16 %v1563
        %v1634 = vunpack.c.l.b16 %v1564
        %v1635 = vunpack.c.l.b16 %v1565
        %v1636 = vunpack.c.l.b16 %v1566
        %v1637 = vpack.c.b16 %v1630, %v1629
        %v1638 = vpack.c.b16 %v1632, %v1631
        %v1639 = vpack.c.b16 %v1634, %v1633
        %v1640 = vpack.c.b16 %v1636, %v1635
        %v1642 = vsel %vm927, %v1637, 0
        %v1645 = vsel %vm927, %v1638, 0
        %v1648 = vsel %vm927, %v1639, 0
        %v1651 = vsel %vm927, %v1640, 0
        %1653 = vmatprep.subr.bf16.mxu0 %v1568
        %1654 = vmatpush1.bf16.msra.mxu0 %v1567
        %1655 = vmatprep.subr.bf16.mxu0 %v1570
        %1656 = vmatpush1.bf16.msra.mxu0 %v1569
        %1657 = vmatprep.subr.bf16.mxu0 %v1572
        %1658 = vmatpush1.bf16.msra.mxu0 %v1571
        %1659 = vmatprep.subr.bf16.mxu0 0
        %1660 = vmatpush1.bf16.msra.mxu0 0
        %1661 = vmatprep.subr.bf16.mxu0 0
        %1662 = vmatpush1.bf16.msra.mxu0 0
        %1663 = vmatprep.subr.bf16.mxu0 0
        %1664 = vmatpush1.bf16.msra.mxu0 0
        %1665 = vmatprep.subr.bf16.mxu0 0
        %1666 = vmatpush1.bf16.msra.mxu0 0
        %1667 = vmatprep.subr.bf16.mxu0 0
        %1668 = vmatpush1.bf16.msra.mxu0 0
        %1669 = vmatprep.subr.bf16.mxu0 0
        %1670 = vmatpush1.bf16.msra.mxu0 0
        %1671 = vmatprep.subr.bf16.mxu0 0
        %1672 = vmatpush1.bf16.msra.mxu0 0
        %1673 = vmatprep.subr.bf16.mxu0 0
        %1674 = vmatpush1.bf16.msra.mxu0 0
        %1675 = vmatprep.subr.bf16.mxu0 0
        %1676 = vmatpush1.bf16.msra.mxu0 0
        %1677 = vmatprep.subr.bf16.mxu0 0
        %1678 = vmatpush1.bf16.msra.mxu0 0
        %1679 = vmatprep.subr.bf16.mxu0 0
        %1680 = vmatpush1.bf16.msra.mxu0 0
        %1681 = vmatprep.subr.bf16.mxu0 0
        %1682 = vmatpush1.bf16.msra.mxu0 0
        %1683 = vmatprep.subr.bf16.mxu0 0
        %1684 = vmatpush1.bf16.msra.mxu0 0
        %1685 = vmatprep.mubr.bf16.mxu0 0
        %1686 = vmatmul.mubr.bf16.gmra.mrb[0].mxu0 %v1642
        %v1687 = vpop.f32.mrb[0].mxu0
        %v1688 = vadd.f32 %v1584, %v1687
        %v1689 = vpop.f32.mrb[0].mxu0
        %v1690 = vadd.f32 %v1584, %v1689
        %v1691 = vpop.f32.mrb[0].mxu0
        %v1692 = vadd.f32 %v1589, %v1691
        %v1693 = vpop.f32.mrb[0].mxu0
        %v1694 = vadd.f32 %v1589, %v1693
        %1695 = vmatprep.mubr.bf16.mxu0 0
        %1696 = vmatmul.mubr.bf16.gmra.mrb[0].mxu0 %v1645
        %v1697 = vpop.f32.mrb[0].mxu0
        %v1698 = vadd.f32 %v1594, %v1697
        %v1699 = vpop.f32.mrb[0].mxu0
        %v1700 = vadd.f32 %v1594, %v1699
        %v1701 = vpop.f32.mrb[0].mxu0
        %v1702 = vadd.f32 %v1599, %v1701
        %v1703 = vpop.f32.mrb[0].mxu0
        %v1704 = vadd.f32 %v1599, %v1703
        %1705 = vmatprep.mubr.bf16.mxu0 0
        %1706 = vmatmul.mubr.bf16.gmra.mrb[0].mxu0 %v1648
        %v1707 = vpop.f32.mrb[0].mxu0
        %v1708 = vadd.f32 %v1604, %v1707
        %v1709 = vpop.f32.mrb[0].mxu0
        %v1710 = vadd.f32 %v1604, %v1709
        %v1711 = vpop.f32.mrb[0].mxu0
        %v1712 = vadd.f32 %v1609, %v1711
        %v1713 = vpop.f32.mrb[0].mxu0
        %v1714 = vadd.f32 %v1609, %v1713
        %1715 = vmatprep.mubr.bf16.mxu0 0
        %1716 = vmatmul.mubr.bf16.gmra.mrb[0].mxu0 %v1651
        %v1717 = vpop.f32.mrb[0].mxu0
        %v1718 = vadd.f32 %v1614, %v1717
        %v1719 = vpop.f32.mrb[0].mxu0
        %v1720 = vadd.f32 %v1614, %v1719
        %v1721 = vpop.f32.mrb[0].mxu0
        %v1722 = vadd.f32 %v1619, %v1721
        %v1723 = vpop.f32.mrb[0].mxu0
        %v1724 = vadd.f32 %v1619, %v1723
        %1725 = vdwg.mxu0
        %1726 = vst [vmem:[%s682] sm:$0xff] %v1688
        %1727 = vst [vmem:[%s682 + $0x8] sm:$0xff] %v1690
        %1728 = vst [vmem:[%s682 + $0x10] sm:$0xff] %v1692
        %1729 = vst [vmem:[%s682 + $0x18] sm:$0xff] %v1694
        %1730 = vst [vmem:[%s682 + $0x20] sm:$0xff] %v1698
        %1731 = vst [vmem:[%s682 + $0x28] sm:$0xff] %v1700
        %1732 = vst [vmem:[%s682 + $0x30] sm:$0xff] %v1702
        %1733 = vst [vmem:[%s682 + $0x38] sm:$0xff] %v1704
        %1734 = vst [vmem:[%s682 + $0x40] sm:$0xff] %v1708
        %1735 = vst [vmem:[%s682 + $0x48] sm:$0xff] %v1710
        %1736 = vst [vmem:[%s682 + $0x50] sm:$0xff] %v1712
        %1737 = vst [vmem:[%s682 + $0x58] sm:$0xff] %v1714
        %1738 = vst [vmem:[%s682 + $0x60] sm:$0xff] %v1718
        %1739 = vst [vmem:[%s682 + $0x68] sm:$0xff] %v1720
        %1740 = vst [vmem:[%s682 + $0x70] sm:$0xff] %v1722
        %1741 = vst [vmem:[%s682 + $0x78] sm:$0xff] %v1724
        %s1742 = sand.u32 %s427, 1
        %s1743 = sand.u32 %s427, 1
        %s1744 = smul.addr %s1743, 32
        %s1745 = scalar_lea.vmem [#allocation3], %s1744
        %s1746 = sand.u32 %s453, 1
        %s1747 = sand.u32 %s453, 1
        %s1748 = smul.addr %s1747, 128
        %s1749 = scalar_lea.vmem [#allocation4], %s1748
        // Predicated region
        $region131: #{vae_forward.1} parent=125 // pred_check
          %p1750 = pneg %p437
        $region132: #{vae_forward.1} parent=125 // pred_check_branch
          %1752 = sbr.rel (%p1750) target = $region134
        $region133: #{vae_forward.1} parent=125 // pred_region
          %s1753 = smul.u32 2, %s31
          %s1754 = smul.addr %s1753, 8
          %s1755 = scalar_lea.vmem %s18, %s1754
          // Predicated region
          $region135: #{vae_forward.1} parent=133 // pred_check
            _
          $region136: #{vae_forward.1} parent=133 // pred_check_branch
            %1757 = sbr.rel (0) target = $region138
          $region137: #{vae_forward.1} parent=133 // pred_region
            // Predicated region
            $region139: #{vae_forward.1} parent=137 // pred_check
              _
            $region140: #{vae_forward.1} parent=137 // pred_check_branch
              %1759 = sbr.rel (0) target = $region142
            $region141: #{vae_forward.1} parent=137 // pred_region
              loop: start=0, step=1, limit=1
              $region143: #{vae_forward.1} parent=141 // loop_pre_header
                _
              $region144: #{vae_forward.1} parent=141 // loop_header
                %s1761 = sphi 0, %s1765
                %p1762 = scmp.ge.s32.totalorder %s1761, 1
                %s1766 = sphi %s1745, %s1745
                %s1767 = sphi %s1755, %s1755
              $region145: #{vae_forward.1} parent=141 // loop_header_branch
                %1764 = sbr.rel (%p1762) target = $region149
              $region146: #{vae_forward.1} parent=141 // loop_body
                %v1768 = vld [vmem:[%s1766] sm:$0xff]
                %1769 = vst [vmem:[%s1767] sm:$0xff] %v1768
                %v1770 = vld [vmem:[%s1766 + $0x8] sm:$0xff]
                %1771 = vst [vmem:[%s1767 + $0x8] sm:$0xff] %v1770
                %v1772 = vld [vmem:[%s1766 + $0x10] sm:$0xff]
                %1773 = vst [vmem:[%s1767 + $0x20] sm:$0xff] %v1772
                %v1774 = vld [vmem:[%s1766 + $0x18] sm:$0xff]
                %1775 = vst [vmem:[%s1767 + $0x28] sm:$0xff] %v1774
              $region147: #{vae_forward.1} parent=141 // loop_footer
                %s1765 = sadd.s32 1, %s1761
              $region148: #{vae_forward.1} parent=141 // loop_footer_branch
                %1760 = sbr.rel target = $region144
              $region149: #{vae_forward.1} parent=141 // loop_exit
                _
            $region142: #{vae_forward.1} parent=137 // pred_fallthru
              _
            // Predicated region
            $region150: #{vae_forward.1} parent=137 // pred_check
              _
            $region151: #{vae_forward.1} parent=137 // pred_check_branch
              %1777 = sbr.rel target = $region153
            $region152: #{vae_forward.1} parent=137 // pred_region
              _
            $region153: #{vae_forward.1} parent=137 // pred_fallthru
              _
          $region138: #{vae_forward.1} parent=133 // pred_fallthru
            _
          %1778 = vnop
        $region134: #{vae_forward.1} parent=125 // pred_fallthru
          _
        // Predicated region
        $region154: #{vae_forward.1} parent=125 // pred_check
          %p1779 = pneg %p463
        $region155: #{vae_forward.1} parent=125 // pred_check_branch
          %1781 = sbr.rel (%p1779) target = $region157
        $region156: #{vae_forward.1} parent=125 // pred_region
          %s1782 = smul.u32 2, %s31
          %s1783 = smul.addr %s1782, 8
          %s1784 = scalar_lea.vmem %s19, %s1783
          // Predicated region
          $region158: #{vae_forward.1} parent=156 // pred_check
            _
          $region159: #{vae_forward.1} parent=156 // pred_check_branch
            %1786 = sbr.rel (0) target = $region161
          $region160: #{vae_forward.1} parent=156 // pred_region
            // Predicated region
            $region162: #{vae_forward.1} parent=160 // pred_check
              _
            $region163: #{vae_forward.1} parent=160 // pred_check_branch
              %1788 = sbr.rel (0) target = $region165
            $region164: #{vae_forward.1} parent=160 // pred_region
              loop: start=0, step=1, limit=1
              $region166: #{vae_forward.1} parent=164 // loop_pre_header
                _
              $region167: #{vae_forward.1} parent=164 // loop_header
                %s1790 = sphi 0, %s1794
                %p1791 = scmp.ge.s32.totalorder %s1790, 1
                %s1795 = sphi %s1749, %s1749
                %s1796 = sphi %s1784, %s1784
              $region168: #{vae_forward.1} parent=164 // loop_header_branch
                %1793 = sbr.rel (%p1791) target = $region172
              $region169: #{vae_forward.1} parent=164 // loop_body
                %v1797 = vld [vmem:[%s1795] sm:$0xff]
                %1798 = vst [vmem:[%s1796] sm:$0xff] %v1797
                %v1799 = vld [vmem:[%s1795 + $0x8] sm:$0xff]
                %1800 = vst [vmem:[%s1796 + $0x8] sm:$0xff] %v1799
                %v1801 = vld [vmem:[%s1795 + $0x10] sm:$0xff]
                %1802 = vst [vmem:[%s1796 + $0x20] sm:$0xff] %v1801
                %v1803 = vld [vmem:[%s1795 + $0x18] sm:$0xff]
                %1804 = vst [vmem:[%s1796 + $0x28] sm:$0xff] %v1803
                %v1805 = vld [vmem:[%s1795 + $0x20] sm:$0xff]
                %1806 = vst [vmem:[%s1796 + $0x40] sm:$0xff] %v1805
                %v1807 = vld [vmem:[%s1795 + $0x28] sm:$0xff]
                %1808 = vst [vmem:[%s1796 + $0x48] sm:$0xff] %v1807
                %v1809 = vld [vmem:[%s1795 + $0x30] sm:$0xff]
                %1810 = vst [vmem:[%s1796 + $0x60] sm:$0xff] %v1809
                %v1811 = vld [vmem:[%s1795 + $0x38] sm:$0xff]
                %1812 = vst [vmem:[%s1796 + $0x68] sm:$0xff] %v1811
                %v1813 = vld [vmem:[%s1795 + $0x40] sm:$0xff]
                %1814 = vst [vmem:[%s1796 + $0x80] sm:$0xff] %v1813
                %v1815 = vld [vmem:[%s1795 + $0x48] sm:$0xff]
                %1816 = vst [vmem:[%s1796 + $0x88] sm:$0xff] %v1815
                %v1817 = vld [vmem:[%s1795 + $0x50] sm:$0xff]
                %1818 = vst [vmem:[%s1796 + $0xa0] sm:$0xff] %v1817
                %v1819 = vld [vmem:[%s1795 + $0x58] sm:$0xff]
                %1820 = vst [vmem:[%s1796 + $0xa8] sm:$0xff] %v1819
                %v1821 = vld [vmem:[%s1795 + $0x60] sm:$0xff]
                %1822 = vst [vmem:[%s1796 + $0xc0] sm:$0xff] %v1821
                %v1823 = vld [vmem:[%s1795 + $0x68] sm:$0xff]
                %1824 = vst [vmem:[%s1796 + $0xc8] sm:$0xff] %v1823
                %v1825 = vld [vmem:[%s1795 + $0x70] sm:$0xff]
                %1826 = vst [vmem:[%s1796 + $0xe0] sm:$0xff] %v1825
                %v1827 = vld [vmem:[%s1795 + $0x78] sm:$0xff]
                %1828 = vst [vmem:[%s1796 + $0xe8] sm:$0xff] %v1827
              $region170: #{vae_forward.1} parent=164 // loop_footer
                %s1794 = sadd.s32 1, %s1790
              $region171: #{vae_forward.1} parent=164 // loop_footer_branch
                %1789 = sbr.rel target = $region167
              $region172: #{vae_forward.1} parent=164 // loop_exit
                _
            $region165: #{vae_forward.1} parent=160 // pred_fallthru
              _
            // Predicated region
            $region173: #{vae_forward.1} parent=160 // pred_check
              _
            $region174: #{vae_forward.1} parent=160 // pred_check_branch
              %1830 = sbr.rel target = $region176
            $region175: #{vae_forward.1} parent=160 // pred_region
              _
            $region176: #{vae_forward.1} parent=160 // pred_fallthru
              _
          $region161: #{vae_forward.1} parent=156 // pred_fallthru
            _
          %1831 = vnop
        $region157: #{vae_forward.1} parent=125 // pred_fallthru
          _
      $region126: #{vae_forward.1} parent=5 // pred_fallthru
        _
      %p1832 = scmp.le.s32.totalorder 2, %s26
      // Predicated region
      $region177: #{vae_forward.1} parent=5 // pred_check
        %p1833 = pneg %p1832
      $region178: #{vae_forward.1} parent=5 // pred_check_branch
        %1835 = sbr.rel (%p1833) target = $region180
      $region179: #{vae_forward.1} parent=5 // pred_region
        %s1836 = ssub.s32 %s26, 2
        // Predicated region
        $region181: #{vae_forward.1} parent=179 // pred_check
          %p1837 = pneg %p443
        $region182: #{vae_forward.1} parent=179 // pred_check_branch
          %1839 = sbr.rel (%p1837) target = $region184
        $region183: #{vae_forward.1} parent=179 // pred_region
          %s1840 = sand.u32 %s428, 1
          %s1841 = sand.u32 %s428, 1
          %s1842 = smul.addr %s1841, 32
          %s1843 = scalar_lea.vmem [#allocation3], %s1842
        $region184: #{vae_forward.1} parent=179 // pred_fallthru
          _
        // Predicated region
        $region185: #{vae_forward.1} parent=179 // pred_check
          %p1844 = pneg %p469
        $region186: #{vae_forward.1} parent=179 // pred_check_branch
          %1846 = sbr.rel (%p1844) target = $region188
        $region187: #{vae_forward.1} parent=179 // pred_region
          %s1847 = sand.u32 %s454, 1
          %s1848 = sand.u32 %s454, 1
          %s1849 = smul.addr %s1848, 128
          %s1850 = scalar_lea.vmem [#allocation4], %s1849
        $region188: #{vae_forward.1} parent=179 // pred_fallthru
          _
      $region180: #{vae_forward.1} parent=5 // pred_fallthru
        _
    $region6: #{vae_forward.1} parent=1 // loop_footer
      %s30 = sadd.s32 1, %s26
    $region7: #{vae_forward.1} parent=1 // loop_footer_branch
      %25 = sbr.rel target = $region3
    $region8: #{vae_forward.1} parent=1 // loop_exit
      _

</llo_original>
